<compile_context>
chip_gen: v7x
topology: tpu7x:2x2x1
jax: 0.10.0
libtpu: 0.0.40
codegen_flags: <defaults>
</compile_context>

<pallas_src>
import functools

import numpy as np
import jax
import jax.numpy as jnp
from jax.experimental import pallas as pl
from jax.experimental.pallas import tpu as pltpu


def _round_up(a, b):
    return (a + b - 1) // b * b


# -----------------------------------------------------------------------------
# Fused LeNet kernel (one grid step = BB samples).
# -----------------------------------------------------------------------------
def _make_lenet_kernel(bb):
    def kernel(x_ref, w1_ref, b1_ref, w2_ref, b2_ref,
               wf1_ref, bf1_ref, wf2_ref, bf2_ref, wf3_ref, bf3_ref, o_ref):
        # x_ref : (1, 32*bb, 96) bf16   rows = y*bb + s,  lanes = x*3 + cin
        # w1_ref: (5, 96, 512)  bf16    block-Toeplitz conv1, out lanes = dx*256 + x1*16 + co
        # w2_ref: (5, 256, 512) bf16    block-Toeplitz conv2, out lanes = dx*256 + x3*32 + co
        # wf1_ref: (5, 256, 120) bf16   per-y3 fc1 weight (flatten + pool2-y folded in)
        # wf3_ref: (84, 128) bf16       fc3 weight zero-padded to 128 output lanes
        x = x_ref[0]                                          # (32*bb, 96)

        # ---- conv1 (+bias+ReLU): 5 dots, one per ky; sample index is row-minor so the
        # row shift by ky*bb never mixes samples.
        m1 = 28 * bb
        acc = jnp.dot(x[0:m1], w1_ref[0], preferred_element_type=jnp.float32)
        for ky in range(1, 5):
            acc = acc + jnp.dot(x[ky * bb: ky * bb + m1], w1_ref[ky],
                                preferred_element_type=jnp.float32)
        c1 = jnp.maximum(acc + b1_ref[...], 0.0)              # (28*bb, 512)

        # ---- maxpool 2x2 after conv1: x-max = aligned lane-half max (dx),
        # y-max = row-pair max (rows are y-major, sample-minor).
        p1x = jnp.maximum(c1[:, :256], c1[:, 256:])           # (28*bb, 256) lanes = x1*16+cin
        v = p1x.reshape(14, 2 * bb, 256)
        p1 = jnp.maximum(v[:, :bb, :], v[:, bb:, :]).reshape(14 * bb, 256)
        p1 = p1.astype(jnp.bfloat16)                          # rows = y1*bb + s

        # ---- conv2 (+bias+ReLU): same block-Toeplitz trick, K = 256, N = 512.
        m2 = 10 * bb
        acc = jnp.dot(p1[0:m2], w2_ref[0], preferred_element_type=jnp.float32)
        for ky in range(1, 5):
            acc = acc + jnp.dot(p1[ky * bb: ky * bb + m2], w2_ref[ky],
                                preferred_element_type=jnp.float32)
        c2 = jnp.maximum(acc + b2_ref[...], 0.0)              # (10*bb, 512)

        # ---- maxpool 2x2 after conv2: x-max is a lane-half max; the y-max and the NCHW
        # flatten are folded into 5 fc1 dots (one per pooled row y3).
        p2x = jnp.maximum(c2[:, :256], c2[:, 256:])           # (10*bb, 256), rows = y2*bb + s

        h = None
        for y3 in range(5):
            py = jnp.maximum(p2x[(2 * y3) * bb:(2 * y3 + 1) * bb],
                             p2x[(2 * y3 + 1) * bb:(2 * y3 + 2) * bb])   # (bb, 256)
            d = jnp.dot(py.astype(jnp.bfloat16), wf1_ref[y3],
                        preferred_element_type=jnp.float32)
            h = d if h is None else h + d
        h = jnp.maximum(h + bf1_ref[...], 0.0).astype(jnp.bfloat16)      # (bb, 120)

        # ---- fc2 + ReLU, fc3 (output padded to 128 lanes -> lane-dense store).
        h = jnp.maximum(jnp.dot(h, wf2_ref[...], preferred_element_type=jnp.float32)
                        + bf2_ref[...], 0.0).astype(jnp.bfloat16)        # (bb, 84)
        o_ref[...] = (jnp.dot(h, wf3_ref[...], preferred_element_type=jnp.float32)
                      + bf3_ref[...])                                    # (bb, 128)

    return kernel


# -----------------------------------------------------------------------------
# Forward wrapper.
# -----------------------------------------------------------------------------
def lenet_forward(packed, x_nchw, block_batch=8):
    n = x_nchw.shape[0]
    bb = min(block_batch, n)
    n_pad = _round_up(n, bb)
    nb = n_pad // bb

    # Layout plumbing only (done once in XLA on the raw input):
    # NCHW -> (block, y*bb + sample, x*3 + cin), bf16, 96-wide lanes.
    x = jnp.transpose(x_nchw, (0, 2, 3, 1)).astype(jnp.bfloat16)       # (N, 32, 32, 3)
    if n_pad != n:
        x = jnp.pad(x, ((0, n_pad - n), (0, 0), (0, 0), (0, 0)))
    x = x.reshape(nb, bb, 32, 96)
    x = jnp.transpose(x, (0, 2, 1, 3)).reshape(nb, 32 * bb, 96)

    out = pl.pallas_call(
        _make_lenet_kernel(bb),
        out_shape=jax.ShapeDtypeStruct((n_pad, 128), jnp.float32),
        grid=(nb,),
        in_specs=[
            pl.BlockSpec((1, 32 * bb, 96), lambda b: (b, 0, 0)),
            pl.BlockSpec((5, 96, 512), lambda b: (0, 0, 0)),
            pl.BlockSpec((1, 512), lambda b: (0, 0)),
            pl.BlockSpec((5, 256, 512), lambda b: (0, 0, 0)),
            pl.BlockSpec((1, 512), lambda b: (0, 0)),
            pl.BlockSpec((5, 256, 120), lambda b: (0, 0, 0)),
            pl.BlockSpec((1, 120), lambda b: (0, 0)),
            pl.BlockSpec((120, 84), lambda b: (0, 0)),
            pl.BlockSpec((1, 84), lambda b: (0, 0)),
            pl.BlockSpec((84, 128), lambda b: (0, 0)),
            pl.BlockSpec((1, 128), lambda b: (0, 0)),
        ],
        out_specs=pl.BlockSpec((bb, 128), lambda b: (b, 0)),
        compiler_params=pltpu.CompilerParams(
            dimension_semantics=("parallel",),
            vmem_limit_bytes=32 * 1024 * 1024),
    )(x, packed["w1"], packed["b1"], packed["w2"], packed["b2"],
      packed["wf1"], packed["bf1"], packed["wf2"], packed["bf2"],
      packed["wf3"], packed["bf3"])
    return out[:n, :10]


# -----------------------------------------------------------------------------
# Parameters (PyTorch layout) and one-time packing into kernel layout.
# -----------------------------------------------------------------------------
def init_params(key):
    ks = jax.random.split(key, 10)

    def norm(k, shape, scale):
        return scale * jax.random.normal(k, shape, dtype=jnp.float32)

    return {
        "conv1_w": norm(ks[0], (16, 3, 5, 5), 0.1),
        "conv1_b": norm(ks[1], (16,), 0.1),
        "conv2_w": norm(ks[2], (32, 16, 5, 5), 0.05),
        "conv2_b": norm(ks[3], (32,), 0.05),
        "fc1_w": norm(ks[4], (120, 32 * 5 * 5), 0.05),     # PyTorch Linear (out, in)
        "fc1_b": norm(ks[5], (120,), 0.05),
        "fc2_w": norm(ks[6], (84, 120), 0.05),
        "fc2_b": norm(ks[7], (84,), 0.05),
        "fc3_w": norm(ks[8], (10, 84), 0.05),
        "fc3_b": norm(ks[9], (10,), 0.05),
    }


def pack_params(p):
    """One-time re-layout of PyTorch params into block-Toeplitz / padded kernel layout."""
    w1 = np.asarray(p["conv1_w"], np.float32)              # (co=16, cin=3, ky=5, kx=5)
    w2 = np.asarray(p["conv2_w"], np.float32)              # (co=32, cin=16, ky=5, kx=5)

    # conv1: K = (x_in in [0,32)) x cin -> 96 ; N lanes = dx*256 + x1*16 + co (x1 padded to 16)
    w1t = np.zeros((5, 32, 3, 2, 16, 16), np.float32)      # [ky, x_in, cin, dx, x1, co]
    for ky in range(5):
        for dx in range(2):
            for x1 in range(14):
                x_out = 2 * x1 + dx
                for kx in range(5):
                    w1t[ky, x_out + kx, :, dx, x1, :] = w1[:, :, ky, kx].T
    w1t = w1t.reshape(5, 96, 512)
    b1p = np.zeros((2, 16, 16), np.float32)
    b1p[:, :14, :] = np.asarray(p["conv1_b"], np.float32)
    b1p = b1p.reshape(1, 512)

    # conv2: K = (x1 in [0,16)) x cin -> 256 ; N lanes = dx*256 + x3*32 + co (x3 padded to 8)
    w2t = np.zeros((5, 16, 16, 2, 8, 32), np.float32)      # [ky, x1, cin, dx, x3, co]
    for ky in range(5):
        for dx in range(2):
            for x3 in range(5):
                x_out = 2 * x3 + dx
                for kx in range(5):
                    w2t[ky, x_out + kx, :, dx, x3, :] = w2[:, :, ky, kx].T
    w2t = w2t.reshape(5, 256, 512)
    b2p = np.zeros((2, 8, 32), np.float32)
    b2p[:, :5, :] = np.asarray(p["conv2_b"], np.float32)
    b2p = b2p.reshape(1, 512)

    # fc1: fold PyTorch's NCHW flatten (k = co*25 + y3*5 + x3) and pool2's y-max into 5
    # per-y3 weights whose input lanes are x3*32 + co (x3 padded to 8, pad rows zero).
    f1 = np.asarray(p["fc1_w"], np.float32).reshape(120, 32, 5, 5)     # (o, co, y3, x3)
    wf1 = np.zeros((5, 8, 32, 120), np.float32)                        # [y3, x3, co, o]
    wf1[:, :5, :, :] = f1.transpose(2, 3, 1, 0)
    wf1 = wf1.reshape(5, 256, 120)

    # fc3: zero-pad output lanes to 128 for a lane-dense final store.
    wf3 = np.zeros((84, 128), np.float32)
    wf3[:, :10] = np.asarray(p["fc3_w"], np.float32).T
    bf3 = np.zeros((1, 128), np.float32)
    bf3[0, :10] = np.asarray(p["fc3_b"], np.float32)

    return {
        "w1": jnp.asarray(w1t, jnp.bfloat16),
        "b1": jnp.asarray(b1p, jnp.float32),
        "w2": jnp.asarray(w2t, jnp.bfloat16),
        "b2": jnp.asarray(b2p, jnp.float32),
        "wf1": jnp.asarray(wf1, jnp.bfloat16),
        "bf1": jnp.asarray(p["fc1_b"], jnp.float32).reshape(1, 120),
        "wf2": jnp.asarray(p["fc2_w"], jnp.float32).T.astype(jnp.bfloat16),
        "bf2": jnp.asarray(p["fc2_b"], jnp.float32).reshape(1, 84),
        "wf3": jnp.asarray(wf3, jnp.bfloat16),
        "bf3": jnp.asarray(bf3, jnp.float32),
    }


# -----------------------------------------------------------------------------
# Pure-JAX reference (f32) for a sanity check.
# -----------------------------------------------------------------------------
def lenet_reference(params, x_nchw):
    dn = ("NCHW", "OIHW", "NCHW")
    y = jax.lax.conv_general_dilated(x_nchw.astype(jnp.float32), params["conv1_w"],
                                     (1, 1), "VALID", dimension_numbers=dn)
    y = jnp.maximum(y + params["conv1_b"][None, :, None, None], 0.0)
    n, c, h, w = y.shape
    y = y.reshape(n, c, h // 2, 2, w // 2, 2).max(axis=(3, 5))
    y = jax.lax.conv_general_dilated(y, params["conv2_w"], (1, 1), "VALID",
                                     dimension_numbers=dn)
    y = jnp.maximum(y + params["conv2_b"][None, :, None, None], 0.0)
    n, c, h, w = y.shape
    y = y.reshape(n, c, h // 2, 2, w // 2, 2).max(axis=(3, 5))
    y = y.reshape(n, -1)
    y = jnp.maximum(y @ params["fc1_w"].T + params["fc1_b"], 0.0)
    y = jnp.maximum(y @ params["fc2_w"].T + params["fc2_b"], 0.0)
    return y @ params["fc3_w"].T + params["fc3_b"]


if __name__ == "__main__":
    key = jax.random.PRNGKey(0)
    pkey, xkey = jax.random.split(key)
    params = init_params(pkey)
    packed = pack_params(params)
    # LeNet's fc1 (32*5*5) implies a 32x32 spatial input with 3 channels.
    x = jax.random.normal(xkey, (2, 3, 32, 32), dtype=jnp.float32)

    out = jax.jit(lenet_forward)(packed, x)
    out = jax.block_until_ready(out)
    assert out.shape == (2, 10), out.shape

    # Loose sanity check against an f32 reference (kernel uses bf16 operands).
    ref = lenet_reference(params, x)
    err = float(jnp.max(jnp.abs(out - ref)))
    scale = float(jnp.max(jnp.abs(ref)))
    assert err <= 2e-2 + 2e-2 * scale, (err, scale)
    print("KERNEL_OK")
</pallas_src>

<mosaic_0001>
module attributes {stable_mosaic.version = 11 : i64} {
  func.func @kernel(%arg0: i32, %arg1: memref<1x64x96xbf16, #tpu.memory_space<vmem>>, %arg2: memref<5x96x512xbf16, #tpu.memory_space<vmem>>, %arg3: memref<1x512xf32, #tpu.memory_space<vmem>>, %arg4: memref<5x256x512xbf16, #tpu.memory_space<vmem>>, %arg5: memref<1x512xf32, #tpu.memory_space<vmem>>, %arg6: memref<5x256x120xbf16, #tpu.memory_space<vmem>>, %arg7: memref<1x120xf32, #tpu.memory_space<vmem>>, %arg8: memref<120x84xbf16, #tpu.memory_space<vmem>>, %arg9: memref<1x84xf32, #tpu.memory_space<vmem>>, %arg10: memref<84x128xbf16, #tpu.memory_space<vmem>>, %arg11: memref<1x128xf32, #tpu.memory_space<vmem>>, %arg12: memref<2x128xf32, #tpu.memory_space<vmem>>) attributes {dimension_semantics = [#tpu.dimension_semantics<parallel>], iteration_bounds = array<i64: 1>, scalar_prefetch = 0 : i64, scratch_operands = 0 : i64, tpu.core_type = #tpu.core_type<tc>, window_params = [{transform_indices = @transform_0, window_bounds = array<i64: 1, 64, 96>}, {pipeline_mode = #tpu.pipeline_mode<synchronous>, transform_indices = @transform_1, window_bounds = array<i64: 5, 96, 512>}, {pipeline_mode = #tpu.pipeline_mode<synchronous>, transform_indices = @transform_2, window_bounds = array<i64: 1, 512>}, {pipeline_mode = #tpu.pipeline_mode<synchronous>, transform_indices = @transform_3, window_bounds = array<i64: 5, 256, 512>}, {pipeline_mode = #tpu.pipeline_mode<synchronous>, transform_indices = @transform_4, window_bounds = array<i64: 1, 512>}, {pipeline_mode = #tpu.pipeline_mode<synchronous>, transform_indices = @transform_5, window_bounds = array<i64: 5, 256, 120>}, {pipeline_mode = #tpu.pipeline_mode<synchronous>, transform_indices = @transform_6, window_bounds = array<i64: 1, 120>}, {pipeline_mode = #tpu.pipeline_mode<synchronous>, transform_indices = @transform_7, window_bounds = array<i64: 120, 84>}, {pipeline_mode = #tpu.pipeline_mode<synchronous>, transform_indices = @transform_8, window_bounds = array<i64: 1, 84>}, {pipeline_mode = #tpu.pipeline_mode<synchronous>, transform_indices = @transform_9, window_bounds = array<i64: 84, 128>}, {pipeline_mode = #tpu.pipeline_mode<synchronous>, transform_indices = @transform_10, window_bounds = array<i64: 1, 128>}, {transform_indices = @transform_11, window_bounds = array<i64: 2, 128>}]} {
    %c0 = arith.constant 0 : index
    %c0_0 = arith.constant 0 : index
    %c0_1 = arith.constant 0 : index
    %0 = vector.load %arg1[%c0, %c0_0, %c0_1] : memref<1x64x96xbf16, #tpu.memory_space<vmem>>, vector<1x64x96xbf16>
    %1 = vector.shape_cast %0 : vector<1x64x96xbf16> to vector<64x96xbf16>
    %2 = vector.extract_strided_slice %1 {offsets = [0, 0], sizes = [56, 96], strides = [1, 1]} : vector<64x96xbf16> to vector<56x96xbf16>
    %c0_2 = arith.constant 0 : index
    %c0_3 = arith.constant 0 : index
    %c0_4 = arith.constant 0 : index
    %3 = vector.load %arg2[%c0_2, %c0_3, %c0_4] : memref<5x96x512xbf16, #tpu.memory_space<vmem>>, vector<1x96x512xbf16>
    %4 = vector.shape_cast %3 : vector<1x96x512xbf16> to vector<96x512xbf16>
    %cst = arith.constant dense<0.000000e+00> : vector<56x512xf32>
    %5 = tpu.matmul %2, %4, %cst {dimension_numbers = #tpu.dot_dimension_numbers<[1], [0], [0], [1], [0, 0, 1, 1], [], []>} : vector<56x96xbf16>, vector<96x512xbf16>, vector<56x512xf32> -> vector<56x512xf32>
    %6 = vector.extract_strided_slice %1 {offsets = [2, 0], sizes = [56, 96], strides = [1, 1]} : vector<64x96xbf16> to vector<56x96xbf16>
    %c1 = arith.constant 1 : index
    %c0_5 = arith.constant 0 : index
    %c0_6 = arith.constant 0 : index
    %7 = vector.load %arg2[%c1, %c0_5, %c0_6] : memref<5x96x512xbf16, #tpu.memory_space<vmem>>, vector<1x96x512xbf16>
    %8 = vector.shape_cast %7 : vector<1x96x512xbf16> to vector<96x512xbf16>
    %cst_7 = arith.constant dense<0.000000e+00> : vector<56x512xf32>
    %9 = tpu.matmul %6, %8, %cst_7 {dimension_numbers = #tpu.dot_dimension_numbers<[1], [0], [0], [1], [0, 0, 1, 1], [], []>} : vector<56x96xbf16>, vector<96x512xbf16>, vector<56x512xf32> -> vector<56x512xf32>
    %10 = arith.addf %5, %9 : vector<56x512xf32>
    %11 = vector.extract_strided_slice %1 {offsets = [4, 0], sizes = [56, 96], strides = [1, 1]} : vector<64x96xbf16> to vector<56x96xbf16>
    %c2 = arith.constant 2 : index
    %c0_8 = arith.constant 0 : index
    %c0_9 = arith.constant 0 : index
    %12 = vector.load %arg2[%c2, %c0_8, %c0_9] : memref<5x96x512xbf16, #tpu.memory_space<vmem>>, vector<1x96x512xbf16>
    %13 = vector.shape_cast %12 : vector<1x96x512xbf16> to vector<96x512xbf16>
    %cst_10 = arith.constant dense<0.000000e+00> : vector<56x512xf32>
    %14 = tpu.matmul %11, %13, %cst_10 {dimension_numbers = #tpu.dot_dimension_numbers<[1], [0], [0], [1], [0, 0, 1, 1], [], []>} : vector<56x96xbf16>, vector<96x512xbf16>, vector<56x512xf32> -> vector<56x512xf32>
    %15 = arith.addf %10, %14 : vector<56x512xf32>
    %16 = vector.extract_strided_slice %1 {offsets = [6, 0], sizes = [56, 96], strides = [1, 1]} : vector<64x96xbf16> to vector<56x96xbf16>
    %c3 = arith.constant 3 : index
    %c0_11 = arith.constant 0 : index
    %c0_12 = arith.constant 0 : index
    %17 = vector.load %arg2[%c3, %c0_11, %c0_12] : memref<5x96x512xbf16, #tpu.memory_space<vmem>>, vector<1x96x512xbf16>
    %18 = vector.shape_cast %17 : vector<1x96x512xbf16> to vector<96x512xbf16>
    %cst_13 = arith.constant dense<0.000000e+00> : vector<56x512xf32>
    %19 = tpu.matmul %16, %18, %cst_13 {dimension_numbers = #tpu.dot_dimension_numbers<[1], [0], [0], [1], [0, 0, 1, 1], [], []>} : vector<56x96xbf16>, vector<96x512xbf16>, vector<56x512xf32> -> vector<56x512xf32>
    %20 = arith.addf %15, %19 : vector<56x512xf32>
    %21 = vector.extract_strided_slice %1 {offsets = [8, 0], sizes = [56, 96], strides = [1, 1]} : vector<64x96xbf16> to vector<56x96xbf16>
    %c4 = arith.constant 4 : index
    %c0_14 = arith.constant 0 : index
    %c0_15 = arith.constant 0 : index
    %22 = vector.load %arg2[%c4, %c0_14, %c0_15] : memref<5x96x512xbf16, #tpu.memory_space<vmem>>, vector<1x96x512xbf16>
    %23 = vector.shape_cast %22 : vector<1x96x512xbf16> to vector<96x512xbf16>
    %cst_16 = arith.constant dense<0.000000e+00> : vector<56x512xf32>
    %24 = tpu.matmul %21, %23, %cst_16 {dimension_numbers = #tpu.dot_dimension_numbers<[1], [0], [0], [1], [0, 0, 1, 1], [], []>} : vector<56x96xbf16>, vector<96x512xbf16>, vector<56x512xf32> -> vector<56x512xf32>
    %25 = arith.addf %20, %24 : vector<56x512xf32>
    %c0_17 = arith.constant 0 : index
    %c0_18 = arith.constant 0 : index
    %26 = vector.load %arg3[%c0_17, %c0_18] : memref<1x512xf32, #tpu.memory_space<vmem>>, vector<1x512xf32>
    %27 = vector.broadcast %26 : vector<1x512xf32> to vector<56x512xf32>
    %28 = arith.addf %25, %27 : vector<56x512xf32>
    %cst_19 = arith.constant 0.000000e+00 : f32
    %29 = vector.broadcast %cst_19 : f32 to vector<56x512xf32>
    %30 = arith.maximumf %28, %29 : vector<56x512xf32>
    %31 = vector.extract_strided_slice %30 {offsets = [0, 0], sizes = [56, 256], strides = [1, 1]} : vector<56x512xf32> to vector<56x256xf32>
    %32 = vector.extract_strided_slice %30 {offsets = [0, 256], sizes = [56, 256], strides = [1, 1]} : vector<56x512xf32> to vector<56x256xf32>
    %33 = arith.maximumf %31, %32 : vector<56x256xf32>
    %34 = vector.shape_cast %33 : vector<56x256xf32> to vector<14x4x256xf32>
    %35 = vector.extract_strided_slice %34 {offsets = [0, 0, 0], sizes = [14, 2, 256], strides = [1, 1, 1]} : vector<14x4x256xf32> to vector<14x2x256xf32>
    %36 = vector.extract_strided_slice %34 {offsets = [0, 2, 0], sizes = [14, 2, 256], strides = [1, 1, 1]} : vector<14x4x256xf32> to vector<14x2x256xf32>
    %37 = arith.maximumf %35, %36 : vector<14x2x256xf32>
    %38 = vector.shape_cast %37 : vector<14x2x256xf32> to vector<28x256xf32>
    %39 = arith.truncf %38 : vector<28x256xf32> to vector<28x256xbf16>
    %40 = vector.extract_strided_slice %39 {offsets = [0, 0], sizes = [20, 256], strides = [1, 1]} : vector<28x256xbf16> to vector<20x256xbf16>
    %c0_20 = arith.constant 0 : index
    %c0_21 = arith.constant 0 : index
    %c0_22 = arith.constant 0 : index
    %41 = vector.load %arg4[%c0_20, %c0_21, %c0_22] : memref<5x256x512xbf16, #tpu.memory_space<vmem>>, vector<1x256x512xbf16>
    %42 = vector.shape_cast %41 : vector<1x256x512xbf16> to vector<256x512xbf16>
    %cst_23 = arith.constant dense<0.000000e+00> : vector<20x512xf32>
    %43 = tpu.matmul %40, %42, %cst_23 {dimension_numbers = #tpu.dot_dimension_numbers<[1], [0], [0], [1], [0, 0, 1, 1], [], []>} : vector<20x256xbf16>, vector<256x512xbf16>, vector<20x512xf32> -> vector<20x512xf32>
    %44 = vector.extract_strided_slice %39 {offsets = [2, 0], sizes = [20, 256], strides = [1, 1]} : vector<28x256xbf16> to vector<20x256xbf16>
    %c1_24 = arith.constant 1 : index
    %c0_25 = arith.constant 0 : index
    %c0_26 = arith.constant 0 : index
    %45 = vector.load %arg4[%c1_24, %c0_25, %c0_26] : memref<5x256x512xbf16, #tpu.memory_space<vmem>>, vector<1x256x512xbf16>
    %46 = vector.shape_cast %45 : vector<1x256x512xbf16> to vector<256x512xbf16>
    %cst_27 = arith.constant dense<0.000000e+00> : vector<20x512xf32>
    %47 = tpu.matmul %44, %46, %cst_27 {dimension_numbers = #tpu.dot_dimension_numbers<[1], [0], [0], [1], [0, 0, 1, 1], [], []>} : vector<20x256xbf16>, vector<256x512xbf16>, vector<20x512xf32> -> vector<20x512xf32>
    %48 = arith.addf %43, %47 : vector<20x512xf32>
    %49 = vector.extract_strided_slice %39 {offsets = [4, 0], sizes = [20, 256], strides = [1, 1]} : vector<28x256xbf16> to vector<20x256xbf16>
    %c2_28 = arith.constant 2 : index
    %c0_29 = arith.constant 0 : index
    %c0_30 = arith.constant 0 : index
    %50 = vector.load %arg4[%c2_28, %c0_29, %c0_30] : memref<5x256x512xbf16, #tpu.memory_space<vmem>>, vector<1x256x512xbf16>
    %51 = vector.shape_cast %50 : vector<1x256x512xbf16> to vector<256x512xbf16>
    %cst_31 = arith.constant dense<0.000000e+00> : vector<20x512xf32>
    %52 = tpu.matmul %49, %51, %cst_31 {dimension_numbers = #tpu.dot_dimension_numbers<[1], [0], [0], [1], [0, 0, 1, 1], [], []>} : vector<20x256xbf16>, vector<256x512xbf16>, vector<20x512xf32> -> vector<20x512xf32>
    %53 = arith.addf %48, %52 : vector<20x512xf32>
    %54 = vector.extract_strided_slice %39 {offsets = [6, 0], sizes = [20, 256], strides = [1, 1]} : vector<28x256xbf16> to vector<20x256xbf16>
    %c3_32 = arith.constant 3 : index
    %c0_33 = arith.constant 0 : index
    %c0_34 = arith.constant 0 : index
    %55 = vector.load %arg4[%c3_32, %c0_33, %c0_34] : memref<5x256x512xbf16, #tpu.memory_space<vmem>>, vector<1x256x512xbf16>
    %56 = vector.shape_cast %55 : vector<1x256x512xbf16> to vector<256x512xbf16>
    %cst_35 = arith.constant dense<0.000000e+00> : vector<20x512xf32>
    %57 = tpu.matmul %54, %56, %cst_35 {dimension_numbers = #tpu.dot_dimension_numbers<[1], [0], [0], [1], [0, 0, 1, 1], [], []>} : vector<20x256xbf16>, vector<256x512xbf16>, vector<20x512xf32> -> vector<20x512xf32>
    %58 = arith.addf %53, %57 : vector<20x512xf32>
    %59 = vector.extract_strided_slice %39 {offsets = [8, 0], sizes = [20, 256], strides = [1, 1]} : vector<28x256xbf16> to vector<20x256xbf16>
    %c4_36 = arith.constant 4 : index
    %c0_37 = arith.constant 0 : index
    %c0_38 = arith.constant 0 : index
    %60 = vector.load %arg4[%c4_36, %c0_37, %c0_38] : memref<5x256x512xbf16, #tpu.memory_space<vmem>>, vector<1x256x512xbf16>
    %61 = vector.shape_cast %60 : vector<1x256x512xbf16> to vector<256x512xbf16>
    %cst_39 = arith.constant dense<0.000000e+00> : vector<20x512xf32>
    %62 = tpu.matmul %59, %61, %cst_39 {dimension_numbers = #tpu.dot_dimension_numbers<[1], [0], [0], [1], [0, 0, 1, 1], [], []>} : vector<20x256xbf16>, vector<256x512xbf16>, vector<20x512xf32> -> vector<20x512xf32>
    %63 = arith.addf %58, %62 : vector<20x512xf32>
    %c0_40 = arith.constant 0 : index
    %c0_41 = arith.constant 0 : index
    %64 = vector.load %arg5[%c0_40, %c0_41] : memref<1x512xf32, #tpu.memory_space<vmem>>, vector<1x512xf32>
    %65 = vector.broadcast %64 : vector<1x512xf32> to vector<20x512xf32>
    %66 = arith.addf %63, %65 : vector<20x512xf32>
    %cst_42 = arith.constant 0.000000e+00 : f32
    %67 = vector.broadcast %cst_42 : f32 to vector<20x512xf32>
    %68 = arith.maximumf %66, %67 : vector<20x512xf32>
    %69 = vector.extract_strided_slice %68 {offsets = [0, 0], sizes = [20, 256], strides = [1, 1]} : vector<20x512xf32> to vector<20x256xf32>
    %70 = vector.extract_strided_slice %68 {offsets = [0, 256], sizes = [20, 256], strides = [1, 1]} : vector<20x512xf32> to vector<20x256xf32>
    %71 = arith.maximumf %69, %70 : vector<20x256xf32>
    %72 = vector.extract_strided_slice %71 {offsets = [0, 0], sizes = [2, 256], strides = [1, 1]} : vector<20x256xf32> to vector<2x256xf32>
    %73 = vector.extract_strided_slice %71 {offsets = [2, 0], sizes = [2, 256], strides = [1, 1]} : vector<20x256xf32> to vector<2x256xf32>
    %74 = arith.maximumf %72, %73 : vector<2x256xf32>
    %75 = arith.truncf %74 : vector<2x256xf32> to vector<2x256xbf16>
    %c0_43 = arith.constant 0 : index
    %c0_44 = arith.constant 0 : index
    %c0_45 = arith.constant 0 : index
    %76 = vector.load %arg6[%c0_43, %c0_44, %c0_45] : memref<5x256x120xbf16, #tpu.memory_space<vmem>>, vector<1x256x120xbf16>
    %77 = vector.shape_cast %76 : vector<1x256x120xbf16> to vector<256x120xbf16>
    %cst_46 = arith.constant dense<0.000000e+00> : vector<2x120xf32>
    %78 = tpu.matmul %75, %77, %cst_46 {dimension_numbers = #tpu.dot_dimension_numbers<[1], [0], [0], [1], [0, 0, 1, 1], [], []>} : vector<2x256xbf16>, vector<256x120xbf16>, vector<2x120xf32> -> vector<2x120xf32>
    %79 = vector.extract_strided_slice %71 {offsets = [4, 0], sizes = [2, 256], strides = [1, 1]} : vector<20x256xf32> to vector<2x256xf32>
    %80 = vector.extract_strided_slice %71 {offsets = [6, 0], sizes = [2, 256], strides = [1, 1]} : vector<20x256xf32> to vector<2x256xf32>
    %81 = arith.maximumf %79, %80 : vector<2x256xf32>
    %82 = arith.truncf %81 : vector<2x256xf32> to vector<2x256xbf16>
    %c1_47 = arith.constant 1 : index
    %c0_48 = arith.constant 0 : index
    %c0_49 = arith.constant 0 : index
    %83 = vector.load %arg6[%c1_47, %c0_48, %c0_49] : memref<5x256x120xbf16, #tpu.memory_space<vmem>>, vector<1x256x120xbf16>
    %84 = vector.shape_cast %83 : vector<1x256x120xbf16> to vector<256x120xbf16>
    %cst_50 = arith.constant dense<0.000000e+00> : vector<2x120xf32>
    %85 = tpu.matmul %82, %84, %cst_50 {dimension_numbers = #tpu.dot_dimension_numbers<[1], [0], [0], [1], [0, 0, 1, 1], [], []>} : vector<2x256xbf16>, vector<256x120xbf16>, vector<2x120xf32> -> vector<2x120xf32>
    %86 = arith.addf %78, %85 : vector<2x120xf32>
    %87 = vector.extract_strided_slice %71 {offsets = [8, 0], sizes = [2, 256], strides = [1, 1]} : vector<20x256xf32> to vector<2x256xf32>
    %88 = vector.extract_strided_slice %71 {offsets = [10, 0], sizes = [2, 256], strides = [1, 1]} : vector<20x256xf32> to vector<2x256xf32>
    %89 = arith.maximumf %87, %88 : vector<2x256xf32>
    %90 = arith.truncf %89 : vector<2x256xf32> to vector<2x256xbf16>
    %c2_51 = arith.constant 2 : index
    %c0_52 = arith.constant 0 : index
    %c0_53 = arith.constant 0 : index
    %91 = vector.load %arg6[%c2_51, %c0_52, %c0_53] : memref<5x256x120xbf16, #tpu.memory_space<vmem>>, vector<1x256x120xbf16>
    %92 = vector.shape_cast %91 : vector<1x256x120xbf16> to vector<256x120xbf16>
    %cst_54 = arith.constant dense<0.000000e+00> : vector<2x120xf32>
    %93 = tpu.matmul %90, %92, %cst_54 {dimension_numbers = #tpu.dot_dimension_numbers<[1], [0], [0], [1], [0, 0, 1, 1], [], []>} : vector<2x256xbf16>, vector<256x120xbf16>, vector<2x120xf32> -> vector<2x120xf32>
    %94 = arith.addf %86, %93 : vector<2x120xf32>
    %95 = vector.extract_strided_slice %71 {offsets = [12, 0], sizes = [2, 256], strides = [1, 1]} : vector<20x256xf32> to vector<2x256xf32>
    %96 = vector.extract_strided_slice %71 {offsets = [14, 0], sizes = [2, 256], strides = [1, 1]} : vector<20x256xf32> to vector<2x256xf32>
    %97 = arith.maximumf %95, %96 : vector<2x256xf32>
    %98 = arith.truncf %97 : vector<2x256xf32> to vector<2x256xbf16>
    %c3_55 = arith.constant 3 : index
    %c0_56 = arith.constant 0 : index
    %c0_57 = arith.constant 0 : index
    %99 = vector.load %arg6[%c3_55, %c0_56, %c0_57] : memref<5x256x120xbf16, #tpu.memory_space<vmem>>, vector<1x256x120xbf16>
    %100 = vector.shape_cast %99 : vector<1x256x120xbf16> to vector<256x120xbf16>
    %cst_58 = arith.constant dense<0.000000e+00> : vector<2x120xf32>
    %101 = tpu.matmul %98, %100, %cst_58 {dimension_numbers = #tpu.dot_dimension_numbers<[1], [0], [0], [1], [0, 0, 1, 1], [], []>} : vector<2x256xbf16>, vector<256x120xbf16>, vector<2x120xf32> -> vector<2x120xf32>
    %102 = arith.addf %94, %101 : vector<2x120xf32>
    %103 = vector.extract_strided_slice %71 {offsets = [16, 0], sizes = [2, 256], strides = [1, 1]} : vector<20x256xf32> to vector<2x256xf32>
    %104 = vector.extract_strided_slice %71 {offsets = [18, 0], sizes = [2, 256], strides = [1, 1]} : vector<20x256xf32> to vector<2x256xf32>
    %105 = arith.maximumf %103, %104 : vector<2x256xf32>
    %106 = arith.truncf %105 : vector<2x256xf32> to vector<2x256xbf16>
    %c4_59 = arith.constant 4 : index
    %c0_60 = arith.constant 0 : index
    %c0_61 = arith.constant 0 : index
    %107 = vector.load %arg6[%c4_59, %c0_60, %c0_61] : memref<5x256x120xbf16, #tpu.memory_space<vmem>>, vector<1x256x120xbf16>
    %108 = vector.shape_cast %107 : vector<1x256x120xbf16> to vector<256x120xbf16>
    %cst_62 = arith.constant dense<0.000000e+00> : vector<2x120xf32>
    %109 = tpu.matmul %106, %108, %cst_62 {dimension_numbers = #tpu.dot_dimension_numbers<[1], [0], [0], [1], [0, 0, 1, 1], [], []>} : vector<2x256xbf16>, vector<256x120xbf16>, vector<2x120xf32> -> vector<2x120xf32>
    %110 = arith.addf %102, %109 : vector<2x120xf32>
    %c0_63 = arith.constant 0 : index
    %c0_64 = arith.constant 0 : index
    %111 = vector.load %arg7[%c0_63, %c0_64] : memref<1x120xf32, #tpu.memory_space<vmem>>, vector<1x120xf32>
    %112 = vector.broadcast %111 : vector<1x120xf32> to vector<2x120xf32>
    %113 = arith.addf %110, %112 : vector<2x120xf32>
    %cst_65 = arith.constant 0.000000e+00 : f32
    %114 = vector.broadcast %cst_65 : f32 to vector<2x120xf32>
    %115 = arith.maximumf %113, %114 : vector<2x120xf32>
    %116 = arith.truncf %115 : vector<2x120xf32> to vector<2x120xbf16>
    %c0_66 = arith.constant 0 : index
    %c0_67 = arith.constant 0 : index
    %117 = vector.load %arg8[%c0_66, %c0_67] : memref<120x84xbf16, #tpu.memory_space<vmem>>, vector<120x84xbf16>
    %cst_68 = arith.constant dense<0.000000e+00> : vector<2x84xf32>
    %118 = tpu.matmul %116, %117, %cst_68 {dimension_numbers = #tpu.dot_dimension_numbers<[1], [0], [0], [1], [0, 0, 1, 1], [], []>} : vector<2x120xbf16>, vector<120x84xbf16>, vector<2x84xf32> -> vector<2x84xf32>
    %c0_69 = arith.constant 0 : index
    %c0_70 = arith.constant 0 : index
    %119 = vector.load %arg9[%c0_69, %c0_70] : memref<1x84xf32, #tpu.memory_space<vmem>>, vector<1x84xf32>
    %120 = vector.broadcast %119 : vector<1x84xf32> to vector<2x84xf32>
    %121 = arith.addf %118, %120 : vector<2x84xf32>
    %cst_71 = arith.constant 0.000000e+00 : f32
    %122 = vector.broadcast %cst_71 : f32 to vector<2x84xf32>
    %123 = arith.maximumf %121, %122 : vector<2x84xf32>
    %124 = arith.truncf %123 : vector<2x84xf32> to vector<2x84xbf16>
    %c0_72 = arith.constant 0 : index
    %c0_73 = arith.constant 0 : index
    %125 = vector.load %arg10[%c0_72, %c0_73] : memref<84x128xbf16, #tpu.memory_space<vmem>>, vector<84x128xbf16>
    %cst_74 = arith.constant dense<0.000000e+00> : vector<2x128xf32>
    %126 = tpu.matmul %124, %125, %cst_74 {dimension_numbers = #tpu.dot_dimension_numbers<[1], [0], [0], [1], [0, 0, 1, 1], [], []>} : vector<2x84xbf16>, vector<84x128xbf16>, vector<2x128xf32> -> vector<2x128xf32>
    %c0_75 = arith.constant 0 : index
    %c0_76 = arith.constant 0 : index
    %127 = vector.load %arg11[%c0_75, %c0_76] : memref<1x128xf32, #tpu.memory_space<vmem>>, vector<1x128xf32>
    %128 = vector.broadcast %127 : vector<1x128xf32> to vector<2x128xf32>
    %129 = arith.addf %126, %128 : vector<2x128xf32>
    %c0_77 = arith.constant 0 : index
    %c0_78 = arith.constant 0 : index
    %130 = vector.load %arg12[%c0_77, %c0_78] : memref<2x128xf32, #tpu.memory_space<vmem>>, vector<2x128xf32>
    tpu.vector_store %arg12[%c0_77, %c0_78], %129 {strides = array<i32>} : memref<2x128xf32, #tpu.memory_space<vmem>>, vector<2x128xf32>,
    return
  }
  func.func @transform_0(%arg0: i32) -> (i32, i32, i32) {
    %c0_i32 = arith.constant 0 : i32
    %c0_i32_0 = arith.constant 0 : i32
    %c0_i32_1 = arith.constant 0 : i32
    return %arg0, %c0_i32, %c0_i32_0 : i32, i32, i32
  }
  func.func @transform_1(%arg0: i32) -> (i32, i32, i32) {
    %c0_i32 = arith.constant 0 : i32
    %c0_i32_0 = arith.constant 0 : i32
    %c0_i32_1 = arith.constant 0 : i32
    %c0_i32_2 = arith.constant 0 : i32
    return %c0_i32, %c0_i32_0, %c0_i32_1 : i32, i32, i32
  }
  func.func @transform_2(%arg0: i32) -> (i32, i32) {
    %c0_i32 = arith.constant 0 : i32
    %c0_i32_0 = arith.constant 0 : i32
    %c0_i32_1 = arith.constant 0 : i32
    return %c0_i32, %c0_i32_0 : i32, i32
  }
  func.func @transform_3(%arg0: i32) -> (i32, i32, i32) {
    %c0_i32 = arith.constant 0 : i32
    %c0_i32_0 = arith.constant 0 : i32
    %c0_i32_1 = arith.constant 0 : i32
    %c0_i32_2 = arith.constant 0 : i32
    return %c0_i32, %c0_i32_0, %c0_i32_1 : i32, i32, i32
  }
  func.func @transform_4(%arg0: i32) -> (i32, i32) {
    %c0_i32 = arith.constant 0 : i32
    %c0_i32_0 = arith.constant 0 : i32
    %c0_i32_1 = arith.constant 0 : i32
    return %c0_i32, %c0_i32_0 : i32, i32
  }
  func.func @transform_5(%arg0: i32) -> (i32, i32, i32) {
    %c0_i32 = arith.constant 0 : i32
    %c0_i32_0 = arith.constant 0 : i32
    %c0_i32_1 = arith.constant 0 : i32
    %c0_i32_2 = arith.constant 0 : i32
    return %c0_i32, %c0_i32_0, %c0_i32_1 : i32, i32, i32
  }
  func.func @transform_6(%arg0: i32) -> (i32, i32) {
    %c0_i32 = arith.constant 0 : i32
    %c0_i32_0 = arith.constant 0 : i32
    %c0_i32_1 = arith.constant 0 : i32
    return %c0_i32, %c0_i32_0 : i32, i32
  }
  func.func @transform_7(%arg0: i32) -> (i32, i32) {
    %c0_i32 = arith.constant 0 : i32
    %c0_i32_0 = arith.constant 0 : i32
    %c0_i32_1 = arith.constant 0 : i32
    return %c0_i32, %c0_i32_0 : i32, i32
  }
  func.func @transform_8(%arg0: i32) -> (i32, i32) {
    %c0_i32 = arith.constant 0 : i32
    %c0_i32_0 = arith.constant 0 : i32
    %c0_i32_1 = arith.constant 0 : i32
    return %c0_i32, %c0_i32_0 : i32, i32
  }
  func.func @transform_9(%arg0: i32) -> (i32, i32) {
    %c0_i32 = arith.constant 0 : i32
    %c0_i32_0 = arith.constant 0 : i32
    %c0_i32_1 = arith.constant 0 : i32
    return %c0_i32, %c0_i32_0 : i32, i32
  }
  func.func @transform_10(%arg0: i32) -> (i32, i32) {
    %c0_i32 = arith.constant 0 : i32
    %c0_i32_0 = arith.constant 0 : i32
    %c0_i32_1 = arith.constant 0 : i32
    return %c0_i32, %c0_i32_0 : i32, i32
  }
  func.func @transform_11(%arg0: i32) -> (i32, i32) {
    %c0_i32 = arith.constant 0 : i32
    %c0_i32_0 = arith.constant 0 : i32
    return %arg0, %c0_i32 : i32, i32
  }
}

</mosaic_0001>

<llo_original>
// kernel: lenet_forward.1
$region0: #{lenet_forward.1}
  #allocation0 [shape = 'u32[]', space=smem, size = 0x4, offset = 0x4, fixed_abs, tag = 'smem constant byte address 0x4 - core index']
  #allocation1 [shape = 'u32[144,128]{1,0:T(1,128)}', space=vmem, size = 0x12000, scoped, tag = 'internal scratch']
  %s0 = inlined_call_operand.vmem [shape: bf16[1,64,96], index: 0, kind: input, shape index: {}]
  %s1 = inlined_call_operand.vmem [shape: bf16[5,96,512], index: 1, kind: input, shape index: {}]
  %s2 = inlined_call_operand.hbm [shape: f32[1,512], index: 2, kind: input, shape index: {}]
  %s3 = inlined_call_operand.hbm [shape: bf16[5,256,512], index: 3, kind: input, shape index: {}]
  %s4 = inlined_call_operand.hbm [shape: f32[1,512], index: 4, kind: input, shape index: {}]
  %s5 = inlined_call_operand.vmem [shape: bf16[5,256,120], index: 5, kind: input, shape index: {}]
  %s6 = inlined_call_operand.hbm [shape: f32[1,120], index: 6, kind: input, shape index: {}]
  %s7 = inlined_call_operand.vmem [shape: bf16[120,84], index: 7, kind: input, shape index: {}]
  %s8 = inlined_call_operand.hbm [shape: f32[1,84], index: 8, kind: input, shape index: {}]
  %s9 = inlined_call_operand.hbm [shape: bf16[84,128], index: 9, kind: input, shape index: {}]
  %s10 = inlined_call_operand.hbm [shape: f32[1,128], index: 10, kind: input, shape index: {}]
  %s11 = inlined_call_operand.hbm [shape: f32[2,128], index: 11, kind: output, shape index: {}]
  %s12 = sld [smem:[#allocation0]]
  $region82: #{lenet_forward.1} parent=0
    _
  %s14 = ssub.s32 1, %s12
  %s15 = scalar_select 0, %s14, %s12
  $region1: #{lenet_forward.1} parent=0
    #allocation2 [shape = 'u8[2048]{0}', space=vmem, size = 0x800, scoped, tag = 'input window, operand 2, single buffered']
    #allocation3 [shape = 's32[1]{0}', space=sflag, size = 0x4, scoped, tag = 'scoped memory for lenet_forward.1']
    #allocation4 [shape = 's32[1]{0}', space=sflag, size = 0x4, scoped, tag = 'scoped memory for lenet_forward.1']
    #allocation5 [shape = 'u8[1310720]{0}', space=vmem, size = 0x140000, scoped, tag = 'input window, operand 3, single buffered']
    #allocation6 [shape = 's32[1]{0}', space=sflag, size = 0x4, scoped, tag = 'scoped memory for lenet_forward.1']
    #allocation7 [shape = 'u8[2048]{0}', space=vmem, size = 0x800, scoped, tag = 'input window, operand 4, single buffered']
    #allocation8 [shape = 'u8[512]{0}', space=vmem, size = 0x400, scoped, tag = 'input window, operand 6, single buffered']
    #allocation9 [shape = 's32[1]{0}', space=sflag, size = 0x4, scoped, tag = 'scoped memory for lenet_forward.1']
    #allocation10 [shape = 'u8[512]{0}', space=vmem, size = 0x400, scoped, tag = 'input window, operand 8, single buffered']
    #allocation11 [shape = 'u8[22528]{0}', space=vmem, size = 0x5800, scoped, tag = 'input window, operand 9, single buffered']
    #allocation12 [shape = 's32[1]{0}', space=sflag, size = 0x4, scoped, tag = 'scoped memory for lenet_forward.1']
    #allocation13 [shape = 'u8[512]{0}', space=vmem, size = 0x400, scoped, tag = 'input window, operand 10, single buffered']
    #allocation14 [shape = 'u8[1024]{0}', space=vmem, size = 0x400, scoped, tag = 'output window, operand 0, single buffered']
    %16 = vsyncpa [#allocation3], 0
    %17 = vsyncpa [#allocation6], 0
    %18 = vsyncpa [#allocation9], 0
    %19 = vsyncpa [#allocation12], 0
    %20 = vsyncpa [#allocation4], 0
    // Predicated region
    $region2: #{lenet_forward.1} parent=1 // pred_check
      _
    $region3: #{lenet_forward.1} parent=1 // pred_check_branch
      %22 = sbr.rel (0) target = $region5
    $region4: #{lenet_forward.1} parent=1 // pred_region
      _
    $region5: #{lenet_forward.1} parent=1 // pred_fallthru
      _
    // Predicated region
    $region6: #{lenet_forward.1} parent=1 // pred_check
      _
    $region7: #{lenet_forward.1} parent=1 // pred_check_branch
      %24 = sbr.rel (0) target = $region9
    $region8: #{lenet_forward.1} parent=1 // pred_region
      _
    $region9: #{lenet_forward.1} parent=1 // pred_fallthru
      _
    // Predicated region
    $region10: #{lenet_forward.1} parent=1 // pred_check
      _
    $region11: #{lenet_forward.1} parent=1 // pred_check_branch
      %26 = sbr.rel (0) target = $region13
    $region12: #{lenet_forward.1} parent=1 // pred_region
      %s28 = ssub.s32 64, 64
      %29 = vsyncadd [#allocation3], %s28
      %s31 = sshll.u32 [#allocation2], 4
      %s32 = int_to_ptr.vmem [resolvable:$true] %s31
      %34 = dma.hbm_to_vmem [thread:$0]  %s2, 64, %s32, [#allocation3]
    $region13: #{lenet_forward.1} parent=1 // pred_fallthru
      _
    // Predicated region
    $region14: #{lenet_forward.1} parent=1 // pred_check
      _
    $region15: #{lenet_forward.1} parent=1 // pred_check_branch
      %36 = sbr.rel (0) target = $region17
    $region16: #{lenet_forward.1} parent=1 // pred_region
      %s38 = ssub.s32 40960, 40960
      %39 = vsyncadd [#allocation6], %s38
      %s40 = sshll.u32 [#allocation5], 4
      %s41 = int_to_ptr.vmem [resolvable:$true] %s40
      %46 = dma.hbm_to_vmem [thread:$0]  %s3, 40960, %s41, [#allocation6], 256, 256, 16
    $region17: #{lenet_forward.1} parent=1 // pred_fallthru
      _
    // Predicated region
    $region18: #{lenet_forward.1} parent=1 // pred_check
      _
    $region19: #{lenet_forward.1} parent=1 // pred_check_branch
      %48 = sbr.rel (0) target = $region21
    $region20: #{lenet_forward.1} parent=1 // pred_region
      %s50 = ssub.s32 64, 64
      %51 = vsyncadd [#allocation6], %s50
      %s53 = sshll.u32 [#allocation7], 4
      %s54 = int_to_ptr.vmem [resolvable:$true] %s53
      %56 = dma.hbm_to_vmem [thread:$0]  %s4, 64, %s54, [#allocation6]
    $region21: #{lenet_forward.1} parent=1 // pred_fallthru
      _
    // Predicated region
    $region22: #{lenet_forward.1} parent=1 // pred_check
      _
    $region23: #{lenet_forward.1} parent=1 // pred_check_branch
      %58 = sbr.rel (0) target = $region25
    $region24: #{lenet_forward.1} parent=1 // pred_region
      _
    $region25: #{lenet_forward.1} parent=1 // pred_fallthru
      _
    // Predicated region
    $region26: #{lenet_forward.1} parent=1 // pred_check
      _
    $region27: #{lenet_forward.1} parent=1 // pred_check_branch
      %60 = sbr.rel (0) target = $region29
    $region28: #{lenet_forward.1} parent=1 // pred_region
      %s62 = ssub.s32 16, 16
      %63 = vsyncadd [#allocation9], %s62
      %s65 = sshll.u32 [#allocation8], 4
      %s66 = int_to_ptr.vmem [resolvable:$true] %s65
      %68 = dma.hbm_to_vmem [thread:$0]  %s6, 16, %s66, [#allocation9]
    $region29: #{lenet_forward.1} parent=1 // pred_fallthru
      _
    // Predicated region
    $region30: #{lenet_forward.1} parent=1 // pred_check
      _
    $region31: #{lenet_forward.1} parent=1 // pred_check_branch
      %70 = sbr.rel (0) target = $region33
    $region32: #{lenet_forward.1} parent=1 // pred_region
      _
    $region33: #{lenet_forward.1} parent=1 // pred_fallthru
      _
    // Predicated region
    $region34: #{lenet_forward.1} parent=1 // pred_check
      _
    $region35: #{lenet_forward.1} parent=1 // pred_check_branch
      %72 = sbr.rel (0) target = $region37
    $region36: #{lenet_forward.1} parent=1 // pred_region
      %s74 = ssub.s32 16, 16
      %75 = vsyncadd [#allocation9], %s74
      %s77 = sshll.u32 [#allocation10], 4
      %s78 = int_to_ptr.vmem [resolvable:$true] %s77
      %80 = dma.hbm_to_vmem [thread:$0]  %s8, 16, %s78, [#allocation9]
    $region37: #{lenet_forward.1} parent=1 // pred_fallthru
      _
    // Predicated region
    $region38: #{lenet_forward.1} parent=1 // pred_check
      _
    $region39: #{lenet_forward.1} parent=1 // pred_check_branch
      %82 = sbr.rel (0) target = $region41
    $region40: #{lenet_forward.1} parent=1 // pred_region
      %s84 = ssub.s32 704, 704
      %85 = vsyncadd [#allocation12], %s84
      %s86 = sshll.u32 [#allocation11], 4
      %s87 = int_to_ptr.vmem [resolvable:$true] %s86
      %92 = dma.hbm_to_vmem [thread:$0]  %s9, 704, %s87, [#allocation12], 64, 64, 4
    $region41: #{lenet_forward.1} parent=1 // pred_fallthru
      _
    // Predicated region
    $region42: #{lenet_forward.1} parent=1 // pred_check
      _
    $region43: #{lenet_forward.1} parent=1 // pred_check_branch
      %94 = sbr.rel (0) target = $region45
    $region44: #{lenet_forward.1} parent=1 // pred_region
      %s96 = ssub.s32 16, 16
      %97 = vsyncadd [#allocation12], %s96
      %s99 = sshll.u32 [#allocation13], 4
      %s100 = int_to_ptr.vmem [resolvable:$true] %s99
      %102 = dma.hbm_to_vmem [thread:$0]  %s10, 16, %s100, [#allocation12]
    $region45: #{lenet_forward.1} parent=1 // pred_fallthru
      _
    // Predicated region
    $region46: #{lenet_forward.1} parent=1 // pred_check
      _
    $region47: #{lenet_forward.1} parent=1 // pred_check_branch
      %104 = sbr.rel (0) target = $region49
    $region48: #{lenet_forward.1} parent=1 // pred_region
      %105 = dma.done [#allocation3], 64
    $region49: #{lenet_forward.1} parent=1 // pred_fallthru
      _
    // Predicated region
    $region50: #{lenet_forward.1} parent=1 // pred_check
      _
    $region51: #{lenet_forward.1} parent=1 // pred_check_branch
      %107 = sbr.rel (0) target = $region53
    $region52: #{lenet_forward.1} parent=1 // pred_region
      %108 = dma.done [#allocation6], 40960
    $region53: #{lenet_forward.1} parent=1 // pred_fallthru
      _
    // Predicated region
    $region54: #{lenet_forward.1} parent=1 // pred_check
      _
    $region55: #{lenet_forward.1} parent=1 // pred_check_branch
      %110 = sbr.rel (0) target = $region57
    $region56: #{lenet_forward.1} parent=1 // pred_region
      %111 = dma.done [#allocation6], 64
    $region57: #{lenet_forward.1} parent=1 // pred_fallthru
      _
    // Predicated region
    $region58: #{lenet_forward.1} parent=1 // pred_check
      _
    $region59: #{lenet_forward.1} parent=1 // pred_check_branch
      %113 = sbr.rel (0) target = $region61
    $region60: #{lenet_forward.1} parent=1 // pred_region
      %114 = dma.done [#allocation9], 16
    $region61: #{lenet_forward.1} parent=1 // pred_fallthru
      _
    // Predicated region
    $region62: #{lenet_forward.1} parent=1 // pred_check
      _
    $region63: #{lenet_forward.1} parent=1 // pred_check_branch
      %116 = sbr.rel (0) target = $region65
    $region64: #{lenet_forward.1} parent=1 // pred_region
      %117 = dma.done [#allocation9], 16
    $region65: #{lenet_forward.1} parent=1 // pred_fallthru
      _
    // Predicated region
    $region66: #{lenet_forward.1} parent=1 // pred_check
      _
    $region67: #{lenet_forward.1} parent=1 // pred_check_branch
      %119 = sbr.rel (0) target = $region69
    $region68: #{lenet_forward.1} parent=1 // pred_region
      %120 = dma.done [#allocation12], 704
    $region69: #{lenet_forward.1} parent=1 // pred_fallthru
      _
    // Predicated region
    $region70: #{lenet_forward.1} parent=1 // pred_check
      _
    $region71: #{lenet_forward.1} parent=1 // pred_check_branch
      %122 = sbr.rel (0) target = $region73
    $region72: #{lenet_forward.1} parent=1 // pred_region
      %123 = dma.done [#allocation12], 16
    $region73: #{lenet_forward.1} parent=1 // pred_fallthru
      _
    %v125 = vld [vmem:[%s0] sm:$0xf]
    %v126 = vld [vmem:[%s0 + $0x4] sm:$0xf]
    %v127 = vld [vmem:[%s0 + $0x8] sm:$0xf]
    %v128 = vld [vmem:[%s0 + $0xc] sm:$0xf]
    %v129 = vld [vmem:[%s0 + $0x10] sm:$0xf]
    %v130 = vld [vmem:[%s0 + $0x14] sm:$0xf]
    %v131 = vld [vmem:[%s0 + $0x18] sm:$0xf]
    %v132 = vld [vmem:[%s0 + $0x1c] sm:$0xf]
    %v133 = vld [vmem:[%s1] sm:$0xff]
    %v134 = vld [vmem:[%s1 + $0x8] sm:$0xff]
    %v135 = vld [vmem:[%s1 + $0x10] sm:$0xff]
    %v136 = vld [vmem:[%s1 + $0x18] sm:$0xff]
    %v137 = vld [vmem:[%s1 + $0x20] sm:$0xff]
    %v138 = vld [vmem:[%s1 + $0x28] sm:$0xff]
    %v139 = vld [vmem:[%s1 + $0x30] sm:$0xff]
    %v140 = vld [vmem:[%s1 + $0x38] sm:$0xff]
    %v141 = vld [vmem:[%s1 + $0x40] sm:$0xff]
    %v142 = vld [vmem:[%s1 + $0x48] sm:$0xff]
    %v143 = vld [vmem:[%s1 + $0x50] sm:$0xff]
    %v144 = vld [vmem:[%s1 + $0x58] sm:$0xff]
    %v145 = vld [vmem:[%s1 + $0x60] sm:$0xff]
    %v146 = vld [vmem:[%s1 + $0x68] sm:$0xff]
    %v147 = vld [vmem:[%s1 + $0x70] sm:$0xff]
    %v148 = vld [vmem:[%s1 + $0x78] sm:$0xff]
    %v149 = vld [vmem:[%s1 + $0x80] sm:$0xff]
    %v150 = vld [vmem:[%s1 + $0x88] sm:$0xff]
    %v151 = vld [vmem:[%s1 + $0x90] sm:$0xff]
    %v152 = vld [vmem:[%s1 + $0x98] sm:$0xff]
    %v153 = vld [vmem:[%s1 + $0xa0] sm:$0xff]
    %v154 = vld [vmem:[%s1 + $0xa8] sm:$0xff]
    %v155 = vld [vmem:[%s1 + $0xb0] sm:$0xff]
    %v156 = vld [vmem:[%s1 + $0xb8] sm:$0xff]
    %s157 = scalar_lea.vmem %s1, 192
    %v158 = vld [vmem:[%s157] sm:$0xff]
    %v159 = vld [vmem:[%s157 + $0x8] sm:$0xff]
    %v160 = vld [vmem:[%s157 + $0x10] sm:$0xff]
    %v161 = vld [vmem:[%s157 + $0x18] sm:$0xff]
    %v162 = vld [vmem:[%s157 + $0x20] sm:$0xff]
    %v163 = vld [vmem:[%s157 + $0x28] sm:$0xff]
    %v164 = vld [vmem:[%s157 + $0x30] sm:$0xff]
    %v165 = vld [vmem:[%s157 + $0x38] sm:$0xff]
    %v166 = vld [vmem:[%s157 + $0x40] sm:$0xff]
    %v167 = vld [vmem:[%s157 + $0x48] sm:$0xff]
    %v168 = vld [vmem:[%s157 + $0x50] sm:$0xff]
    %v169 = vld [vmem:[%s157 + $0x58] sm:$0xff]
    %v170 = vld [vmem:[%s157 + $0x60] sm:$0xff]
    %v171 = vld [vmem:[%s157 + $0x68] sm:$0xff]
    %v172 = vld [vmem:[%s157 + $0x70] sm:$0xff]
    %v173 = vld [vmem:[%s157 + $0x78] sm:$0xff]
    %v174 = vld [vmem:[%s157 + $0x80] sm:$0xff]
    %v175 = vld [vmem:[%s157 + $0x88] sm:$0xff]
    %v176 = vld [vmem:[%s157 + $0x90] sm:$0xff]
    %v177 = vld [vmem:[%s157 + $0x98] sm:$0xff]
    %v178 = vld [vmem:[%s157 + $0xa0] sm:$0xff]
    %v179 = vld [vmem:[%s157 + $0xa8] sm:$0xff]
    %v180 = vld [vmem:[%s157 + $0xb0] sm:$0xff]
    %v181 = vld [vmem:[%s157 + $0xb8] sm:$0xff]
    %v190 = vunpack.c.l.b16 %v125
    %v191 = vunpack.c.l.b16 %v126
    %v192 = vunpack.c.l.b16 %v127
    %v193 = vunpack.c.l.b16 %v128
    %v194 = vunpack.c.l.b16 %v129
    %v195 = vunpack.c.l.b16 %v130
    %v196 = vunpack.c.l.b16 %v131
    %v197 = vunpack.c.l.b16 %v132
    %v198 = vpack.c.b16 %v191, %v190
    %v199 = vpack.c.b16 %v193, %v192
    %v200 = vpack.c.b16 %v195, %v194
    %v201 = vpack.c.b16 %v197, %v196
    %vm202 = vcmask 1046528
    %v203 = vrot.slane %v198, 1
    %v204 = vrot.slane %v199, 1
    %v205 = vsel %vm202, %v203, %v204
    %v206 = vrot.slane %v200, 1
    %v207 = vsel %vm202, %v204, %v206
    %v208 = vrot.slane %v201, 1
    %v209 = vsel %vm202, %v206, %v208
    %v234 = vunpack.c.l.b16 %v158
    %v235 = vunpack.c.h.b16 %v158
    %v236 = vunpack.c.l.b16 %v159
    %v237 = vunpack.c.h.b16 %v159
    %v238 = vunpack.c.l.b16 %v160
    %v239 = vunpack.c.h.b16 %v160
    %v240 = vunpack.c.l.b16 %v161
    %v241 = vunpack.c.h.b16 %v161
    %v242 = vunpack.c.l.b16 %v162
    %v243 = vunpack.c.h.b16 %v162
    %v244 = vunpack.c.l.b16 %v163
    %v245 = vunpack.c.h.b16 %v163
    %v246 = vunpack.c.l.b16 %v164
    %v247 = vunpack.c.h.b16 %v164
    %v248 = vunpack.c.l.b16 %v165
    %v249 = vunpack.c.h.b16 %v165
    %v250 = vunpack.c.l.b16 %v166
    %v251 = vunpack.c.h.b16 %v166
    %v252 = vunpack.c.l.b16 %v167
    %v253 = vunpack.c.h.b16 %v167
    %v254 = vunpack.c.l.b16 %v168
    %v255 = vunpack.c.h.b16 %v168
    %v256 = vunpack.c.l.b16 %v169
    %v257 = vunpack.c.h.b16 %v169
    %v258 = vunpack.c.l.b16 %v170
    %v259 = vunpack.c.h.b16 %v170
    %v260 = vunpack.c.l.b16 %v171
    %v261 = vunpack.c.h.b16 %v171
    %v262 = vunpack.c.l.b16 %v172
    %v263 = vunpack.c.h.b16 %v172
    %v264 = vunpack.c.l.b16 %v173
    %v265 = vunpack.c.h.b16 %v173
    %v266 = vunpack.c.l.b16 %v174
    %v267 = vunpack.c.h.b16 %v174
    %v268 = vunpack.c.l.b16 %v175
    %v269 = vunpack.c.h.b16 %v175
    %v270 = vunpack.c.l.b16 %v176
    %v271 = vunpack.c.h.b16 %v176
    %v272 = vunpack.c.l.b16 %v177
    %v273 = vunpack.c.h.b16 %v177
    %v274 = vunpack.c.l.b16 %v178
    %v275 = vunpack.c.h.b16 %v178
    %v276 = vunpack.c.l.b16 %v179
    %v277 = vunpack.c.h.b16 %v179
    %v278 = vunpack.c.l.b16 %v180
    %v279 = vunpack.c.h.b16 %v180
    %v280 = vunpack.c.l.b16 %v181
    %v281 = vunpack.c.h.b16 %v181
    %v282 = vpack.c.b16 %v238, %v234
    %v283 = vpack.c.b16 %v239, %v235
    %v284 = vpack.c.b16 %v240, %v236
    %v285 = vpack.c.b16 %v241, %v237
    %v286 = vpack.c.b16 %v246, %v242
    %v287 = vpack.c.b16 %v247, %v243
    %v288 = vpack.c.b16 %v248, %v244
    %v289 = vpack.c.b16 %v249, %v245
    %v290 = vpack.c.b16 %v254, %v250
    %v291 = vpack.c.b16 %v255, %v251
    %v292 = vpack.c.b16 %v256, %v252
    %v293 = vpack.c.b16 %v257, %v253
    %v294 = vpack.c.b16 %v262, %v258
    %v295 = vpack.c.b16 %v263, %v259
    %v296 = vpack.c.b16 %v264, %v260
    %v297 = vpack.c.b16 %v265, %v261
    %v298 = vpack.c.b16 %v270, %v266
    %v299 = vpack.c.b16 %v271, %v267
    %v300 = vpack.c.b16 %v272, %v268
    %v301 = vpack.c.b16 %v273, %v269
    %v302 = vpack.c.b16 %v278, %v274
    %v303 = vpack.c.b16 %v279, %v275
    %v304 = vpack.c.b16 %v280, %v276
    %v305 = vpack.c.b16 %v281, %v277
    %vm330 = vcmask 785408
    %v332 = vsel %vm330, %v205, 0
    %v335 = vsel %vm330, %v207, 0
    %v338 = vsel %vm330, %v209, 0
    %v341 = vsel %vm330, %v208, 0
    %343 = vmatprep.subr.bf16.mxu0 %v283
    %344 = vmatpush1.bf16.msra.mxu0 %v282
    %345 = vmatprep.subr.bf16.mxu0 %v287
    %346 = vmatpush1.bf16.msra.mxu0 %v286
    %347 = vmatprep.subr.bf16.mxu0 %v291
    %348 = vmatpush1.bf16.msra.mxu0 %v290
    %349 = vmatprep.subr.bf16.mxu0 %v295
    %350 = vmatpush1.bf16.msra.mxu0 %v294
    %351 = vmatprep.subr.bf16.mxu0 %v299
    %352 = vmatpush1.bf16.msra.mxu0 %v298
    %353 = vmatprep.subr.bf16.mxu0 %v303
    %354 = vmatpush1.bf16.msra.mxu0 %v302
    %355 = vmatprep.subr.bf16.mxu0 0
    %356 = vmatpush1.bf16.msra.mxu0 0
    %357 = vmatprep.subr.bf16.mxu0 0
    %358 = vmatpush1.bf16.msra.mxu0 0
    %359 = vmatprep.subr.bf16.mxu0 0
    %360 = vmatpush1.bf16.msra.mxu0 0
    %361 = vmatprep.subr.bf16.mxu0 0
    %362 = vmatpush1.bf16.msra.mxu0 0
    %363 = vmatprep.subr.bf16.mxu0 0
    %364 = vmatpush1.bf16.msra.mxu0 0
    %365 = vmatprep.subr.bf16.mxu0 0
    %366 = vmatpush1.bf16.msra.mxu0 0
    %367 = vmatprep.subr.bf16.mxu0 0
    %368 = vmatpush1.bf16.msra.mxu0 0
    %369 = vmatprep.subr.bf16.mxu0 0
    %370 = vmatpush1.bf16.msra.mxu0 0
    %371 = vmatprep.subr.bf16.mxu0 0
    %372 = vmatpush1.bf16.msra.mxu0 0
    %373 = vmatprep.subr.bf16.mxu0 0
    %374 = vmatpush1.bf16.msra.mxu0 0
    %375 = vmatprep.mubr.bf16.mxu0 0
    %376 = vmatmul.mubr.bf16.gmra.mrb[0].mxu0 %v332
    %v377 = vpop.f32.mrb[0].mxu0
    %v378 = vadd.f32 0.0, %v377
    %v379 = vpop.f32.mrb[0].mxu0
    %v380 = vadd.f32 0.0, %v379
    %v381 = vpop.f32.mrb[0].mxu0
    %v382 = vadd.f32 0.0, %v381
    %v383 = vpop.f32.mrb[0].mxu0
    %v384 = vadd.f32 0.0, %v383
    %385 = vmatprep.mubr.bf16.mxu0 0
    %386 = vmatmul.mubr.bf16.gmra.mrb[0].mxu0 %v335
    %v387 = vpop.f32.mrb[0].mxu0
    %v388 = vadd.f32 0.0, %v387
    %v389 = vpop.f32.mrb[0].mxu0
    %v390 = vadd.f32 0.0, %v389
    %v391 = vpop.f32.mrb[0].mxu0
    %v392 = vadd.f32 0.0, %v391
    %v393 = vpop.f32.mrb[0].mxu0
    %v394 = vadd.f32 0.0, %v393
    %395 = vmatprep.mubr.bf16.mxu0 0
    %396 = vmatmul.mubr.bf16.gmra.mrb[0].mxu0 %v338
    %v397 = vpop.f32.mrb[0].mxu0
    %v398 = vadd.f32 0.0, %v397
    %v399 = vpop.f32.mrb[0].mxu0
    %v400 = vadd.f32 0.0, %v399
    %v401 = vpop.f32.mrb[0].mxu0
    %v402 = vadd.f32 0.0, %v401
    %v403 = vpop.f32.mrb[0].mxu0
    %v404 = vadd.f32 0.0, %v403
    %405 = vmatprep.mubr.bf16.mxu0 0
    %406 = vmatmul.mubr.bf16.gmra.mrb[0].mxu0 %v341
    %v407 = vpop.f32.mrb[0].mxu0
    %v408 = vadd.f32 0.0, %v407
    %v409 = vpop.f32.mrb[0].mxu0
    %v410 = vadd.f32 0.0, %v409
    %v411 = vpop.f32.mrb[0].mxu0
    %v412 = vpop.f32.mrb[0].mxu0
    %413 = vdwg.mxu0
    %414 = vmatprep.subr.bf16.mxu0 %v285
    %415 = vmatpush1.bf16.msra.mxu0 %v284
    %416 = vmatprep.subr.bf16.mxu0 %v289
    %417 = vmatpush1.bf16.msra.mxu0 %v288
    %418 = vmatprep.subr.bf16.mxu0 %v293
    %419 = vmatpush1.bf16.msra.mxu0 %v292
    %420 = vmatprep.subr.bf16.mxu0 %v297
    %421 = vmatpush1.bf16.msra.mxu0 %v296
    %422 = vmatprep.subr.bf16.mxu0 %v301
    %423 = vmatpush1.bf16.msra.mxu0 %v300
    %424 = vmatprep.subr.bf16.mxu0 %v305
    %425 = vmatpush1.bf16.msra.mxu0 %v304
    %426 = vmatprep.subr.bf16.mxu0 0
    %427 = vmatpush1.bf16.msra.mxu0 0
    %428 = vmatprep.subr.bf16.mxu0 0
    %429 = vmatpush1.bf16.msra.mxu0 0
    %430 = vmatprep.subr.bf16.mxu0 0
    %431 = vmatpush1.bf16.msra.mxu0 0
    %432 = vmatprep.subr.bf16.mxu0 0
    %433 = vmatpush1.bf16.msra.mxu0 0
    %434 = vmatprep.subr.bf16.mxu0 0
    %435 = vmatpush1.bf16.msra.mxu0 0
    %436 = vmatprep.subr.bf16.mxu0 0
    %437 = vmatpush1.bf16.msra.mxu0 0
    %438 = vmatprep.subr.bf16.mxu0 0
    %439 = vmatpush1.bf16.msra.mxu0 0
    %440 = vmatprep.subr.bf16.mxu0 0
    %441 = vmatpush1.bf16.msra.mxu0 0
    %442 = vmatprep.subr.bf16.mxu0 0
    %443 = vmatpush1.bf16.msra.mxu0 0
    %444 = vmatprep.subr.bf16.mxu0 0
    %445 = vmatpush1.bf16.msra.mxu0 0
    %446 = vmatprep.mubr.bf16.mxu0 0
    %447 = vmatmul.mubr.bf16.gmra.mrb[0].mxu0 %v332
    %v448 = vpop.f32.mrb[0].mxu0
    %v449 = vadd.f32 0.0, %v448
    %v450 = vpop.f32.mrb[0].mxu0
    %v451 = vadd.f32 0.0, %v450
    %v452 = vpop.f32.mrb[0].mxu0
    %v453 = vadd.f32 0.0, %v452
    %v454 = vpop.f32.mrb[0].mxu0
    %v455 = vadd.f32 0.0, %v454
    %456 = vmatprep.mubr.bf16.mxu0 0
    %457 = vmatmul.mubr.bf16.gmra.mrb[0].mxu0 %v335
    %v458 = vpop.f32.mrb[0].mxu0
    %v459 = vadd.f32 0.0, %v458
    %v460 = vpop.f32.mrb[0].mxu0
    %v461 = vadd.f32 0.0, %v460
    %v462 = vpop.f32.mrb[0].mxu0
    %v463 = vadd.f32 0.0, %v462
    %v464 = vpop.f32.mrb[0].mxu0
    %v465 = vadd.f32 0.0, %v464
    %466 = vmatprep.mubr.bf16.mxu0 0
    %467 = vmatmul.mubr.bf16.gmra.mrb[0].mxu0 %v338
    %v468 = vpop.f32.mrb[0].mxu0
    %v469 = vadd.f32 0.0, %v468
    %v470 = vpop.f32.mrb[0].mxu0
    %v471 = vadd.f32 0.0, %v470
    %v472 = vpop.f32.mrb[0].mxu0
    %v473 = vadd.f32 0.0, %v472
    %v474 = vpop.f32.mrb[0].mxu0
    %v475 = vadd.f32 0.0, %v474
    %476 = vmatprep.mubr.bf16.mxu0 0
    %477 = vmatmul.mubr.bf16.gmra.mrb[0].mxu0 %v341
    %v478 = vpop.f32.mrb[0].mxu0
    %v479 = vadd.f32 0.0, %v478
    %v480 = vpop.f32.mrb[0].mxu0
    %v481 = vadd.f32 0.0, %v480
    %v482 = vpop.f32.mrb[0].mxu0
    %v483 = vpop.f32.mrb[0].mxu0
    %484 = vdwg.mxu0
    %v485 = vpack.c.b16 %v196, %v196
    %v510 = vunpack.c.l.b16 %v133
    %v511 = vunpack.c.h.b16 %v133
    %v512 = vunpack.c.l.b16 %v134
    %v513 = vunpack.c.h.b16 %v134
    %v514 = vunpack.c.l.b16 %v135
    %v515 = vunpack.c.h.b16 %v135
    %v516 = vunpack.c.l.b16 %v136
    %v517 = vunpack.c.h.b16 %v136
    %v518 = vunpack.c.l.b16 %v137
    %v519 = vunpack.c.h.b16 %v137
    %v520 = vunpack.c.l.b16 %v138
    %v521 = vunpack.c.h.b16 %v138
    %v522 = vunpack.c.l.b16 %v139
    %v523 = vunpack.c.h.b16 %v139
    %v524 = vunpack.c.l.b16 %v140
    %v525 = vunpack.c.h.b16 %v140
    %v526 = vunpack.c.l.b16 %v141
    %v527 = vunpack.c.h.b16 %v141
    %v528 = vunpack.c.l.b16 %v142
    %v529 = vunpack.c.h.b16 %v142
    %v530 = vunpack.c.l.b16 %v143
    %v531 = vunpack.c.h.b16 %v143
    %v532 = vunpack.c.l.b16 %v144
    %v533 = vunpack.c.h.b16 %v144
    %v534 = vunpack.c.l.b16 %v145
    %v535 = vunpack.c.h.b16 %v145
    %v536 = vunpack.c.l.b16 %v146
    %v537 = vunpack.c.h.b16 %v146
    %v538 = vunpack.c.l.b16 %v147
    %v539 = vunpack.c.h.b16 %v147
    %v540 = vunpack.c.l.b16 %v148
    %v541 = vunpack.c.h.b16 %v148
    %v542 = vunpack.c.l.b16 %v149
    %v543 = vunpack.c.h.b16 %v149
    %v544 = vunpack.c.l.b16 %v150
    %v545 = vunpack.c.h.b16 %v150
    %v546 = vunpack.c.l.b16 %v151
    %v547 = vunpack.c.h.b16 %v151
    %v548 = vunpack.c.l.b16 %v152
    %v549 = vunpack.c.h.b16 %v152
    %v550 = vunpack.c.l.b16 %v153
    %v551 = vunpack.c.h.b16 %v153
    %v552 = vunpack.c.l.b16 %v154
    %v553 = vunpack.c.h.b16 %v154
    %v554 = vunpack.c.l.b16 %v155
    %v555 = vunpack.c.h.b16 %v155
    %v556 = vunpack.c.l.b16 %v156
    %v557 = vunpack.c.h.b16 %v156
    %v558 = vpack.c.b16 %v514, %v510
    %v559 = vpack.c.b16 %v515, %v511
    %v560 = vpack.c.b16 %v516, %v512
    %v561 = vpack.c.b16 %v517, %v513
    %v562 = vpack.c.b16 %v522, %v518
    %v563 = vpack.c.b16 %v523, %v519
    %v564 = vpack.c.b16 %v524, %v520
    %v565 = vpack.c.b16 %v525, %v521
    %v566 = vpack.c.b16 %v530, %v526
    %v567 = vpack.c.b16 %v531, %v527
    %v568 = vpack.c.b16 %v532, %v528
    %v569 = vpack.c.b16 %v533, %v529
    %v570 = vpack.c.b16 %v538, %v534
    %v571 = vpack.c.b16 %v539, %v535
    %v572 = vpack.c.b16 %v540, %v536
    %v573 = vpack.c.b16 %v541, %v537
    %v574 = vpack.c.b16 %v546, %v542
    %v575 = vpack.c.b16 %v547, %v543
    %v576 = vpack.c.b16 %v548, %v544
    %v577 = vpack.c.b16 %v549, %v545
    %v578 = vpack.c.b16 %v554, %v550
    %v579 = vpack.c.b16 %v555, %v551
    %v580 = vpack.c.b16 %v556, %v552
    %v581 = vpack.c.b16 %v557, %v553
    %v607 = vsel %vm330, %v198, 0
    %v610 = vsel %vm330, %v199, 0
    %v613 = vsel %vm330, %v200, 0
    %v616 = vsel %vm330, %v485, 0
    %618 = vmatprep.subr.bf16.mxu0 %v559
    %619 = vmatpush1.bf16.msra.mxu0 %v558
    %620 = vmatprep.subr.bf16.mxu0 %v563
    %621 = vmatpush1.bf16.msra.mxu0 %v562
    %622 = vmatprep.subr.bf16.mxu0 %v567
    %623 = vmatpush1.bf16.msra.mxu0 %v566
    %624 = vmatprep.subr.bf16.mxu0 %v571
    %625 = vmatpush1.bf16.msra.mxu0 %v570
    %626 = vmatprep.subr.bf16.mxu0 %v575
    %627 = vmatpush1.bf16.msra.mxu0 %v574
    %628 = vmatprep.subr.bf16.mxu0 %v579
    %629 = vmatpush1.bf16.msra.mxu0 %v578
    %630 = vmatprep.subr.bf16.mxu0 0
    %631 = vmatpush1.bf16.msra.mxu0 0
    %632 = vmatprep.subr.bf16.mxu0 0
    %633 = vmatpush1.bf16.msra.mxu0 0
    %634 = vmatprep.subr.bf16.mxu0 0
    %635 = vmatpush1.bf16.msra.mxu0 0
    %636 = vmatprep.subr.bf16.mxu0 0
    %637 = vmatpush1.bf16.msra.mxu0 0
    %638 = vmatprep.subr.bf16.mxu0 0
    %639 = vmatpush1.bf16.msra.mxu0 0
    %640 = vmatprep.subr.bf16.mxu0 0
    %641 = vmatpush1.bf16.msra.mxu0 0
    %642 = vmatprep.subr.bf16.mxu0 0
    %643 = vmatpush1.bf16.msra.mxu0 0
    %644 = vmatprep.subr.bf16.mxu0 0
    %645 = vmatpush1.bf16.msra.mxu0 0
    %646 = vmatprep.subr.bf16.mxu0 0
    %647 = vmatpush1.bf16.msra.mxu0 0
    %648 = vmatprep.subr.bf16.mxu0 0
    %649 = vmatpush1.bf16.msra.mxu0 0
    %650 = vmatprep.mubr.bf16.mxu0 0
    %651 = vmatmul.mubr.bf16.gmra.mrb[0].mxu0 %v607
    %v652 = vpop.f32.mrb[0].mxu0
    %v653 = vadd.f32 %v378, %v652
    %v654 = vpop.f32.mrb[0].mxu0
    %v655 = vadd.f32 %v380, %v654
    %v656 = vpop.f32.mrb[0].mxu0
    %v657 = vadd.f32 %v382, %v656
    %v658 = vpop.f32.mrb[0].mxu0
    %v659 = vadd.f32 %v384, %v658
    %660 = vmatprep.mubr.bf16.mxu0 0
    %661 = vmatmul.mubr.bf16.gmra.mrb[0].mxu0 %v610
    %v662 = vpop.f32.mrb[0].mxu0
    %v663 = vadd.f32 %v388, %v662
    %v664 = vpop.f32.mrb[0].mxu0
    %v665 = vadd.f32 %v390, %v664
    %v666 = vpop.f32.mrb[0].mxu0
    %v667 = vadd.f32 %v392, %v666
    %v668 = vpop.f32.mrb[0].mxu0
    %v669 = vadd.f32 %v394, %v668
    %670 = vmatprep.mubr.bf16.mxu0 0
    %671 = vmatmul.mubr.bf16.gmra.mrb[0].mxu0 %v613
    %v672 = vpop.f32.mrb[0].mxu0
    %v673 = vadd.f32 %v398, %v672
    %v674 = vpop.f32.mrb[0].mxu0
    %v675 = vadd.f32 %v400, %v674
    %v676 = vpop.f32.mrb[0].mxu0
    %v677 = vadd.f32 %v402, %v676
    %v678 = vpop.f32.mrb[0].mxu0
    %v679 = vadd.f32 %v404, %v678
    %680 = vmatprep.mubr.bf16.mxu0 0
    %681 = vmatmul.mubr.bf16.gmra.mrb[0].mxu0 %v616
    %v682 = vpop.f32.mrb[0].mxu0
    %v683 = vadd.f32 %v408, %v682
    %v684 = vpop.f32.mrb[0].mxu0
    %v685 = vadd.f32 %v410, %v684
    %v686 = vpop.f32.mrb[0].mxu0
    %v687 = vpop.f32.mrb[0].mxu0
    %688 = vdwg.mxu0
    %689 = vmatprep.subr.bf16.mxu0 %v561
    %690 = vmatpush1.bf16.msra.mxu0 %v560
    %691 = vmatprep.subr.bf16.mxu0 %v565
    %692 = vmatpush1.bf16.msra.mxu0 %v564
    %693 = vmatprep.subr.bf16.mxu0 %v569
    %694 = vmatpush1.bf16.msra.mxu0 %v568
    %695 = vmatprep.subr.bf16.mxu0 %v573
    %696 = vmatpush1.bf16.msra.mxu0 %v572
    %697 = vmatprep.subr.bf16.mxu0 %v577
    %698 = vmatpush1.bf16.msra.mxu0 %v576
    %699 = vmatprep.subr.bf16.mxu0 %v581
    %700 = vmatpush1.bf16.msra.mxu0 %v580
    %701 = vmatprep.subr.bf16.mxu0 0
    %702 = vmatpush1.bf16.msra.mxu0 0
    %703 = vmatprep.subr.bf16.mxu0 0
    %704 = vmatpush1.bf16.msra.mxu0 0
    %705 = vmatprep.subr.bf16.mxu0 0
    %706 = vmatpush1.bf16.msra.mxu0 0
    %707 = vmatprep.subr.bf16.mxu0 0
    %708 = vmatpush1.bf16.msra.mxu0 0
    %709 = vmatprep.subr.bf16.mxu0 0
    %710 = vmatpush1.bf16.msra.mxu0 0
    %711 = vmatprep.subr.bf16.mxu0 0
    %712 = vmatpush1.bf16.msra.mxu0 0
    %713 = vmatprep.subr.bf16.mxu0 0
    %714 = vmatpush1.bf16.msra.mxu0 0
    %715 = vmatprep.subr.bf16.mxu0 0
    %716 = vmatpush1.bf16.msra.mxu0 0
    %717 = vmatprep.subr.bf16.mxu0 0
    %718 = vmatpush1.bf16.msra.mxu0 0
    %719 = vmatprep.subr.bf16.mxu0 0
    %720 = vmatpush1.bf16.msra.mxu0 0
    %721 = vmatprep.mubr.bf16.mxu0 0
    %722 = vmatmul.mubr.bf16.gmra.mrb[0].mxu0 %v607
    %v723 = vpop.f32.mrb[0].mxu0
    %v724 = vadd.f32 %v449, %v723
    %v725 = vpop.f32.mrb[0].mxu0
    %v726 = vadd.f32 %v451, %v725
    %v727 = vpop.f32.mrb[0].mxu0
    %v728 = vadd.f32 %v453, %v727
    %v729 = vpop.f32.mrb[0].mxu0
    %v730 = vadd.f32 %v455, %v729
    %731 = vmatprep.mubr.bf16.mxu0 0
    %732 = vmatmul.mubr.bf16.gmra.mrb[0].mxu0 %v610
    %v733 = vpop.f32.mrb[0].mxu0
    %v734 = vadd.f32 %v459, %v733
    %v735 = vpop.f32.mrb[0].mxu0
    %v736 = vadd.f32 %v461, %v735
    %v737 = vpop.f32.mrb[0].mxu0
    %v738 = vadd.f32 %v463, %v737
    %v739 = vpop.f32.mrb[0].mxu0
    %v740 = vadd.f32 %v465, %v739
    %741 = vmatprep.mubr.bf16.mxu0 0
    %742 = vmatmul.mubr.bf16.gmra.mrb[0].mxu0 %v613
    %v743 = vpop.f32.mrb[0].mxu0
    %v744 = vadd.f32 %v469, %v743
    %v745 = vpop.f32.mrb[0].mxu0
    %v746 = vadd.f32 %v471, %v745
    %v747 = vpop.f32.mrb[0].mxu0
    %v748 = vadd.f32 %v473, %v747
    %v749 = vpop.f32.mrb[0].mxu0
    %v750 = vadd.f32 %v475, %v749
    %751 = vmatprep.mubr.bf16.mxu0 0
    %752 = vmatmul.mubr.bf16.gmra.mrb[0].mxu0 %v616
    %v753 = vpop.f32.mrb[0].mxu0
    %v754 = vadd.f32 %v479, %v753
    %v755 = vpop.f32.mrb[0].mxu0
    %v756 = vadd.f32 %v481, %v755
    %v757 = vpop.f32.mrb[0].mxu0
    %v758 = vpop.f32.mrb[0].mxu0
    %759 = vdwg.mxu0
    %s760 = scalar_lea.vmem %s1, 384
    %v761 = vld [vmem:[%s760] sm:$0xff]
    %v762 = vld [vmem:[%s760 + $0x8] sm:$0xff]
    %v763 = vld [vmem:[%s760 + $0x10] sm:$0xff]
    %v764 = vld [vmem:[%s760 + $0x18] sm:$0xff]
    %v765 = vld [vmem:[%s760 + $0x20] sm:$0xff]
    %v766 = vld [vmem:[%s760 + $0x28] sm:$0xff]
    %v767 = vld [vmem:[%s760 + $0x30] sm:$0xff]
    %v768 = vld [vmem:[%s760 + $0x38] sm:$0xff]
    %v769 = vld [vmem:[%s760 + $0x40] sm:$0xff]
    %v770 = vld [vmem:[%s760 + $0x48] sm:$0xff]
    %v771 = vld [vmem:[%s760 + $0x50] sm:$0xff]
    %v772 = vld [vmem:[%s760 + $0x58] sm:$0xff]
    %v773 = vld [vmem:[%s760 + $0x60] sm:$0xff]
    %v774 = vld [vmem:[%s760 + $0x68] sm:$0xff]
    %v775 = vld [vmem:[%s760 + $0x70] sm:$0xff]
    %v776 = vld [vmem:[%s760 + $0x78] sm:$0xff]
    %v777 = vld [vmem:[%s760 + $0x80] sm:$0xff]
    %v778 = vld [vmem:[%s760 + $0x88] sm:$0xff]
    %v779 = vld [vmem:[%s760 + $0x90] sm:$0xff]
    %v780 = vld [vmem:[%s760 + $0x98] sm:$0xff]
    %v781 = vld [vmem:[%s760 + $0xa0] sm:$0xff]
    %v782 = vld [vmem:[%s760 + $0xa8] sm:$0xff]
    %v783 = vld [vmem:[%s760 + $0xb0] sm:$0xff]
    %v784 = vld [vmem:[%s760 + $0xb8] sm:$0xff]
    %vm785 = vcmask 1045504
    %v786 = vrot.slane %v198, 2
    %v787 = vrot.slane %v199, 2
    %v788 = vsel %vm785, %v786, %v787
    %v789 = vrot.slane %v200, 2
    %v790 = vsel %vm785, %v787, %v789
    %v791 = vrot.slane %v201, 2
    %v792 = vsel %vm785, %v789, %v791
    %v817 = vunpack.c.l.b16 %v761
    %v818 = vunpack.c.h.b16 %v761
    %v819 = vunpack.c.l.b16 %v762
    %v820 = vunpack.c.h.b16 %v762
    %v821 = vunpack.c.l.b16 %v763
    %v822 = vunpack.c.h.b16 %v763
    %v823 = vunpack.c.l.b16 %v764
    %v824 = vunpack.c.h.b16 %v764
    %v825 = vunpack.c.l.b16 %v765
    %v826 = vunpack.c.h.b16 %v765
    %v827 = vunpack.c.l.b16 %v766
    %v828 = vunpack.c.h.b16 %v766
    %v829 = vunpack.c.l.b16 %v767
    %v830 = vunpack.c.h.b16 %v767
    %v831 = vunpack.c.l.b16 %v768
    %v832 = vunpack.c.h.b16 %v768
    %v833 = vunpack.c.l.b16 %v769
    %v834 = vunpack.c.h.b16 %v769
    %v835 = vunpack.c.l.b16 %v770
    %v836 = vunpack.c.h.b16 %v770
    %v837 = vunpack.c.l.b16 %v771
    %v838 = vunpack.c.h.b16 %v771
    %v839 = vunpack.c.l.b16 %v772
    %v840 = vunpack.c.h.b16 %v772
    %v841 = vunpack.c.l.b16 %v773
    %v842 = vunpack.c.h.b16 %v773
    %v843 = vunpack.c.l.b16 %v774
    %v844 = vunpack.c.h.b16 %v774
    %v845 = vunpack.c.l.b16 %v775
    %v846 = vunpack.c.h.b16 %v775
    %v847 = vunpack.c.l.b16 %v776
    %v848 = vunpack.c.h.b16 %v776
    %v849 = vunpack.c.l.b16 %v777
    %v850 = vunpack.c.h.b16 %v777
    %v851 = vunpack.c.l.b16 %v778
    %v852 = vunpack.c.h.b16 %v778
    %v853 = vunpack.c.l.b16 %v779
    %v854 = vunpack.c.h.b16 %v779
    %v855 = vunpack.c.l.b16 %v780
    %v856 = vunpack.c.h.b16 %v780
    %v857 = vunpack.c.l.b16 %v781
    %v858 = vunpack.c.h.b16 %v781
    %v859 = vunpack.c.l.b16 %v782
    %v860 = vunpack.c.h.b16 %v782
    %v861 = vunpack.c.l.b16 %v783
    %v862 = vunpack.c.h.b16 %v783
    %v863 = vunpack.c.l.b16 %v784
    %v864 = vunpack.c.h.b16 %v784
    %v865 = vpack.c.b16 %v821, %v817
    %v866 = vpack.c.b16 %v822, %v818
    %v867 = vpack.c.b16 %v823, %v819
    %v868 = vpack.c.b16 %v824, %v820
    %v869 = vpack.c.b16 %v829, %v825
    %v870 = vpack.c.b16 %v830, %v826
    %v871 = vpack.c.b16 %v831, %v827
    %v872 = vpack.c.b16 %v832, %v828
    %v873 = vpack.c.b16 %v837, %v833
    %v874 = vpack.c.b16 %v838, %v834
    %v875 = vpack.c.b16 %v839, %v835
    %v876 = vpack.c.b16 %v840, %v836
    %v877 = vpack.c.b16 %v845, %v841
    %v878 = vpack.c.b16 %v846, %v842
    %v879 = vpack.c.b16 %v847, %v843
    %v880 = vpack.c.b16 %v848, %v844
    %v881 = vpack.c.b16 %v853, %v849
    %v882 = vpack.c.b16 %v854, %v850
    %v883 = vpack.c.b16 %v855, %v851
    %v884 = vpack.c.b16 %v856, %v852
    %v885 = vpack.c.b16 %v861, %v857
    %v886 = vpack.c.b16 %v862, %v858
    %v887 = vpack.c.b16 %v863, %v859
    %v888 = vpack.c.b16 %v864, %v860
    %v914 = vsel %vm330, %v788, 0
    %v917 = vsel %vm330, %v790, 0
    %v920 = vsel %vm330, %v792, 0
    %v923 = vsel %vm330, %v791, 0
    %925 = vmatprep.subr.bf16.mxu0 %v866
    %926 = vmatpush1.bf16.msra.mxu0 %v865
    %927 = vmatprep.subr.bf16.mxu0 %v870
    %928 = vmatpush1.bf16.msra.mxu0 %v869
    %929 = vmatprep.subr.bf16.mxu0 %v874
    %930 = vmatpush1.bf16.msra.mxu0 %v873
    %931 = vmatprep.subr.bf16.mxu0 %v878
    %932 = vmatpush1.bf16.msra.mxu0 %v877
    %933 = vmatprep.subr.bf16.mxu0 %v882
    %934 = vmatpush1.bf16.msra.mxu0 %v881
    %935 = vmatprep.subr.bf16.mxu0 %v886
    %936 = vmatpush1.bf16.msra.mxu0 %v885
    %937 = vmatprep.subr.bf16.mxu0 0
    %938 = vmatpush1.bf16.msra.mxu0 0
    %939 = vmatprep.subr.bf16.mxu0 0
    %940 = vmatpush1.bf16.msra.mxu0 0
    %941 = vmatprep.subr.bf16.mxu0 0
    %942 = vmatpush1.bf16.msra.mxu0 0
    %943 = vmatprep.subr.bf16.mxu0 0
    %944 = vmatpush1.bf16.msra.mxu0 0
    %945 = vmatprep.subr.bf16.mxu0 0
    %946 = vmatpush1.bf16.msra.mxu0 0
    %947 = vmatprep.subr.bf16.mxu0 0
    %948 = vmatpush1.bf16.msra.mxu0 0
    %949 = vmatprep.subr.bf16.mxu0 0
    %950 = vmatpush1.bf16.msra.mxu0 0
    %951 = vmatprep.subr.bf16.mxu0 0
    %952 = vmatpush1.bf16.msra.mxu0 0
    %953 = vmatprep.subr.bf16.mxu0 0
    %954 = vmatpush1.bf16.msra.mxu0 0
    %955 = vmatprep.subr.bf16.mxu0 0
    %956 = vmatpush1.bf16.msra.mxu0 0
    %957 = vmatprep.mubr.bf16.mxu0 0
    %958 = vmatmul.mubr.bf16.gmra.mrb[0].mxu0 %v914
    %v959 = vpop.f32.mrb[0].mxu0
    %v960 = vadd.f32 0.0, %v959
    %v961 = vpop.f32.mrb[0].mxu0
    %v962 = vadd.f32 0.0, %v961
    %v963 = vpop.f32.mrb[0].mxu0
    %v964 = vadd.f32 0.0, %v963
    %v965 = vpop.f32.mrb[0].mxu0
    %v966 = vadd.f32 0.0, %v965
    %967 = vmatprep.mubr.bf16.mxu0 0
    %968 = vmatmul.mubr.bf16.gmra.mrb[0].mxu0 %v917
    %v969 = vpop.f32.mrb[0].mxu0
    %v970 = vadd.f32 0.0, %v969
    %v971 = vpop.f32.mrb[0].mxu0
    %v972 = vadd.f32 0.0, %v971
    %v973 = vpop.f32.mrb[0].mxu0
    %v974 = vadd.f32 0.0, %v973
    %v975 = vpop.f32.mrb[0].mxu0
    %v976 = vadd.f32 0.0, %v975
    %977 = vmatprep.mubr.bf16.mxu0 0
    %978 = vmatmul.mubr.bf16.gmra.mrb[0].mxu0 %v920
    %v979 = vpop.f32.mrb[0].mxu0
    %v980 = vadd.f32 0.0, %v979
    %v981 = vpop.f32.mrb[0].mxu0
    %v982 = vadd.f32 0.0, %v981
    %v983 = vpop.f32.mrb[0].mxu0
    %v984 = vadd.f32 0.0, %v983
    %v985 = vpop.f32.mrb[0].mxu0
    %v986 = vadd.f32 0.0, %v985
    %987 = vmatprep.mubr.bf16.mxu0 0
    %988 = vmatmul.mubr.bf16.gmra.mrb[0].mxu0 %v923
    %v989 = vpop.f32.mrb[0].mxu0
    %v990 = vadd.f32 0.0, %v989
    %v991 = vpop.f32.mrb[0].mxu0
    %v992 = vadd.f32 0.0, %v991
    %v993 = vpop.f32.mrb[0].mxu0
    %v994 = vpop.f32.mrb[0].mxu0
    %995 = vdwg.mxu0
    %996 = vmatprep.subr.bf16.mxu0 %v868
    %997 = vmatpush1.bf16.msra.mxu0 %v867
    %998 = vmatprep.subr.bf16.mxu0 %v872
    %999 = vmatpush1.bf16.msra.mxu0 %v871
    %1000 = vmatprep.subr.bf16.mxu0 %v876
    %1001 = vmatpush1.bf16.msra.mxu0 %v875
    %1002 = vmatprep.subr.bf16.mxu0 %v880
    %1003 = vmatpush1.bf16.msra.mxu0 %v879
    %1004 = vmatprep.subr.bf16.mxu0 %v884
    %1005 = vmatpush1.bf16.msra.mxu0 %v883
    %1006 = vmatprep.subr.bf16.mxu0 %v888
    %1007 = vmatpush1.bf16.msra.mxu0 %v887
    %1008 = vmatprep.subr.bf16.mxu0 0
    %1009 = vmatpush1.bf16.msra.mxu0 0
    %1010 = vmatprep.subr.bf16.mxu0 0
    %1011 = vmatpush1.bf16.msra.mxu0 0
    %1012 = vmatprep.subr.bf16.mxu0 0
    %1013 = vmatpush1.bf16.msra.mxu0 0
    %1014 = vmatprep.subr.bf16.mxu0 0
    %1015 = vmatpush1.bf16.msra.mxu0 0
    %1016 = vmatprep.subr.bf16.mxu0 0
    %1017 = vmatpush1.bf16.msra.mxu0 0
    %1018 = vmatprep.subr.bf16.mxu0 0
    %1019 = vmatpush1.bf16.msra.mxu0 0
    %1020 = vmatprep.subr.bf16.mxu0 0
    %1021 = vmatpush1.bf16.msra.mxu0 0
    %1022 = vmatprep.subr.bf16.mxu0 0
    %1023 = vmatpush1.bf16.msra.mxu0 0
    %1024 = vmatprep.subr.bf16.mxu0 0
    %1025 = vmatpush1.bf16.msra.mxu0 0
    %1026 = vmatprep.subr.bf16.mxu0 0
    %1027 = vmatpush1.bf16.msra.mxu0 0
    %1028 = vmatprep.mubr.bf16.mxu0 0
    %1029 = vmatmul.mubr.bf16.gmra.mrb[0].mxu0 %v914
    %v1030 = vpop.f32.mrb[0].mxu0
    %v1031 = vadd.f32 0.0, %v1030
    %v1032 = vpop.f32.mrb[0].mxu0
    %v1033 = vadd.f32 0.0, %v1032
    %v1034 = vpop.f32.mrb[0].mxu0
    %v1035 = vadd.f32 0.0, %v1034
    %v1036 = vpop.f32.mrb[0].mxu0
    %v1037 = vadd.f32 0.0, %v1036
    %1038 = vmatprep.mubr.bf16.mxu0 0
    %1039 = vmatmul.mubr.bf16.gmra.mrb[0].mxu0 %v917
    %v1040 = vpop.f32.mrb[0].mxu0
    %v1041 = vadd.f32 0.0, %v1040
    %v1042 = vpop.f32.mrb[0].mxu0
    %v1043 = vadd.f32 0.0, %v1042
    %v1044 = vpop.f32.mrb[0].mxu0
    %v1045 = vadd.f32 0.0, %v1044
    %v1046 = vpop.f32.mrb[0].mxu0
    %v1047 = vadd.f32 0.0, %v1046
    %1048 = vmatprep.mubr.bf16.mxu0 0
    %1049 = vmatmul.mubr.bf16.gmra.mrb[0].mxu0 %v920
    %v1050 = vpop.f32.mrb[0].mxu0
    %v1051 = vadd.f32 0.0, %v1050
    %v1052 = vpop.f32.mrb[0].mxu0
    %v1053 = vadd.f32 0.0, %v1052
    %v1054 = vpop.f32.mrb[0].mxu0
    %v1055 = vadd.f32 0.0, %v1054
    %v1056 = vpop.f32.mrb[0].mxu0
    %v1057 = vadd.f32 0.0, %v1056
    %1058 = vmatprep.mubr.bf16.mxu0 0
    %1059 = vmatmul.mubr.bf16.gmra.mrb[0].mxu0 %v923
    %v1060 = vpop.f32.mrb[0].mxu0
    %v1061 = vadd.f32 0.0, %v1060
    %v1062 = vpop.f32.mrb[0].mxu0
    %v1063 = vadd.f32 0.0, %v1062
    %v1064 = vpop.f32.mrb[0].mxu0
    %v1065 = vpop.f32.mrb[0].mxu0
    %1066 = vdwg.mxu0
    %v1067 = vadd.f32 %v653, %v960
    %v1068 = vadd.f32 %v655, %v962
    %v1069 = vadd.f32 %v724, %v1031
    %v1070 = vadd.f32 %v726, %v1033
    %v1071 = vadd.f32 %v657, %v964
    %v1072 = vadd.f32 %v659, %v966
    %v1073 = vadd.f32 %v728, %v1035
    %v1074 = vadd.f32 %v730, %v1037
    %v1075 = vadd.f32 %v663, %v970
    %v1076 = vadd.f32 %v665, %v972
    %v1077 = vadd.f32 %v734, %v1041
    %v1078 = vadd.f32 %v736, %v1043
    %v1079 = vadd.f32 %v667, %v974
    %v1080 = vadd.f32 %v669, %v976
    %v1081 = vadd.f32 %v738, %v1045
    %v1082 = vadd.f32 %v740, %v1047
    %v1083 = vadd.f32 %v673, %v980
    %v1084 = vadd.f32 %v675, %v982
    %v1085 = vadd.f32 %v744, %v1051
    %v1086 = vadd.f32 %v746, %v1053
    %v1087 = vadd.f32 %v677, %v984
    %v1088 = vadd.f32 %v679, %v986
    %v1089 = vadd.f32 %v748, %v1055
    %v1090 = vadd.f32 %v750, %v1057
    %v1091 = vadd.f32 %v683, %v990
    %v1092 = vadd.f32 %v685, %v992
    %v1093 = vadd.f32 %v754, %v1061
    %v1094 = vadd.f32 %v756, %v1063
    %s1095 = scalar_lea.vmem %s1, 576
    %v1096 = vld [vmem:[%s1095] sm:$0xff]
    %v1097 = vld [vmem:[%s1095 + $0x8] sm:$0xff]
    %v1098 = vld [vmem:[%s1095 + $0x10] sm:$0xff]
    %v1099 = vld [vmem:[%s1095 + $0x18] sm:$0xff]
    %v1100 = vld [vmem:[%s1095 + $0x20] sm:$0xff]
    %v1101 = vld [vmem:[%s1095 + $0x28] sm:$0xff]
    %v1102 = vld [vmem:[%s1095 + $0x30] sm:$0xff]
    %v1103 = vld [vmem:[%s1095 + $0x38] sm:$0xff]
    %v1104 = vld [vmem:[%s1095 + $0x40] sm:$0xff]
    %v1105 = vld [vmem:[%s1095 + $0x48] sm:$0xff]
    %v1106 = vld [vmem:[%s1095 + $0x50] sm:$0xff]
    %v1107 = vld [vmem:[%s1095 + $0x58] sm:$0xff]
    %v1108 = vld [vmem:[%s1095 + $0x60] sm:$0xff]
    %v1109 = vld [vmem:[%s1095 + $0x68] sm:$0xff]
    %v1110 = vld [vmem:[%s1095 + $0x70] sm:$0xff]
    %v1111 = vld [vmem:[%s1095 + $0x78] sm:$0xff]
    %v1112 = vld [vmem:[%s1095 + $0x80] sm:$0xff]
    %v1113 = vld [vmem:[%s1095 + $0x88] sm:$0xff]
    %v1114 = vld [vmem:[%s1095 + $0x90] sm:$0xff]
    %v1115 = vld [vmem:[%s1095 + $0x98] sm:$0xff]
    %v1116 = vld [vmem:[%s1095 + $0xa0] sm:$0xff]
    %v1117 = vld [vmem:[%s1095 + $0xa8] sm:$0xff]
    %v1118 = vld [vmem:[%s1095 + $0xb0] sm:$0xff]
    %v1119 = vld [vmem:[%s1095 + $0xb8] sm:$0xff]
    %vm1120 = vcmask 1044480
    %v1121 = vrot.slane %v198, 3
    %v1122 = vrot.slane %v199, 3
    %v1123 = vsel %vm1120, %v1121, %v1122
    %v1124 = vrot.slane %v200, 3
    %v1125 = vsel %vm1120, %v1122, %v1124
    %v1126 = vrot.slane %v201, 3
    %v1127 = vsel %vm1120, %v1124, %v1126
    %v1152 = vunpack.c.l.b16 %v1096
    %v1153 = vunpack.c.h.b16 %v1096
    %v1154 = vunpack.c.l.b16 %v1097
    %v1155 = vunpack.c.h.b16 %v1097
    %v1156 = vunpack.c.l.b16 %v1098
    %v1157 = vunpack.c.h.b16 %v1098
    %v1158 = vunpack.c.l.b16 %v1099
    %v1159 = vunpack.c.h.b16 %v1099
    %v1160 = vunpack.c.l.b16 %v1100
    %v1161 = vunpack.c.h.b16 %v1100
    %v1162 = vunpack.c.l.b16 %v1101
    %v1163 = vunpack.c.h.b16 %v1101
    %v1164 = vunpack.c.l.b16 %v1102
    %v1165 = vunpack.c.h.b16 %v1102
    %v1166 = vunpack.c.l.b16 %v1103
    %v1167 = vunpack.c.h.b16 %v1103
    %v1168 = vunpack.c.l.b16 %v1104
    %v1169 = vunpack.c.h.b16 %v1104
    %v1170 = vunpack.c.l.b16 %v1105
    %v1171 = vunpack.c.h.b16 %v1105
    %v1172 = vunpack.c.l.b16 %v1106
    %v1173 = vunpack.c.h.b16 %v1106
    %v1174 = vunpack.c.l.b16 %v1107
    %v1175 = vunpack.c.h.b16 %v1107
    %v1176 = vunpack.c.l.b16 %v1108
    %v1177 = vunpack.c.h.b16 %v1108
    %v1178 = vunpack.c.l.b16 %v1109
    %v1179 = vunpack.c.h.b16 %v1109
    %v1180 = vunpack.c.l.b16 %v1110
    %v1181 = vunpack.c.h.b16 %v1110
    %v1182 = vunpack.c.l.b16 %v1111
    %v1183 = vunpack.c.h.b16 %v1111
    %v1184 = vunpack.c.l.b16 %v1112
    %v1185 = vunpack.c.h.b16 %v1112
    %v1186 = vunpack.c.l.b16 %v1113
    %v1187 = vunpack.c.h.b16 %v1113
    %v1188 = vunpack.c.l.b16 %v1114
    %v1189 = vunpack.c.h.b16 %v1114
    %v1190 = vunpack.c.l.b16 %v1115
    %v1191 = vunpack.c.h.b16 %v1115
    %v1192 = vunpack.c.l.b16 %v1116
    %v1193 = vunpack.c.h.b16 %v1116
    %v1194 = vunpack.c.l.b16 %v1117
    %v1195 = vunpack.c.h.b16 %v1117
    %v1196 = vunpack.c.l.b16 %v1118
    %v1197 = vunpack.c.h.b16 %v1118
    %v1198 = vunpack.c.l.b16 %v1119
    %v1199 = vunpack.c.h.b16 %v1119
    %v1200 = vpack.c.b16 %v1156, %v1152
    %v1201 = vpack.c.b16 %v1157, %v1153
    %v1202 = vpack.c.b16 %v1158, %v1154
    %v1203 = vpack.c.b16 %v1159, %v1155
    %v1204 = vpack.c.b16 %v1164, %v1160
    %v1205 = vpack.c.b16 %v1165, %v1161
    %v1206 = vpack.c.b16 %v1166, %v1162
    %v1207 = vpack.c.b16 %v1167, %v1163
    %v1208 = vpack.c.b16 %v1172, %v1168
    %v1209 = vpack.c.b16 %v1173, %v1169
    %v1210 = vpack.c.b16 %v1174, %v1170
    %v1211 = vpack.c.b16 %v1175, %v1171
    %v1212 = vpack.c.b16 %v1180, %v1176
    %v1213 = vpack.c.b16 %v1181, %v1177
    %v1214 = vpack.c.b16 %v1182, %v1178
    %v1215 = vpack.c.b16 %v1183, %v1179
    %v1216 = vpack.c.b16 %v1188, %v1184
    %v1217 = vpack.c.b16 %v1189, %v1185
    %v1218 = vpack.c.b16 %v1190, %v1186
    %v1219 = vpack.c.b16 %v1191, %v1187
    %v1220 = vpack.c.b16 %v1196, %v1192
    %v1221 = vpack.c.b16 %v1197, %v1193
    %v1222 = vpack.c.b16 %v1198, %v1194
    %v1223 = vpack.c.b16 %v1199, %v1195
    %v1249 = vsel %vm330, %v1123, 0
    %v1252 = vsel %vm330, %v1125, 0
    %v1255 = vsel %vm330, %v1127, 0
    %v1258 = vsel %vm330, %v1126, 0
    %1260 = vmatprep.subr.bf16.mxu0 %v1201
    %1261 = vmatpush1.bf16.msra.mxu0 %v1200
    %1262 = vmatprep.subr.bf16.mxu0 %v1205
    %1263 = vmatpush1.bf16.msra.mxu0 %v1204
    %1264 = vmatprep.subr.bf16.mxu0 %v1209
    %1265 = vmatpush1.bf16.msra.mxu0 %v1208
    %1266 = vmatprep.subr.bf16.mxu0 %v1213
    %1267 = vmatpush1.bf16.msra.mxu0 %v1212
    %1268 = vmatprep.subr.bf16.mxu0 %v1217
    %1269 = vmatpush1.bf16.msra.mxu0 %v1216
    %1270 = vmatprep.subr.bf16.mxu0 %v1221
    %1271 = vmatpush1.bf16.msra.mxu0 %v1220
    %1272 = vmatprep.subr.bf16.mxu0 0
    %1273 = vmatpush1.bf16.msra.mxu0 0
    %1274 = vmatprep.subr.bf16.mxu0 0
    %1275 = vmatpush1.bf16.msra.mxu0 0
    %1276 = vmatprep.subr.bf16.mxu0 0
    %1277 = vmatpush1.bf16.msra.mxu0 0
    %1278 = vmatprep.subr.bf16.mxu0 0
    %1279 = vmatpush1.bf16.msra.mxu0 0
    %1280 = vmatprep.subr.bf16.mxu0 0
    %1281 = vmatpush1.bf16.msra.mxu0 0
    %1282 = vmatprep.subr.bf16.mxu0 0
    %1283 = vmatpush1.bf16.msra.mxu0 0
    %1284 = vmatprep.subr.bf16.mxu0 0
    %1285 = vmatpush1.bf16.msra.mxu0 0
    %1286 = vmatprep.subr.bf16.mxu0 0
    %1287 = vmatpush1.bf16.msra.mxu0 0
    %1288 = vmatprep.subr.bf16.mxu0 0
    %1289 = vmatpush1.bf16.msra.mxu0 0
    %1290 = vmatprep.subr.bf16.mxu0 0
    %1291 = vmatpush1.bf16.msra.mxu0 0
    %1292 = vmatprep.mubr.bf16.mxu0 0
    %1293 = vmatmul.mubr.bf16.gmra.mrb[0].mxu0 %v1249
    %v1294 = vpop.f32.mrb[0].mxu0
    %v1295 = vadd.f32 0.0, %v1294
    %v1296 = vpop.f32.mrb[0].mxu0
    %v1297 = vadd.f32 0.0, %v1296
    %v1298 = vpop.f32.mrb[0].mxu0
    %v1299 = vadd.f32 0.0, %v1298
    %v1300 = vpop.f32.mrb[0].mxu0
    %v1301 = vadd.f32 0.0, %v1300
    %1302 = vmatprep.mubr.bf16.mxu0 0
    %1303 = vmatmul.mubr.bf16.gmra.mrb[0].mxu0 %v1252
    %v1304 = vpop.f32.mrb[0].mxu0
    %v1305 = vadd.f32 0.0, %v1304
    %v1306 = vpop.f32.mrb[0].mxu0
    %v1307 = vadd.f32 0.0, %v1306
    %v1308 = vpop.f32.mrb[0].mxu0
    %v1309 = vadd.f32 0.0, %v1308
    %v1310 = vpop.f32.mrb[0].mxu0
    %v1311 = vadd.f32 0.0, %v1310
    %1312 = vmatprep.mubr.bf16.mxu0 0
    %1313 = vmatmul.mubr.bf16.gmra.mrb[0].mxu0 %v1255
    %v1314 = vpop.f32.mrb[0].mxu0
    %v1315 = vadd.f32 0.0, %v1314
    %v1316 = vpop.f32.mrb[0].mxu0
    %v1317 = vadd.f32 0.0, %v1316
    %v1318 = vpop.f32.mrb[0].mxu0
    %v1319 = vadd.f32 0.0, %v1318
    %v1320 = vpop.f32.mrb[0].mxu0
    %v1321 = vadd.f32 0.0, %v1320
    %1322 = vmatprep.mubr.bf16.mxu0 0
    %1323 = vmatmul.mubr.bf16.gmra.mrb[0].mxu0 %v1258
    %v1324 = vpop.f32.mrb[0].mxu0
    %v1325 = vadd.f32 0.0, %v1324
    %v1326 = vpop.f32.mrb[0].mxu0
    %v1327 = vadd.f32 0.0, %v1326
    %v1328 = vpop.f32.mrb[0].mxu0
    %v1329 = vpop.f32.mrb[0].mxu0
    %1330 = vdwg.mxu0
    %1331 = vmatprep.subr.bf16.mxu0 %v1203
    %1332 = vmatpush1.bf16.msra.mxu0 %v1202
    %1333 = vmatprep.subr.bf16.mxu0 %v1207
    %1334 = vmatpush1.bf16.msra.mxu0 %v1206
    %1335 = vmatprep.subr.bf16.mxu0 %v1211
    %1336 = vmatpush1.bf16.msra.mxu0 %v1210
    %1337 = vmatprep.subr.bf16.mxu0 %v1215
    %1338 = vmatpush1.bf16.msra.mxu0 %v1214
    %1339 = vmatprep.subr.bf16.mxu0 %v1219
    %1340 = vmatpush1.bf16.msra.mxu0 %v1218
    %1341 = vmatprep.subr.bf16.mxu0 %v1223
    %1342 = vmatpush1.bf16.msra.mxu0 %v1222
    %1343 = vmatprep.subr.bf16.mxu0 0
    %1344 = vmatpush1.bf16.msra.mxu0 0
    %1345 = vmatprep.subr.bf16.mxu0 0
    %1346 = vmatpush1.bf16.msra.mxu0 0
    %1347 = vmatprep.subr.bf16.mxu0 0
    %1348 = vmatpush1.bf16.msra.mxu0 0
    %1349 = vmatprep.subr.bf16.mxu0 0
    %1350 = vmatpush1.bf16.msra.mxu0 0
    %1351 = vmatprep.subr.bf16.mxu0 0
    %1352 = vmatpush1.bf16.msra.mxu0 0
    %1353 = vmatprep.subr.bf16.mxu0 0
    %1354 = vmatpush1.bf16.msra.mxu0 0
    %1355 = vmatprep.subr.bf16.mxu0 0
    %1356 = vmatpush1.bf16.msra.mxu0 0
    %1357 = vmatprep.subr.bf16.mxu0 0
    %1358 = vmatpush1.bf16.msra.mxu0 0
    %1359 = vmatprep.subr.bf16.mxu0 0
    %1360 = vmatpush1.bf16.msra.mxu0 0
    %1361 = vmatprep.subr.bf16.mxu0 0
    %1362 = vmatpush1.bf16.msra.mxu0 0
    %1363 = vmatprep.mubr.bf16.mxu0 0
    %1364 = vmatmul.mubr.bf16.gmra.mrb[0].mxu0 %v1249
    %v1365 = vpop.f32.mrb[0].mxu0
    %v1366 = vadd.f32 0.0, %v1365
    %v1367 = vpop.f32.mrb[0].mxu0
    %v1368 = vadd.f32 0.0, %v1367
    %v1369 = vpop.f32.mrb[0].mxu0
    %v1370 = vadd.f32 0.0, %v1369
    %v1371 = vpop.f32.mrb[0].mxu0
    %v1372 = vadd.f32 0.0, %v1371
    %1373 = vmatprep.mubr.bf16.mxu0 0
    %1374 = vmatmul.mubr.bf16.gmra.mrb[0].mxu0 %v1252
    %v1375 = vpop.f32.mrb[0].mxu0
    %v1376 = vadd.f32 0.0, %v1375
    %v1377 = vpop.f32.mrb[0].mxu0
    %v1378 = vadd.f32 0.0, %v1377
    %v1379 = vpop.f32.mrb[0].mxu0
    %v1380 = vadd.f32 0.0, %v1379
    %v1381 = vpop.f32.mrb[0].mxu0
    %v1382 = vadd.f32 0.0, %v1381
    %1383 = vmatprep.mubr.bf16.mxu0 0
    %1384 = vmatmul.mubr.bf16.gmra.mrb[0].mxu0 %v1255
    %v1385 = vpop.f32.mrb[0].mxu0
    %v1386 = vadd.f32 0.0, %v1385
    %v1387 = vpop.f32.mrb[0].mxu0
    %v1388 = vadd.f32 0.0, %v1387
    %v1389 = vpop.f32.mrb[0].mxu0
    %v1390 = vadd.f32 0.0, %v1389
    %v1391 = vpop.f32.mrb[0].mxu0
    %v1392 = vadd.f32 0.0, %v1391
    %1393 = vmatprep.mubr.bf16.mxu0 0
    %1394 = vmatmul.mubr.bf16.gmra.mrb[0].mxu0 %v1258
    %v1395 = vpop.f32.mrb[0].mxu0
    %v1396 = vadd.f32 0.0, %v1395
    %v1397 = vpop.f32.mrb[0].mxu0
    %v1398 = vadd.f32 0.0, %v1397
    %v1399 = vpop.f32.mrb[0].mxu0
    %v1400 = vpop.f32.mrb[0].mxu0
    %1401 = vdwg.mxu0
    %v1402 = vadd.f32 %v1067, %v1295
    %v1403 = vadd.f32 %v1068, %v1297
    %v1404 = vadd.f32 %v1069, %v1366
    %v1405 = vadd.f32 %v1070, %v1368
    %v1406 = vadd.f32 %v1071, %v1299
    %v1407 = vadd.f32 %v1072, %v1301
    %v1408 = vadd.f32 %v1073, %v1370
    %v1409 = vadd.f32 %v1074, %v1372
    %v1410 = vadd.f32 %v1075, %v1305
    %v1411 = vadd.f32 %v1076, %v1307
    %v1412 = vadd.f32 %v1077, %v1376
    %v1413 = vadd.f32 %v1078, %v1378
    %v1414 = vadd.f32 %v1079, %v1309
    %v1415 = vadd.f32 %v1080, %v1311
    %v1416 = vadd.f32 %v1081, %v1380
    %v1417 = vadd.f32 %v1082, %v1382
    %v1418 = vadd.f32 %v1083, %v1315
    %v1419 = vadd.f32 %v1084, %v1317
    %v1420 = vadd.f32 %v1085, %v1386
    %v1421 = vadd.f32 %v1086, %v1388
    %v1422 = vadd.f32 %v1087, %v1319
    %v1423 = vadd.f32 %v1088, %v1321
    %v1424 = vadd.f32 %v1089, %v1390
    %v1425 = vadd.f32 %v1090, %v1392
    %v1426 = vadd.f32 %v1091, %v1325
    %v1427 = vadd.f32 %v1092, %v1327
    %v1428 = vadd.f32 %v1093, %v1396
    %v1429 = vadd.f32 %v1094, %v1398
    %s1430 = scalar_lea.vmem %s1, 768
    %v1431 = vld [vmem:[%s1430] sm:$0xff]
    %v1432 = vld [vmem:[%s1430 + $0x8] sm:$0xff]
    %v1433 = vld [vmem:[%s1430 + $0x10] sm:$0xff]
    %v1434 = vld [vmem:[%s1430 + $0x18] sm:$0xff]
    %v1435 = vld [vmem:[%s1430 + $0x20] sm:$0xff]
    %v1436 = vld [vmem:[%s1430 + $0x28] sm:$0xff]
    %v1437 = vld [vmem:[%s1430 + $0x30] sm:$0xff]
    %v1438 = vld [vmem:[%s1430 + $0x38] sm:$0xff]
    %v1439 = vld [vmem:[%s1430 + $0x40] sm:$0xff]
    %v1440 = vld [vmem:[%s1430 + $0x48] sm:$0xff]
    %v1441 = vld [vmem:[%s1430 + $0x50] sm:$0xff]
    %v1442 = vld [vmem:[%s1430 + $0x58] sm:$0xff]
    %v1443 = vld [vmem:[%s1430 + $0x60] sm:$0xff]
    %v1444 = vld [vmem:[%s1430 + $0x68] sm:$0xff]
    %v1445 = vld [vmem:[%s1430 + $0x70] sm:$0xff]
    %v1446 = vld [vmem:[%s1430 + $0x78] sm:$0xff]
    %v1447 = vld [vmem:[%s1430 + $0x80] sm:$0xff]
    %v1448 = vld [vmem:[%s1430 + $0x88] sm:$0xff]
    %v1449 = vld [vmem:[%s1430 + $0x90] sm:$0xff]
    %v1450 = vld [vmem:[%s1430 + $0x98] sm:$0xff]
    %v1451 = vld [vmem:[%s1430 + $0xa0] sm:$0xff]
    %v1452 = vld [vmem:[%s1430 + $0xa8] sm:$0xff]
    %v1453 = vld [vmem:[%s1430 + $0xb0] sm:$0xff]
    %v1454 = vld [vmem:[%s1430 + $0xb8] sm:$0xff]
    %v1455 = vpack.c.b16 %v192, %v191
    %v1456 = vpack.c.b16 %v194, %v193
    %v1457 = vpack.c.b16 %v196, %v195
    %v1458 = vpack.c.b16 %v197, %v197
    %v1483 = vunpack.c.l.b16 %v1431
    %v1484 = vunpack.c.h.b16 %v1431
    %v1485 = vunpack.c.l.b16 %v1432
    %v1486 = vunpack.c.h.b16 %v1432
    %v1487 = vunpack.c.l.b16 %v1433
    %v1488 = vunpack.c.h.b16 %v1433
    %v1489 = vunpack.c.l.b16 %v1434
    %v1490 = vunpack.c.h.b16 %v1434
    %v1491 = vunpack.c.l.b16 %v1435
    %v1492 = vunpack.c.h.b16 %v1435
    %v1493 = vunpack.c.l.b16 %v1436
    %v1494 = vunpack.c.h.b16 %v1436
    %v1495 = vunpack.c.l.b16 %v1437
    %v1496 = vunpack.c.h.b16 %v1437
    %v1497 = vunpack.c.l.b16 %v1438
    %v1498 = vunpack.c.h.b16 %v1438
    %v1499 = vunpack.c.l.b16 %v1439
    %v1500 = vunpack.c.h.b16 %v1439
    %v1501 = vunpack.c.l.b16 %v1440
    %v1502 = vunpack.c.h.b16 %v1440
    %v1503 = vunpack.c.l.b16 %v1441
    %v1504 = vunpack.c.h.b16 %v1441
    %v1505 = vunpack.c.l.b16 %v1442
    %v1506 = vunpack.c.h.b16 %v1442
    %v1507 = vunpack.c.l.b16 %v1443
    %v1508 = vunpack.c.h.b16 %v1443
    %v1509 = vunpack.c.l.b16 %v1444
    %v1510 = vunpack.c.h.b16 %v1444
    %v1511 = vunpack.c.l.b16 %v1445
    %v1512 = vunpack.c.h.b16 %v1445
    %v1513 = vunpack.c.l.b16 %v1446
    %v1514 = vunpack.c.h.b16 %v1446
    %v1515 = vunpack.c.l.b16 %v1447
    %v1516 = vunpack.c.h.b16 %v1447
    %v1517 = vunpack.c.l.b16 %v1448
    %v1518 = vunpack.c.h.b16 %v1448
    %v1519 = vunpack.c.l.b16 %v1449
    %v1520 = vunpack.c.h.b16 %v1449
    %v1521 = vunpack.c.l.b16 %v1450
    %v1522 = vunpack.c.h.b16 %v1450
    %v1523 = vunpack.c.l.b16 %v1451
    %v1524 = vunpack.c.h.b16 %v1451
    %v1525 = vunpack.c.l.b16 %v1452
    %v1526 = vunpack.c.h.b16 %v1452
    %v1527 = vunpack.c.l.b16 %v1453
    %v1528 = vunpack.c.h.b16 %v1453
    %v1529 = vunpack.c.l.b16 %v1454
    %v1530 = vunpack.c.h.b16 %v1454
    %v1531 = vpack.c.b16 %v1487, %v1483
    %v1532 = vpack.c.b16 %v1488, %v1484
    %v1533 = vpack.c.b16 %v1489, %v1485
    %v1534 = vpack.c.b16 %v1490, %v1486
    %v1535 = vpack.c.b16 %v1495, %v1491
    %v1536 = vpack.c.b16 %v1496, %v1492
    %v1537 = vpack.c.b16 %v1497, %v1493
    %v1538 = vpack.c.b16 %v1498, %v1494
    %v1539 = vpack.c.b16 %v1503, %v1499
    %v1540 = vpack.c.b16 %v1504, %v1500
    %v1541 = vpack.c.b16 %v1505, %v1501
    %v1542 = vpack.c.b16 %v1506, %v1502
    %v1543 = vpack.c.b16 %v1511, %v1507
    %v1544 = vpack.c.b16 %v1512, %v1508
    %v1545 = vpack.c.b16 %v1513, %v1509
    %v1546 = vpack.c.b16 %v1514, %v1510
    %v1547 = vpack.c.b16 %v1519, %v1515
    %v1548 = vpack.c.b16 %v1520, %v1516
    %v1549 = vpack.c.b16 %v1521, %v1517
    %v1550 = vpack.c.b16 %v1522, %v1518
    %v1551 = vpack.c.b16 %v1527, %v1523
    %v1552 = vpack.c.b16 %v1528, %v1524
    %v1553 = vpack.c.b16 %v1529, %v1525
    %v1554 = vpack.c.b16 %v1530, %v1526
    %v1580 = vsel %vm330, %v1455, 0
    %v1583 = vsel %vm330, %v1456, 0
    %v1586 = vsel %vm330, %v1457, 0
    %v1589 = vsel %vm330, %v1458, 0
    %1591 = vmatprep.subr.bf16.mxu0 %v1532
    %1592 = vmatpush1.bf16.msra.mxu0 %v1531
    %1593 = vmatprep.subr.bf16.mxu0 %v1536
    %1594 = vmatpush1.bf16.msra.mxu0 %v1535
    %1595 = vmatprep.subr.bf16.mxu0 %v1540
    %1596 = vmatpush1.bf16.msra.mxu0 %v1539
    %1597 = vmatprep.subr.bf16.mxu0 %v1544
    %1598 = vmatpush1.bf16.msra.mxu0 %v1543
    %1599 = vmatprep.subr.bf16.mxu0 %v1548
    %1600 = vmatpush1.bf16.msra.mxu0 %v1547
    %1601 = vmatprep.subr.bf16.mxu0 %v1552
    %1602 = vmatpush1.bf16.msra.mxu0 %v1551
    %1603 = vmatprep.subr.bf16.mxu0 0
    %1604 = vmatpush1.bf16.msra.mxu0 0
    %1605 = vmatprep.subr.bf16.mxu0 0
    %1606 = vmatpush1.bf16.msra.mxu0 0
    %1607 = vmatprep.subr.bf16.mxu0 0
    %1608 = vmatpush1.bf16.msra.mxu0 0
    %1609 = vmatprep.subr.bf16.mxu0 0
    %1610 = vmatpush1.bf16.msra.mxu0 0
    %1611 = vmatprep.subr.bf16.mxu0 0
    %1612 = vmatpush1.bf16.msra.mxu0 0
    %1613 = vmatprep.subr.bf16.mxu0 0
    %1614 = vmatpush1.bf16.msra.mxu0 0
    %1615 = vmatprep.subr.bf16.mxu0 0
    %1616 = vmatpush1.bf16.msra.mxu0 0
    %1617 = vmatprep.subr.bf16.mxu0 0
    %1618 = vmatpush1.bf16.msra.mxu0 0
    %1619 = vmatprep.subr.bf16.mxu0 0
    %1620 = vmatpush1.bf16.msra.mxu0 0
    %1621 = vmatprep.subr.bf16.mxu0 0
    %1622 = vmatpush1.bf16.msra.mxu0 0
    %1623 = vmatprep.mubr.bf16.mxu0 0
    %1624 = vmatmul.mubr.bf16.gmra.mrb[0].mxu0 %v1580
    %v1625 = vpop.f32.mrb[0].mxu0
    %v1626 = vadd.f32 0.0, %v1625
    %v1627 = vpop.f32.mrb[0].mxu0
    %v1628 = vadd.f32 0.0, %v1627
    %v1629 = vpop.f32.mrb[0].mxu0
    %v1630 = vadd.f32 0.0, %v1629
    %v1631 = vpop.f32.mrb[0].mxu0
    %v1632 = vadd.f32 0.0, %v1631
    %1633 = vmatprep.mubr.bf16.mxu0 0
    %1634 = vmatmul.mubr.bf16.gmra.mrb[0].mxu0 %v1583
    %v1635 = vpop.f32.mrb[0].mxu0
    %v1636 = vadd.f32 0.0, %v1635
    %v1637 = vpop.f32.mrb[0].mxu0
    %v1638 = vadd.f32 0.0, %v1637
    %v1639 = vpop.f32.mrb[0].mxu0
    %v1640 = vadd.f32 0.0, %v1639
    %v1641 = vpop.f32.mrb[0].mxu0
    %v1642 = vadd.f32 0.0, %v1641
    %1643 = vmatprep.mubr.bf16.mxu0 0
    %1644 = vmatmul.mubr.bf16.gmra.mrb[0].mxu0 %v1586
    %v1645 = vpop.f32.mrb[0].mxu0
    %v1646 = vadd.f32 0.0, %v1645
    %v1647 = vpop.f32.mrb[0].mxu0
    %v1648 = vadd.f32 0.0, %v1647
    %v1649 = vpop.f32.mrb[0].mxu0
    %v1650 = vadd.f32 0.0, %v1649
    %v1651 = vpop.f32.mrb[0].mxu0
    %v1652 = vadd.f32 0.0, %v1651
    %1653 = vmatprep.mubr.bf16.mxu0 0
    %1654 = vmatmul.mubr.bf16.gmra.mrb[0].mxu0 %v1589
    %v1655 = vpop.f32.mrb[0].mxu0
    %v1656 = vadd.f32 0.0, %v1655
    %v1657 = vpop.f32.mrb[0].mxu0
    %v1658 = vadd.f32 0.0, %v1657
    %v1659 = vpop.f32.mrb[0].mxu0
    %v1660 = vpop.f32.mrb[0].mxu0
    %1661 = vdwg.mxu0
    %1662 = vmatprep.subr.bf16.mxu0 %v1534
    %1663 = vmatpush1.bf16.msra.mxu0 %v1533
    %1664 = vmatprep.subr.bf16.mxu0 %v1538
    %1665 = vmatpush1.bf16.msra.mxu0 %v1537
    %1666 = vmatprep.subr.bf16.mxu0 %v1542
    %1667 = vmatpush1.bf16.msra.mxu0 %v1541
    %1668 = vmatprep.subr.bf16.mxu0 %v1546
    %1669 = vmatpush1.bf16.msra.mxu0 %v1545
    %1670 = vmatprep.subr.bf16.mxu0 %v1550
    %1671 = vmatpush1.bf16.msra.mxu0 %v1549
    %1672 = vmatprep.subr.bf16.mxu0 %v1554
    %1673 = vmatpush1.bf16.msra.mxu0 %v1553
    %1674 = vmatprep.subr.bf16.mxu0 0
    %1675 = vmatpush1.bf16.msra.mxu0 0
    %1676 = vmatprep.subr.bf16.mxu0 0
    %1677 = vmatpush1.bf16.msra.mxu0 0
    %1678 = vmatprep.subr.bf16.mxu0 0
    %1679 = vmatpush1.bf16.msra.mxu0 0
    %1680 = vmatprep.subr.bf16.mxu0 0
    %1681 = vmatpush1.bf16.msra.mxu0 0
    %1682 = vmatprep.subr.bf16.mxu0 0
    %1683 = vmatpush1.bf16.msra.mxu0 0
    %1684 = vmatprep.subr.bf16.mxu0 0
    %1685 = vmatpush1.bf16.msra.mxu0 0
    %1686 = vmatprep.subr.bf16.mxu0 0
    %1687 = vmatpush1.bf16.msra.mxu0 0
    %1688 = vmatprep.subr.bf16.mxu0 0
    %1689 = vmatpush1.bf16.msra.mxu0 0
    %1690 = vmatprep.subr.bf16.mxu0 0
    %1691 = vmatpush1.bf16.msra.mxu0 0
    %1692 = vmatprep.subr.bf16.mxu0 0
    %1693 = vmatpush1.bf16.msra.mxu0 0
    %1694 = vmatprep.mubr.bf16.mxu0 0
    %1695 = vmatmul.mubr.bf16.gmra.mrb[0].mxu0 %v1580
    %v1696 = vpop.f32.mrb[0].mxu0
    %v1697 = vadd.f32 0.0, %v1696
    %v1698 = vpop.f32.mrb[0].mxu0
    %v1699 = vadd.f32 0.0, %v1698
    %v1700 = vpop.f32.mrb[0].mxu0
    %v1701 = vadd.f32 0.0, %v1700
    %v1702 = vpop.f32.mrb[0].mxu0
    %v1703 = vadd.f32 0.0, %v1702
    %1704 = vmatprep.mubr.bf16.mxu0 0
    %1705 = vmatmul.mubr.bf16.gmra.mrb[0].mxu0 %v1583
    %v1706 = vpop.f32.mrb[0].mxu0
    %v1707 = vadd.f32 0.0, %v1706
    %v1708 = vpop.f32.mrb[0].mxu0
    %v1709 = vadd.f32 0.0, %v1708
    %v1710 = vpop.f32.mrb[0].mxu0
    %v1711 = vadd.f32 0.0, %v1710
    %v1712 = vpop.f32.mrb[0].mxu0
    %v1713 = vadd.f32 0.0, %v1712
    %1714 = vmatprep.mubr.bf16.mxu0 0
    %1715 = vmatmul.mubr.bf16.gmra.mrb[0].mxu0 %v1586
    %v1716 = vpop.f32.mrb[0].mxu0
    %v1717 = vadd.f32 0.0, %v1716
    %v1718 = vpop.f32.mrb[0].mxu0
    %v1719 = vadd.f32 0.0, %v1718
    %v1720 = vpop.f32.mrb[0].mxu0
    %v1721 = vadd.f32 0.0, %v1720
    %v1722 = vpop.f32.mrb[0].mxu0
    %v1723 = vadd.f32 0.0, %v1722
    %1724 = vmatprep.mubr.bf16.mxu0 0
    %1725 = vmatmul.mubr.bf16.gmra.mrb[0].mxu0 %v1589
    %v1726 = vpop.f32.mrb[0].mxu0
    %v1727 = vadd.f32 0.0, %v1726
    %v1728 = vpop.f32.mrb[0].mxu0
    %v1729 = vadd.f32 0.0, %v1728
    %v1730 = vpop.f32.mrb[0].mxu0
    %v1731 = vpop.f32.mrb[0].mxu0
    %1732 = vdwg.mxu0
    %v1733 = vadd.f32 %v1402, %v1626
    %v1734 = vadd.f32 %v1403, %v1628
    %v1735 = vadd.f32 %v1404, %v1697
    %v1736 = vadd.f32 %v1405, %v1699
    %v1737 = vadd.f32 %v1406, %v1630
    %v1738 = vadd.f32 %v1407, %v1632
    %v1739 = vadd.f32 %v1408, %v1701
    %v1740 = vadd.f32 %v1409, %v1703
    %v1741 = vadd.f32 %v1410, %v1636
    %v1742 = vadd.f32 %v1411, %v1638
    %v1743 = vadd.f32 %v1412, %v1707
    %v1744 = vadd.f32 %v1413, %v1709
    %v1745 = vadd.f32 %v1414, %v1640
    %v1746 = vadd.f32 %v1415, %v1642
    %v1747 = vadd.f32 %v1416, %v1711
    %v1748 = vadd.f32 %v1417, %v1713
    %v1749 = vadd.f32 %v1418, %v1646
    %v1750 = vadd.f32 %v1419, %v1648
    %v1751 = vadd.f32 %v1420, %v1717
    %v1752 = vadd.f32 %v1421, %v1719
    %v1753 = vadd.f32 %v1422, %v1650
    %v1754 = vadd.f32 %v1423, %v1652
    %v1755 = vadd.f32 %v1424, %v1721
    %v1756 = vadd.f32 %v1425, %v1723
    %v1757 = vadd.f32 %v1426, %v1656
    %v1758 = vadd.f32 %v1427, %v1658
    %v1759 = vadd.f32 %v1428, %v1727
    %v1760 = vadd.f32 %v1429, %v1729
    %v1761 = vld [vmem:[#allocation2] sm:$0xf]
    %v1763 = vlaneseq
    %v1764 = vshrl.u32 %v1763, 7
    %v1765 = vsub.s32 0, %v1764
    %v1766 = vrot.slane %v1761, %v1765
    %v1767 = vlaneseq
    %v1768 = vshrl.u32 %v1767, 7
    %v1769 = vsub.s32 1, %v1768
    %v1770 = vrot.slane %v1761, %v1769
    %v1771 = vlaneseq
    %v1772 = vshrl.u32 %v1771, 7
    %v1773 = vsub.s32 2, %v1772
    %v1774 = vrot.slane %v1761, %v1773
    %v1775 = vlaneseq
    %v1776 = vshrl.u32 %v1775, 7
    %v1777 = vsub.s32 3, %v1776
    %v1778 = vrot.slane %v1761, %v1777
    %v1783 = vadd.f32 %v1733, %v1766
    %v1784 = vadd.f32 %v1734, %v1770
    %v1785 = vadd.f32 %v1735, %v1774
    %v1786 = vadd.f32 %v1736, %v1778
    %v1787 = vadd.f32 %v1737, %v1766
    %v1788 = vadd.f32 %v1738, %v1770
    %v1789 = vadd.f32 %v1739, %v1774
    %v1790 = vadd.f32 %v1740, %v1778
    %v1791 = vadd.f32 %v1741, %v1766
    %v1792 = vadd.f32 %v1742, %v1770
    %v1793 = vadd.f32 %v1743, %v1774
    %v1794 = vadd.f32 %v1744, %v1778
    %v1795 = vadd.f32 %v1745, %v1766
    %v1796 = vadd.f32 %v1746, %v1770
    %v1797 = vadd.f32 %v1747, %v1774
    %v1798 = vadd.f32 %v1748, %v1778
    %v1799 = vadd.f32 %v1749, %v1766
    %v1800 = vadd.f32 %v1750, %v1770
    %v1801 = vadd.f32 %v1751, %v1774
    %v1802 = vadd.f32 %v1752, %v1778
    %v1803 = vadd.f32 %v1753, %v1766
    %v1804 = vadd.f32 %v1754, %v1770
    %v1805 = vadd.f32 %v1755, %v1774
    %v1806 = vadd.f32 %v1756, %v1778
    %v1807 = vadd.f32 %v1757, %v1766
    %v1808 = vadd.f32 %v1758, %v1770
    %v1809 = vadd.f32 %v1759, %v1774
    %v1810 = vadd.f32 %v1760, %v1778
    %v1811 = vmax.f32 %v1783, 0.0
    %v1812 = vmax.f32 %v1784, 0.0
    %v1813 = vmax.f32 %v1785, 0.0
    %v1814 = vmax.f32 %v1786, 0.0
    %v1815 = vmax.f32 %v1787, 0.0
    %v1816 = vmax.f32 %v1788, 0.0
    %v1817 = vmax.f32 %v1789, 0.0
    %v1818 = vmax.f32 %v1790, 0.0
    %v1819 = vmax.f32 %v1791, 0.0
    %v1820 = vmax.f32 %v1792, 0.0
    %v1821 = vmax.f32 %v1793, 0.0
    %v1822 = vmax.f32 %v1794, 0.0
    %v1823 = vmax.f32 %v1795, 0.0
    %v1824 = vmax.f32 %v1796, 0.0
    %v1825 = vmax.f32 %v1797, 0.0
    %v1826 = vmax.f32 %v1798, 0.0
    %v1827 = vmax.f32 %v1799, 0.0
    %v1828 = vmax.f32 %v1800, 0.0
    %v1829 = vmax.f32 %v1801, 0.0
    %v1830 = vmax.f32 %v1802, 0.0
    %v1831 = vmax.f32 %v1803, 0.0
    %v1832 = vmax.f32 %v1804, 0.0
    %v1833 = vmax.f32 %v1805, 0.0
    %v1834 = vmax.f32 %v1806, 0.0
    %v1835 = vmax.f32 %v1807, 0.0
    %v1836 = vmax.f32 %v1808, 0.0
    %v1837 = vmax.f32 %v1809, 0.0
    %v1838 = vmax.f32 %v1810, 0.0
    %v1839 = vmax.f32 %v1811, %v1813
    %v1840 = vmax.f32 %v1812, %v1814
    %v1841 = vmax.f32 %v1815, %v1817
    %v1842 = vmax.f32 %v1816, %v1818
    %v1843 = vmax.f32 %v1819, %v1821
    %v1844 = vmax.f32 %v1820, %v1822
    %v1845 = vmax.f32 %v1823, %v1825
    %v1846 = vmax.f32 %v1824, %v1826
    %v1847 = vmax.f32 %v1827, %v1829
    %v1848 = vmax.f32 %v1828, %v1830
    %v1849 = vmax.f32 %v1831, %v1833
    %v1850 = vmax.f32 %v1832, %v1834
    %v1851 = vmax.f32 %v1835, %v1837
    %v1852 = vmax.f32 %v1836, %v1838
    %v1867 = vcombine.low %v1839, %v1840
    %v1868 = vcombine.high %v1839, %v1840
    %v1869 = vcombine.low %v1841, %v1842
    %v1870 = vcombine.high %v1841, %v1842
    %v1871 = vcombine.low %v1843, %v1844
    %v1872 = vcombine.high %v1843, %v1844
    %v1873 = vcombine.low %v1845, %v1846
    %v1874 = vcombine.high %v1845, %v1846
    %v1875 = vcombine.low %v1847, %v1848
    %v1876 = vcombine.high %v1847, %v1848
    %v1877 = vcombine.low %v1849, %v1850
    %v1878 = vcombine.high %v1849, %v1850
    %v1879 = vcombine.low %v1851, %v1852
    %v1880 = vcombine.high %v1851, %v1852
    %v1895 = vrot.slane %v1867, 6
    %v1896 = vrot.slane %v1895, 4
    %v1897 = vrot.slane %v1868, 6
    %v1898 = vrot.slane %v1897, 4
    %v1899 = vrot.slane %v1869, 6
    %v1900 = vrot.slane %v1899, 4
    %v1901 = vrot.slane %v1870, 6
    %v1902 = vrot.slane %v1901, 4
    %v1903 = vrot.slane %v1871, 6
    %v1904 = vrot.slane %v1903, 4
    %v1905 = vrot.slane %v1872, 6
    %v1906 = vrot.slane %v1905, 4
    %v1907 = vrot.slane %v1873, 6
    %v1908 = vrot.slane %v1907, 4
    %v1909 = vrot.slane %v1874, 6
    %v1910 = vrot.slane %v1909, 4
    %v1911 = vrot.slane %v1875, 6
    %v1912 = vrot.slane %v1911, 4
    %v1913 = vrot.slane %v1876, 6
    %v1914 = vrot.slane %v1913, 4
    %v1915 = vrot.slane %v1877, 6
    %v1916 = vrot.slane %v1915, 4
    %v1917 = vrot.slane %v1878, 6
    %v1918 = vrot.slane %v1917, 4
    %v1919 = vrot.slane %v1879, 6
    %v1920 = vrot.slane %v1919, 4
    %v1921 = vrot.slane %v1880, 6
    %v1922 = vrot.slane %v1921, 4
    %v1937 = vmax.f32 %v1867, %v1896
    %v1938 = vmax.f32 %v1868, %v1898
    %v1939 = vmax.f32 %v1869, %v1900
    %v1940 = vmax.f32 %v1870, %v1902
    %v1941 = vmax.f32 %v1871, %v1904
    %v1942 = vmax.f32 %v1872, %v1906
    %v1943 = vmax.f32 %v1873, %v1908
    %v1944 = vmax.f32 %v1874, %v1910
    %v1945 = vmax.f32 %v1875, %v1912
    %v1946 = vmax.f32 %v1876, %v1914
    %v1947 = vmax.f32 %v1877, %v1916
    %v1948 = vmax.f32 %v1878, %v1918
    %v1949 = vmax.f32 %v1879, %v1920
    %v1950 = vmax.f32 %v1880, %v1922
    %v1966 = vunpack.c.l.s4 1983009808
    %v1967 = vunpack.c.0.s8 %v1966
    %v1968 = vlaneseq
    %v1969 = vshrl.u32 %v1968, 7
    %v1970 = vsub.s32 %v1967, %v1969
    %v1971 = vrot.slane %v1937, %v1970
    %v1973 = vunpack.c.l.s4 1983009808
    %v1974 = vunpack.c.0.s8 %v1973
    %v1975 = vlaneseq
    %v1976 = vshrl.u32 %v1975, 7
    %v1977 = vsub.s32 %v1974, %v1976
    %v1978 = vrot.slane %v1938, %v1977
    %v1980 = vunpack.c.l.s4 1983009808
    %v1981 = vunpack.c.0.s8 %v1980
    %v1982 = vlaneseq
    %v1983 = vshrl.u32 %v1982, 7
    %v1984 = vsub.s32 %v1981, %v1983
    %v1985 = vrot.slane %v1939, %v1984
    %v1987 = vunpack.c.l.s4 1983009808
    %v1988 = vunpack.c.0.s8 %v1987
    %v1989 = vlaneseq
    %v1990 = vshrl.u32 %v1989, 7
    %v1991 = vsub.s32 %v1988, %v1990
    %v1992 = vrot.slane %v1940, %v1991
    %v1994 = vunpack.c.l.s4 1983009808
    %v1995 = vunpack.c.0.s8 %v1994
    %v1996 = vlaneseq
    %v1997 = vshrl.u32 %v1996, 7
    %v1998 = vsub.s32 %v1995, %v1997
    %v1999 = vrot.slane %v1941, %v1998
    %v2001 = vunpack.c.l.s4 1983009808
    %v2002 = vunpack.c.0.s8 %v2001
    %v2003 = vlaneseq
    %v2004 = vshrl.u32 %v2003, 7
    %v2005 = vsub.s32 %v2002, %v2004
    %v2006 = vrot.slane %v1942, %v2005
    %v2008 = vunpack.c.l.s4 1983009808
    %v2009 = vunpack.c.0.s8 %v2008
    %v2010 = vlaneseq
    %v2011 = vshrl.u32 %v2010, 7
    %v2012 = vsub.s32 %v2009, %v2011
    %v2013 = vrot.slane %v1943, %v2012
    %v2015 = vunpack.c.l.s4 1983009808
    %v2016 = vunpack.c.0.s8 %v2015
    %v2017 = vlaneseq
    %v2018 = vshrl.u32 %v2017, 7
    %v2019 = vsub.s32 %v2016, %v2018
    %v2020 = vrot.slane %v1944, %v2019
    %v2022 = vunpack.c.l.s4 1983009808
    %v2023 = vunpack.c.0.s8 %v2022
    %v2024 = vlaneseq
    %v2025 = vshrl.u32 %v2024, 7
    %v2026 = vsub.s32 %v2023, %v2025
    %v2027 = vrot.slane %v1945, %v2026
    %v2029 = vunpack.c.l.s4 1983009808
    %v2030 = vunpack.c.0.s8 %v2029
    %v2031 = vlaneseq
    %v2032 = vshrl.u32 %v2031, 7
    %v2033 = vsub.s32 %v2030, %v2032
    %v2034 = vrot.slane %v1946, %v2033
    %v2036 = vunpack.c.l.s4 1983009808
    %v2037 = vunpack.c.0.s8 %v2036
    %v2038 = vlaneseq
    %v2039 = vshrl.u32 %v2038, 7
    %v2040 = vsub.s32 %v2037, %v2039
    %v2041 = vrot.slane %v1947, %v2040
    %v2043 = vunpack.c.l.s4 1983009808
    %v2044 = vunpack.c.0.s8 %v2043
    %v2045 = vlaneseq
    %v2046 = vshrl.u32 %v2045, 7
    %v2047 = vsub.s32 %v2044, %v2046
    %v2048 = vrot.slane %v1948, %v2047
    %v2050 = vunpack.c.l.s4 1983009808
    %v2051 = vunpack.c.0.s8 %v2050
    %v2052 = vlaneseq
    %v2053 = vshrl.u32 %v2052, 7
    %v2054 = vsub.s32 %v2051, %v2053
    %v2055 = vrot.slane %v1949, %v2054
    %v2057 = vunpack.c.l.s4 1983009808
    %v2058 = vunpack.c.0.s8 %v2057
    %v2059 = vlaneseq
    %v2060 = vshrl.u32 %v2059, 7
    %v2061 = vsub.s32 %v2058, %v2060
    %v2062 = vrot.slane %v1950, %v2061
    %v2063 = vcombine.low %v1971, %v1978
    %v2064 = vcombine.low %v1985, %v1992
    %v2066 = vunpack.c.l.s4 1983009808
    %v2067 = vunpack.c.0.s8 %v2066
    %v2068 = vlaneseq
    %v2069 = vshrl.u32 %v2068, 7
    %v2070 = vsub.s32 %v2067, %v2069
    %v2071 = vrot.slane %v2063, %v2070
    %v2073 = vunpack.c.l.s4 1983009808
    %v2074 = vunpack.c.0.s8 %v2073
    %v2075 = vlaneseq
    %v2076 = vshrl.u32 %v2075, 7
    %v2077 = vsub.s32 %v2074, %v2076
    %v2078 = vrot.slane %v2064, %v2077
    %v2079 = vcombine.low %v2071, %v2078
    %v2080 = vcombine.high %v2071, %v2078
    %v2081 = vcombine.low %v1999, %v2006
    %v2082 = vcombine.low %v2013, %v2020
    %v2084 = vunpack.c.l.s4 1983009808
    %v2085 = vunpack.c.0.s8 %v2084
    %v2086 = vlaneseq
    %v2087 = vshrl.u32 %v2086, 7
    %v2088 = vsub.s32 %v2085, %v2087
    %v2089 = vrot.slane %v2081, %v2088
    %v2091 = vunpack.c.l.s4 1983009808
    %v2092 = vunpack.c.0.s8 %v2091
    %v2093 = vlaneseq
    %v2094 = vshrl.u32 %v2093, 7
    %v2095 = vsub.s32 %v2092, %v2094
    %v2096 = vrot.slane %v2082, %v2095
    %v2097 = vcombine.low %v2089, %v2096
    %v2098 = vcombine.high %v2089, %v2096
    %v2099 = vcombine.low %v2027, %v2034
    %v2100 = vcombine.low %v2041, %v2048
    %v2102 = vunpack.c.l.s4 1983009808
    %v2103 = vunpack.c.0.s8 %v2102
    %v2104 = vlaneseq
    %v2105 = vshrl.u32 %v2104, 7
    %v2106 = vsub.s32 %v2103, %v2105
    %v2107 = vrot.slane %v2099, %v2106
    %v2109 = vunpack.c.l.s4 1983009808
    %v2110 = vunpack.c.0.s8 %v2109
    %v2111 = vlaneseq
    %v2112 = vshrl.u32 %v2111, 7
    %v2113 = vsub.s32 %v2110, %v2112
    %v2114 = vrot.slane %v2100, %v2113
    %v2115 = vcombine.low %v2107, %v2114
    %v2116 = vcombine.high %v2107, %v2114
    %v2117 = vcombine.low %v2055, %v2062
    %v2119 = vunpack.c.l.s4 1983009808
    %v2120 = vunpack.c.0.s8 %v2119
    %v2121 = vlaneseq
    %v2122 = vshrl.u32 %v2121, 7
    %v2123 = vsub.s32 %v2120, %v2122
    %v2124 = vrot.slane %v2117, %v2123
    %v2125 = vcombine.high %v2124, %v2124
    %v2134 = vpack.c.bf16 %v2097, %v2079
    %v2135 = vpack.c.bf16 %v2098, %v2080
    %v2136 = vpack.c.bf16 %v2124, %v2115
    %v2137 = vpack.c.bf16 %v2125, %v2116
    %v2138 = vld [vmem:[#allocation5] sm:$0xff]
    %v2139 = vld [vmem:[#allocation5 + $0x8] sm:$0xff]
    %v2140 = vld [vmem:[#allocation5 + $0x10] sm:$0xff]
    %v2141 = vld [vmem:[#allocation5 + $0x18] sm:$0xff]
    %v2142 = vld [vmem:[#allocation5 + $0x20] sm:$0xff]
    %v2143 = vld [vmem:[#allocation5 + $0x28] sm:$0xff]
    %v2144 = vld [vmem:[#allocation5 + $0x30] sm:$0xff]
    %v2145 = vld [vmem:[#allocation5 + $0x38] sm:$0xff]
    %v2146 = vld [vmem:[#allocation5 + $0x40] sm:$0xff]
    %v2147 = vld [vmem:[#allocation5 + $0x48] sm:$0xff]
    %v2148 = vld [vmem:[#allocation5 + $0x50] sm:$0xff]
    %v2149 = vld [vmem:[#allocation5 + $0x58] sm:$0xff]
    %v2150 = vld [vmem:[#allocation5 + $0x60] sm:$0xff]
    %v2151 = vld [vmem:[#allocation5 + $0x68] sm:$0xff]
    %v2152 = vld [vmem:[#allocation5 + $0x70] sm:$0xff]
    %v2153 = vld [vmem:[#allocation5 + $0x78] sm:$0xff]
    %v2154 = vld [vmem:[#allocation5 + $0x80] sm:$0xff]
    %v2155 = vld [vmem:[#allocation5 + $0x88] sm:$0xff]
    %v2156 = vld [vmem:[#allocation5 + $0x90] sm:$0xff]
    %v2157 = vld [vmem:[#allocation5 + $0x98] sm:$0xff]
    %v2158 = vld [vmem:[#allocation5 + $0xa0] sm:$0xff]
    %v2159 = vld [vmem:[#allocation5 + $0xa8] sm:$0xff]
    %v2160 = vld [vmem:[#allocation5 + $0xb0] sm:$0xff]
    %v2161 = vld [vmem:[#allocation5 + $0xb8] sm:$0xff]
    %v2162 = vld [vmem:[#allocation5 + $0xc0] sm:$0xff]
    %v2163 = vld [vmem:[#allocation5 + $0xc8] sm:$0xff]
    %v2164 = vld [vmem:[#allocation5 + $0xd0] sm:$0xff]
    %v2165 = vld [vmem:[#allocation5 + $0xd8] sm:$0xff]
    %v2166 = vld [vmem:[#allocation5 + $0xe0] sm:$0xff]
    %v2167 = vld [vmem:[#allocation5 + $0xe8] sm:$0xff]
    %v2168 = vld [vmem:[#allocation5 + $0xf0] sm:$0xff]
    %v2169 = vld [vmem:[#allocation5 + $0xf8] sm:$0xff]
    %v2170 = vld [vmem:[#allocation5 + $0x100] sm:$0xff]
    %v2171 = vld [vmem:[#allocation5 + $0x108] sm:$0xff]
    %v2172 = vld [vmem:[#allocation5 + $0x110] sm:$0xff]
    %v2173 = vld [vmem:[#allocation5 + $0x118] sm:$0xff]
    %v2174 = vld [vmem:[#allocation5 + $0x120] sm:$0xff]
    %v2175 = vld [vmem:[#allocation5 + $0x128] sm:$0xff]
    %v2176 = vld [vmem:[#allocation5 + $0x130] sm:$0xff]
    %v2177 = vld [vmem:[#allocation5 + $0x138] sm:$0xff]
    %v2178 = vld [vmem:[#allocation5 + $0x140] sm:$0xff]
    %v2179 = vld [vmem:[#allocation5 + $0x148] sm:$0xff]
    %v2180 = vld [vmem:[#allocation5 + $0x150] sm:$0xff]
    %v2181 = vld [vmem:[#allocation5 + $0x158] sm:$0xff]
    %v2182 = vld [vmem:[#allocation5 + $0x160] sm:$0xff]
    %v2183 = vld [vmem:[#allocation5 + $0x168] sm:$0xff]
    %v2184 = vld [vmem:[#allocation5 + $0x170] sm:$0xff]
    %v2185 = vld [vmem:[#allocation5 + $0x178] sm:$0xff]
    %v2186 = vld [vmem:[#allocation5 + $0x180] sm:$0xff]
    %v2187 = vld [vmem:[#allocation5 + $0x188] sm:$0xff]
    %v2188 = vld [vmem:[#allocation5 + $0x190] sm:$0xff]
    %v2189 = vld [vmem:[#allocation5 + $0x198] sm:$0xff]
    %v2190 = vld [vmem:[#allocation5 + $0x1a0] sm:$0xff]
    %v2191 = vld [vmem:[#allocation5 + $0x1a8] sm:$0xff]
    %v2192 = vld [vmem:[#allocation5 + $0x1b0] sm:$0xff]
    %v2193 = vld [vmem:[#allocation5 + $0x1b8] sm:$0xff]
    %v2194 = vld [vmem:[#allocation5 + $0x1c0] sm:$0xff]
    %v2195 = vld [vmem:[#allocation5 + $0x1c8] sm:$0xff]
    %v2196 = vld [vmem:[#allocation5 + $0x1d0] sm:$0xff]
    %v2197 = vld [vmem:[#allocation5 + $0x1d8] sm:$0xff]
    %v2198 = vld [vmem:[#allocation5 + $0x1e0] sm:$0xff]
    %v2199 = vld [vmem:[#allocation5 + $0x1e8] sm:$0xff]
    %v2200 = vld [vmem:[#allocation5 + $0x1f0] sm:$0xff]
    %v2201 = vld [vmem:[#allocation5 + $0x1f8] sm:$0xff]
    %s2202 = scalar_lea.vmem [#allocation5], 512
    %v2203 = vld [vmem:[%s2202] sm:$0xff]
    %v2204 = vld [vmem:[%s2202 + $0x8] sm:$0xff]
    %v2205 = vld [vmem:[%s2202 + $0x10] sm:$0xff]
    %v2206 = vld [vmem:[%s2202 + $0x18] sm:$0xff]
    %v2207 = vld [vmem:[%s2202 + $0x20] sm:$0xff]
    %v2208 = vld [vmem:[%s2202 + $0x28] sm:$0xff]
    %v2209 = vld [vmem:[%s2202 + $0x30] sm:$0xff]
    %v2210 = vld [vmem:[%s2202 + $0x38] sm:$0xff]
    %v2211 = vld [vmem:[%s2202 + $0x40] sm:$0xff]
    %v2212 = vld [vmem:[%s2202 + $0x48] sm:$0xff]
    %v2213 = vld [vmem:[%s2202 + $0x50] sm:$0xff]
    %v2214 = vld [vmem:[%s2202 + $0x58] sm:$0xff]
    %v2215 = vld [vmem:[%s2202 + $0x60] sm:$0xff]
    %v2216 = vld [vmem:[%s2202 + $0x68] sm:$0xff]
    %v2217 = vld [vmem:[%s2202 + $0x70] sm:$0xff]
    %v2218 = vld [vmem:[%s2202 + $0x78] sm:$0xff]
    %v2219 = vld [vmem:[%s2202 + $0x80] sm:$0xff]
    %v2220 = vld [vmem:[%s2202 + $0x88] sm:$0xff]
    %v2221 = vld [vmem:[%s2202 + $0x90] sm:$0xff]
    %v2222 = vld [vmem:[%s2202 + $0x98] sm:$0xff]
    %v2223 = vld [vmem:[%s2202 + $0xa0] sm:$0xff]
    %v2224 = vld [vmem:[%s2202 + $0xa8] sm:$0xff]
    %v2225 = vld [vmem:[%s2202 + $0xb0] sm:$0xff]
    %v2226 = vld [vmem:[%s2202 + $0xb8] sm:$0xff]
    %v2227 = vld [vmem:[%s2202 + $0xc0] sm:$0xff]
    %v2228 = vld [vmem:[%s2202 + $0xc8] sm:$0xff]
    %v2229 = vld [vmem:[%s2202 + $0xd0] sm:$0xff]
    %v2230 = vld [vmem:[%s2202 + $0xd8] sm:$0xff]
    %v2231 = vld [vmem:[%s2202 + $0xe0] sm:$0xff]
    %v2232 = vld [vmem:[%s2202 + $0xe8] sm:$0xff]
    %v2233 = vld [vmem:[%s2202 + $0xf0] sm:$0xff]
    %v2234 = vld [vmem:[%s2202 + $0xf8] sm:$0xff]
    %v2235 = vld [vmem:[%s2202 + $0x100] sm:$0xff]
    %v2236 = vld [vmem:[%s2202 + $0x108] sm:$0xff]
    %v2237 = vld [vmem:[%s2202 + $0x110] sm:$0xff]
    %v2238 = vld [vmem:[%s2202 + $0x118] sm:$0xff]
    %v2239 = vld [vmem:[%s2202 + $0x120] sm:$0xff]
    %v2240 = vld [vmem:[%s2202 + $0x128] sm:$0xff]
    %v2241 = vld [vmem:[%s2202 + $0x130] sm:$0xff]
    %v2242 = vld [vmem:[%s2202 + $0x138] sm:$0xff]
    %v2243 = vld [vmem:[%s2202 + $0x140] sm:$0xff]
    %v2244 = vld [vmem:[%s2202 + $0x148] sm:$0xff]
    %v2245 = vld [vmem:[%s2202 + $0x150] sm:$0xff]
    %v2246 = vld [vmem:[%s2202 + $0x158] sm:$0xff]
    %v2247 = vld [vmem:[%s2202 + $0x160] sm:$0xff]
    %v2248 = vld [vmem:[%s2202 + $0x168] sm:$0xff]
    %v2249 = vld [vmem:[%s2202 + $0x170] sm:$0xff]
    %v2250 = vld [vmem:[%s2202 + $0x178] sm:$0xff]
    %v2251 = vld [vmem:[%s2202 + $0x180] sm:$0xff]
    %v2252 = vld [vmem:[%s2202 + $0x188] sm:$0xff]
    %v2253 = vld [vmem:[%s2202 + $0x190] sm:$0xff]
    %v2254 = vld [vmem:[%s2202 + $0x198] sm:$0xff]
    %v2255 = vld [vmem:[%s2202 + $0x1a0] sm:$0xff]
    %v2256 = vld [vmem:[%s2202 + $0x1a8] sm:$0xff]
    %v2257 = vld [vmem:[%s2202 + $0x1b0] sm:$0xff]
    %v2258 = vld [vmem:[%s2202 + $0x1b8] sm:$0xff]
    %v2259 = vld [vmem:[%s2202 + $0x1c0] sm:$0xff]
    %v2260 = vld [vmem:[%s2202 + $0x1c8] sm:$0xff]
    %v2261 = vld [vmem:[%s2202 + $0x1d0] sm:$0xff]
    %v2262 = vld [vmem:[%s2202 + $0x1d8] sm:$0xff]
    %v2263 = vld [vmem:[%s2202 + $0x1e0] sm:$0xff]
    %v2264 = vld [vmem:[%s2202 + $0x1e8] sm:$0xff]
    %v2265 = vld [vmem:[%s2202 + $0x1f0] sm:$0xff]
    %v2266 = vld [vmem:[%s2202 + $0x1f8] sm:$0xff]
    %v2271 = vrot.slane %v2134, 1
    %v2272 = vrot.slane %v2136, 1
    %v2273 = vsel %vm202, %v2271, %v2272
    %v2274 = vrot.slane %v2135, 1
    %v2275 = vrot.slane %v2137, 1
    %v2276 = vsel %vm202, %v2274, %v2275
    %v2345 = vunpack.c.l.b16 %v2203
    %v2346 = vunpack.c.h.b16 %v2203
    %v2347 = vunpack.c.l.b16 %v2204
    %v2348 = vunpack.c.h.b16 %v2204
    %v2349 = vunpack.c.l.b16 %v2205
    %v2350 = vunpack.c.h.b16 %v2205
    %v2351 = vunpack.c.l.b16 %v2206
    %v2352 = vunpack.c.h.b16 %v2206
    %v2353 = vunpack.c.l.b16 %v2207
    %v2354 = vunpack.c.h.b16 %v2207
    %v2355 = vunpack.c.l.b16 %v2208
    %v2356 = vunpack.c.h.b16 %v2208
    %v2357 = vunpack.c.l.b16 %v2209
    %v2358 = vunpack.c.h.b16 %v2209
    %v2359 = vunpack.c.l.b16 %v2210
    %v2360 = vunpack.c.h.b16 %v2210
    %v2361 = vunpack.c.l.b16 %v2211
    %v2362 = vunpack.c.h.b16 %v2211
    %v2363 = vunpack.c.l.b16 %v2212
    %v2364 = vunpack.c.h.b16 %v2212
    %v2365 = vunpack.c.l.b16 %v2213
    %v2366 = vunpack.c.h.b16 %v2213
    %v2367 = vunpack.c.l.b16 %v2214
    %v2368 = vunpack.c.h.b16 %v2214
    %v2369 = vunpack.c.l.b16 %v2215
    %v2370 = vunpack.c.h.b16 %v2215
    %v2371 = vunpack.c.l.b16 %v2216
    %v2372 = vunpack.c.h.b16 %v2216
    %v2373 = vunpack.c.l.b16 %v2217
    %v2374 = vunpack.c.h.b16 %v2217
    %v2375 = vunpack.c.l.b16 %v2218
    %v2376 = vunpack.c.h.b16 %v2218
    %v2377 = vunpack.c.l.b16 %v2219
    %v2378 = vunpack.c.h.b16 %v2219
    %v2379 = vunpack.c.l.b16 %v2220
    %v2380 = vunpack.c.h.b16 %v2220
    %v2381 = vunpack.c.l.b16 %v2221
    %v2382 = vunpack.c.h.b16 %v2221
    %v2383 = vunpack.c.l.b16 %v2222
    %v2384 = vunpack.c.h.b16 %v2222
    %v2385 = vunpack.c.l.b16 %v2223
    %v2386 = vunpack.c.h.b16 %v2223
    %v2387 = vunpack.c.l.b16 %v2224
    %v2388 = vunpack.c.h.b16 %v2224
    %v2389 = vunpack.c.l.b16 %v2225
    %v2390 = vunpack.c.h.b16 %v2225
    %v2391 = vunpack.c.l.b16 %v2226
    %v2392 = vunpack.c.h.b16 %v2226
    %v2393 = vunpack.c.l.b16 %v2227
    %v2394 = vunpack.c.h.b16 %v2227
    %v2395 = vunpack.c.l.b16 %v2228
    %v2396 = vunpack.c.h.b16 %v2228
    %v2397 = vunpack.c.l.b16 %v2229
    %v2398 = vunpack.c.h.b16 %v2229
    %v2399 = vunpack.c.l.b16 %v2230
    %v2400 = vunpack.c.h.b16 %v2230
    %v2401 = vunpack.c.l.b16 %v2231
    %v2402 = vunpack.c.h.b16 %v2231
    %v2403 = vunpack.c.l.b16 %v2232
    %v2404 = vunpack.c.h.b16 %v2232
    %v2405 = vunpack.c.l.b16 %v2233
    %v2406 = vunpack.c.h.b16 %v2233
    %v2407 = vunpack.c.l.b16 %v2234
    %v2408 = vunpack.c.h.b16 %v2234
    %v2409 = vunpack.c.l.b16 %v2235
    %v2410 = vunpack.c.h.b16 %v2235
    %v2411 = vunpack.c.l.b16 %v2236
    %v2412 = vunpack.c.h.b16 %v2236
    %v2413 = vunpack.c.l.b16 %v2237
    %v2414 = vunpack.c.h.b16 %v2237
    %v2415 = vunpack.c.l.b16 %v2238
    %v2416 = vunpack.c.h.b16 %v2238
    %v2417 = vunpack.c.l.b16 %v2239
    %v2418 = vunpack.c.h.b16 %v2239
    %v2419 = vunpack.c.l.b16 %v2240
    %v2420 = vunpack.c.h.b16 %v2240
    %v2421 = vunpack.c.l.b16 %v2241
    %v2422 = vunpack.c.h.b16 %v2241
    %v2423 = vunpack.c.l.b16 %v2242
    %v2424 = vunpack.c.h.b16 %v2242
    %v2425 = vunpack.c.l.b16 %v2243
    %v2426 = vunpack.c.h.b16 %v2243
    %v2427 = vunpack.c.l.b16 %v2244
    %v2428 = vunpack.c.h.b16 %v2244
    %v2429 = vunpack.c.l.b16 %v2245
    %v2430 = vunpack.c.h.b16 %v2245
    %v2431 = vunpack.c.l.b16 %v2246
    %v2432 = vunpack.c.h.b16 %v2246
    %v2433 = vunpack.c.l.b16 %v2247
    %v2434 = vunpack.c.h.b16 %v2247
    %v2435 = vunpack.c.l.b16 %v2248
    %v2436 = vunpack.c.h.b16 %v2248
    %v2437 = vunpack.c.l.b16 %v2249
    %v2438 = vunpack.c.h.b16 %v2249
    %v2439 = vunpack.c.l.b16 %v2250
    %v2440 = vunpack.c.h.b16 %v2250
    %v2441 = vunpack.c.l.b16 %v2251
    %v2442 = vunpack.c.h.b16 %v2251
    %v2443 = vunpack.c.l.b16 %v2252
    %v2444 = vunpack.c.h.b16 %v2252
    %v2445 = vunpack.c.l.b16 %v2253
    %v2446 = vunpack.c.h.b16 %v2253
    %v2447 = vunpack.c.l.b16 %v2254
    %v2448 = vunpack.c.h.b16 %v2254
    %v2449 = vunpack.c.l.b16 %v2255
    %v2450 = vunpack.c.h.b16 %v2255
    %v2451 = vunpack.c.l.b16 %v2256
    %v2452 = vunpack.c.h.b16 %v2256
    %v2453 = vunpack.c.l.b16 %v2257
    %v2454 = vunpack.c.h.b16 %v2257
    %v2455 = vunpack.c.l.b16 %v2258
    %v2456 = vunpack.c.h.b16 %v2258
    %v2457 = vunpack.c.l.b16 %v2259
    %v2458 = vunpack.c.h.b16 %v2259
    %v2459 = vunpack.c.l.b16 %v2260
    %v2460 = vunpack.c.h.b16 %v2260
    %v2461 = vunpack.c.l.b16 %v2261
    %v2462 = vunpack.c.h.b16 %v2261
    %v2463 = vunpack.c.l.b16 %v2262
    %v2464 = vunpack.c.h.b16 %v2262
    %v2465 = vunpack.c.l.b16 %v2263
    %v2466 = vunpack.c.h.b16 %v2263
    %v2467 = vunpack.c.l.b16 %v2264
    %v2468 = vunpack.c.h.b16 %v2264
    %v2469 = vunpack.c.l.b16 %v2265
    %v2470 = vunpack.c.h.b16 %v2265
    %v2471 = vunpack.c.l.b16 %v2266
    %v2472 = vunpack.c.h.b16 %v2266
    %v2473 = vpack.c.b16 %v2349, %v2345
    %v2474 = vpack.c.b16 %v2350, %v2346
    %v2475 = vpack.c.b16 %v2351, %v2347
    %v2476 = vpack.c.b16 %v2352, %v2348
    %v2477 = vpack.c.b16 %v2357, %v2353
    %v2478 = vpack.c.b16 %v2358, %v2354
    %v2479 = vpack.c.b16 %v2359, %v2355
    %v2480 = vpack.c.b16 %v2360, %v2356
    %v2481 = vpack.c.b16 %v2365, %v2361
    %v2482 = vpack.c.b16 %v2366, %v2362
    %v2483 = vpack.c.b16 %v2367, %v2363
    %v2484 = vpack.c.b16 %v2368, %v2364
    %v2485 = vpack.c.b16 %v2373, %v2369
    %v2486 = vpack.c.b16 %v2374, %v2370
    %v2487 = vpack.c.b16 %v2375, %v2371
    %v2488 = vpack.c.b16 %v2376, %v2372
    %v2489 = vpack.c.b16 %v2381, %v2377
    %v2490 = vpack.c.b16 %v2382, %v2378
    %v2491 = vpack.c.b16 %v2383, %v2379
    %v2492 = vpack.c.b16 %v2384, %v2380
    %v2493 = vpack.c.b16 %v2389, %v2385
    %v2494 = vpack.c.b16 %v2390, %v2386
    %v2495 = vpack.c.b16 %v2391, %v2387
    %v2496 = vpack.c.b16 %v2392, %v2388
    %v2497 = vpack.c.b16 %v2397, %v2393
    %v2498 = vpack.c.b16 %v2398, %v2394
    %v2499 = vpack.c.b16 %v2399, %v2395
    %v2500 = vpack.c.b16 %v2400, %v2396
    %v2501 = vpack.c.b16 %v2405, %v2401
    %v2502 = vpack.c.b16 %v2406, %v2402
    %v2503 = vpack.c.b16 %v2407, %v2403
    %v2504 = vpack.c.b16 %v2408, %v2404
    %v2505 = vpack.c.b16 %v2413, %v2409
    %v2506 = vpack.c.b16 %v2414, %v2410
    %v2507 = vpack.c.b16 %v2415, %v2411
    %v2508 = vpack.c.b16 %v2416, %v2412
    %v2509 = vpack.c.b16 %v2421, %v2417
    %v2510 = vpack.c.b16 %v2422, %v2418
    %v2511 = vpack.c.b16 %v2423, %v2419
    %v2512 = vpack.c.b16 %v2424, %v2420
    %v2513 = vpack.c.b16 %v2429, %v2425
    %v2514 = vpack.c.b16 %v2430, %v2426
    %v2515 = vpack.c.b16 %v2431, %v2427
    %v2516 = vpack.c.b16 %v2432, %v2428
    %v2517 = vpack.c.b16 %v2437, %v2433
    %v2518 = vpack.c.b16 %v2438, %v2434
    %v2519 = vpack.c.b16 %v2439, %v2435
    %v2520 = vpack.c.b16 %v2440, %v2436
    %v2521 = vpack.c.b16 %v2445, %v2441
    %v2522 = vpack.c.b16 %v2446, %v2442
    %v2523 = vpack.c.b16 %v2447, %v2443
    %v2524 = vpack.c.b16 %v2448, %v2444
    %v2525 = vpack.c.b16 %v2453, %v2449
    %v2526 = vpack.c.b16 %v2454, %v2450
    %v2527 = vpack.c.b16 %v2455, %v2451
    %v2528 = vpack.c.b16 %v2456, %v2452
    %v2529 = vpack.c.b16 %v2461, %v2457
    %v2530 = vpack.c.b16 %v2462, %v2458
    %v2531 = vpack.c.b16 %v2463, %v2459
    %v2532 = vpack.c.b16 %v2464, %v2460
    %v2533 = vpack.c.b16 %v2469, %v2465
    %v2534 = vpack.c.b16 %v2470, %v2466
    %v2535 = vpack.c.b16 %v2471, %v2467
    %v2536 = vpack.c.b16 %v2472, %v2468
    %2601 = vmatprep.subr.bf16.mxu0 %v2474
    %2602 = vmatpush1.bf16.msra.mxu0 %v2473
    %2603 = vmatprep.subr.bf16.mxu0 %v2478
    %2604 = vmatpush1.bf16.msra.mxu0 %v2477
    %2605 = vmatprep.subr.bf16.mxu0 %v2482
    %2606 = vmatpush1.bf16.msra.mxu0 %v2481
    %2607 = vmatprep.subr.bf16.mxu0 %v2486
    %2608 = vmatpush1.bf16.msra.mxu0 %v2485
    %2609 = vmatprep.subr.bf16.mxu0 %v2490
    %2610 = vmatpush1.bf16.msra.mxu0 %v2489
    %2611 = vmatprep.subr.bf16.mxu0 %v2494
    %2612 = vmatpush1.bf16.msra.mxu0 %v2493
    %2613 = vmatprep.subr.bf16.mxu0 %v2498
    %2614 = vmatpush1.bf16.msra.mxu0 %v2497
    %2615 = vmatprep.subr.bf16.mxu0 %v2502
    %2616 = vmatpush1.bf16.msra.mxu0 %v2501
    %2617 = vmatprep.subr.bf16.mxu0 %v2506
    %2618 = vmatpush1.bf16.msra.mxu0 %v2505
    %2619 = vmatprep.subr.bf16.mxu0 %v2510
    %2620 = vmatpush1.bf16.msra.mxu0 %v2509
    %2621 = vmatprep.subr.bf16.mxu0 %v2514
    %2622 = vmatpush1.bf16.msra.mxu0 %v2513
    %2623 = vmatprep.subr.bf16.mxu0 %v2518
    %2624 = vmatpush1.bf16.msra.mxu0 %v2517
    %2625 = vmatprep.subr.bf16.mxu0 %v2522
    %2626 = vmatpush1.bf16.msra.mxu0 %v2521
    %2627 = vmatprep.subr.bf16.mxu0 %v2526
    %2628 = vmatpush1.bf16.msra.mxu0 %v2525
    %2629 = vmatprep.subr.bf16.mxu0 %v2530
    %2630 = vmatpush1.bf16.msra.mxu0 %v2529
    %2631 = vmatprep.subr.bf16.mxu0 %v2534
    %2632 = vmatpush1.bf16.msra.mxu0 %v2533
    %2633 = vmatprep.mubr.bf16.mxu0 %v2276
    %2634 = vmatmul.mubr.bf16.gmra.mrb[0].mxu0 %v2273
    %v2635 = vpop.f32.mrb[0].mxu0
    %v2636 = vadd.f32 0.0, %v2635
    %v2637 = vpop.f32.mrb[0].mxu0
    %v2638 = vadd.f32 0.0, %v2637
    %v2639 = vpop.f32.mrb[0].mxu0
    %v2640 = vadd.f32 0.0, %v2639
    %v2641 = vpop.f32.mrb[0].mxu0
    %v2642 = vadd.f32 0.0, %v2641
    %2643 = vmatprep.mubr.bf16.mxu0 %v2275
    %2644 = vmatmul.mubr.bf16.gmra.mrb[0].mxu0 %v2272
    %v2645 = vpop.f32.mrb[0].mxu0
    %v2646 = vadd.f32 0.0, %v2645
    %v2647 = vpop.f32.mrb[0].mxu0
    %v2648 = vadd.f32 0.0, %v2647
    %v2649 = vpop.f32.mrb[0].mxu0
    %v2650 = vpop.f32.mrb[0].mxu0
    %2651 = vdwg.mxu0
    %2652 = vmatprep.subr.bf16.mxu0 %v2476
    %2653 = vmatpush1.bf16.msra.mxu0 %v2475
    %2654 = vmatprep.subr.bf16.mxu0 %v2480
    %2655 = vmatpush1.bf16.msra.mxu0 %v2479
    %2656 = vmatprep.subr.bf16.mxu0 %v2484
    %2657 = vmatpush1.bf16.msra.mxu0 %v2483
    %2658 = vmatprep.subr.bf16.mxu0 %v2488
    %2659 = vmatpush1.bf16.msra.mxu0 %v2487
    %2660 = vmatprep.subr.bf16.mxu0 %v2492
    %2661 = vmatpush1.bf16.msra.mxu0 %v2491
    %2662 = vmatprep.subr.bf16.mxu0 %v2496
    %2663 = vmatpush1.bf16.msra.mxu0 %v2495
    %2664 = vmatprep.subr.bf16.mxu0 %v2500
    %2665 = vmatpush1.bf16.msra.mxu0 %v2499
    %2666 = vmatprep.subr.bf16.mxu0 %v2504
    %2667 = vmatpush1.bf16.msra.mxu0 %v2503
    %2668 = vmatprep.subr.bf16.mxu0 %v2508
    %2669 = vmatpush1.bf16.msra.mxu0 %v2507
    %2670 = vmatprep.subr.bf16.mxu0 %v2512
    %2671 = vmatpush1.bf16.msra.mxu0 %v2511
    %2672 = vmatprep.subr.bf16.mxu0 %v2516
    %2673 = vmatpush1.bf16.msra.mxu0 %v2515
    %2674 = vmatprep.subr.bf16.mxu0 %v2520
    %2675 = vmatpush1.bf16.msra.mxu0 %v2519
    %2676 = vmatprep.subr.bf16.mxu0 %v2524
    %2677 = vmatpush1.bf16.msra.mxu0 %v2523
    %2678 = vmatprep.subr.bf16.mxu0 %v2528
    %2679 = vmatpush1.bf16.msra.mxu0 %v2527
    %2680 = vmatprep.subr.bf16.mxu0 %v2532
    %2681 = vmatpush1.bf16.msra.mxu0 %v2531
    %2682 = vmatprep.subr.bf16.mxu0 %v2536
    %2683 = vmatpush1.bf16.msra.mxu0 %v2535
    %2684 = vmatprep.mubr.bf16.mxu0 %v2276
    %2685 = vmatmul.mubr.bf16.gmra.mrb[0].mxu0 %v2273
    %v2686 = vpop.f32.mrb[0].mxu0
    %v2687 = vadd.f32 0.0, %v2686
    %v2688 = vpop.f32.mrb[0].mxu0
    %v2689 = vadd.f32 0.0, %v2688
    %v2690 = vpop.f32.mrb[0].mxu0
    %v2691 = vadd.f32 0.0, %v2690
    %v2692 = vpop.f32.mrb[0].mxu0
    %v2693 = vadd.f32 0.0, %v2692
    %2694 = vmatprep.mubr.bf16.mxu0 %v2275
    %2695 = vmatmul.mubr.bf16.gmra.mrb[0].mxu0 %v2272
    %v2696 = vpop.f32.mrb[0].mxu0
    %v2697 = vadd.f32 0.0, %v2696
    %v2698 = vpop.f32.mrb[0].mxu0
    %v2699 = vadd.f32 0.0, %v2698
    %v2700 = vpop.f32.mrb[0].mxu0
    %v2701 = vpop.f32.mrb[0].mxu0
    %2702 = vdwg.mxu0
    %v2767 = vunpack.c.l.b16 %v2138
    %v2768 = vunpack.c.h.b16 %v2138
    %v2769 = vunpack.c.l.b16 %v2139
    %v2770 = vunpack.c.h.b16 %v2139
    %v2771 = vunpack.c.l.b16 %v2140
    %v2772 = vunpack.c.h.b16 %v2140
    %v2773 = vunpack.c.l.b16 %v2141
    %v2774 = vunpack.c.h.b16 %v2141
    %v2775 = vunpack.c.l.b16 %v2142
    %v2776 = vunpack.c.h.b16 %v2142
    %v2777 = vunpack.c.l.b16 %v2143
    %v2778 = vunpack.c.h.b16 %v2143
    %v2779 = vunpack.c.l.b16 %v2144
    %v2780 = vunpack.c.h.b16 %v2144
    %v2781 = vunpack.c.l.b16 %v2145
    %v2782 = vunpack.c.h.b16 %v2145
    %v2783 = vunpack.c.l.b16 %v2146
    %v2784 = vunpack.c.h.b16 %v2146
    %v2785 = vunpack.c.l.b16 %v2147
    %v2786 = vunpack.c.h.b16 %v2147
    %v2787 = vunpack.c.l.b16 %v2148
    %v2788 = vunpack.c.h.b16 %v2148
    %v2789 = vunpack.c.l.b16 %v2149
    %v2790 = vunpack.c.h.b16 %v2149
    %v2791 = vunpack.c.l.b16 %v2150
    %v2792 = vunpack.c.h.b16 %v2150
    %v2793 = vunpack.c.l.b16 %v2151
    %v2794 = vunpack.c.h.b16 %v2151
    %v2795 = vunpack.c.l.b16 %v2152
    %v2796 = vunpack.c.h.b16 %v2152
    %v2797 = vunpack.c.l.b16 %v2153
    %v2798 = vunpack.c.h.b16 %v2153
    %v2799 = vunpack.c.l.b16 %v2154
    %v2800 = vunpack.c.h.b16 %v2154
    %v2801 = vunpack.c.l.b16 %v2155
    %v2802 = vunpack.c.h.b16 %v2155
    %v2803 = vunpack.c.l.b16 %v2156
    %v2804 = vunpack.c.h.b16 %v2156
    %v2805 = vunpack.c.l.b16 %v2157
    %v2806 = vunpack.c.h.b16 %v2157
    %v2807 = vunpack.c.l.b16 %v2158
    %v2808 = vunpack.c.h.b16 %v2158
    %v2809 = vunpack.c.l.b16 %v2159
    %v2810 = vunpack.c.h.b16 %v2159
    %v2811 = vunpack.c.l.b16 %v2160
    %v2812 = vunpack.c.h.b16 %v2160
    %v2813 = vunpack.c.l.b16 %v2161
    %v2814 = vunpack.c.h.b16 %v2161
    %v2815 = vunpack.c.l.b16 %v2162
    %v2816 = vunpack.c.h.b16 %v2162
    %v2817 = vunpack.c.l.b16 %v2163
    %v2818 = vunpack.c.h.b16 %v2163
    %v2819 = vunpack.c.l.b16 %v2164
    %v2820 = vunpack.c.h.b16 %v2164
    %v2821 = vunpack.c.l.b16 %v2165
    %v2822 = vunpack.c.h.b16 %v2165
    %v2823 = vunpack.c.l.b16 %v2166
    %v2824 = vunpack.c.h.b16 %v2166
    %v2825 = vunpack.c.l.b16 %v2167
    %v2826 = vunpack.c.h.b16 %v2167
    %v2827 = vunpack.c.l.b16 %v2168
    %v2828 = vunpack.c.h.b16 %v2168
    %v2829 = vunpack.c.l.b16 %v2169
    %v2830 = vunpack.c.h.b16 %v2169
    %v2831 = vunpack.c.l.b16 %v2170
    %v2832 = vunpack.c.h.b16 %v2170
    %v2833 = vunpack.c.l.b16 %v2171
    %v2834 = vunpack.c.h.b16 %v2171
    %v2835 = vunpack.c.l.b16 %v2172
    %v2836 = vunpack.c.h.b16 %v2172
    %v2837 = vunpack.c.l.b16 %v2173
    %v2838 = vunpack.c.h.b16 %v2173
    %v2839 = vunpack.c.l.b16 %v2174
    %v2840 = vunpack.c.h.b16 %v2174
    %v2841 = vunpack.c.l.b16 %v2175
    %v2842 = vunpack.c.h.b16 %v2175
    %v2843 = vunpack.c.l.b16 %v2176
    %v2844 = vunpack.c.h.b16 %v2176
    %v2845 = vunpack.c.l.b16 %v2177
    %v2846 = vunpack.c.h.b16 %v2177
    %v2847 = vunpack.c.l.b16 %v2178
    %v2848 = vunpack.c.h.b16 %v2178
    %v2849 = vunpack.c.l.b16 %v2179
    %v2850 = vunpack.c.h.b16 %v2179
    %v2851 = vunpack.c.l.b16 %v2180
    %v2852 = vunpack.c.h.b16 %v2180
    %v2853 = vunpack.c.l.b16 %v2181
    %v2854 = vunpack.c.h.b16 %v2181
    %v2855 = vunpack.c.l.b16 %v2182
    %v2856 = vunpack.c.h.b16 %v2182
    %v2857 = vunpack.c.l.b16 %v2183
    %v2858 = vunpack.c.h.b16 %v2183
    %v2859 = vunpack.c.l.b16 %v2184
    %v2860 = vunpack.c.h.b16 %v2184
    %v2861 = vunpack.c.l.b16 %v2185
    %v2862 = vunpack.c.h.b16 %v2185
    %v2863 = vunpack.c.l.b16 %v2186
    %v2864 = vunpack.c.h.b16 %v2186
    %v2865 = vunpack.c.l.b16 %v2187
    %v2866 = vunpack.c.h.b16 %v2187
    %v2867 = vunpack.c.l.b16 %v2188
    %v2868 = vunpack.c.h.b16 %v2188
    %v2869 = vunpack.c.l.b16 %v2189
    %v2870 = vunpack.c.h.b16 %v2189
    %v2871 = vunpack.c.l.b16 %v2190
    %v2872 = vunpack.c.h.b16 %v2190
    %v2873 = vunpack.c.l.b16 %v2191
    %v2874 = vunpack.c.h.b16 %v2191
    %v2875 = vunpack.c.l.b16 %v2192
    %v2876 = vunpack.c.h.b16 %v2192
    %v2877 = vunpack.c.l.b16 %v2193
    %v2878 = vunpack.c.h.b16 %v2193
    %v2879 = vunpack.c.l.b16 %v2194
    %v2880 = vunpack.c.h.b16 %v2194
    %v2881 = vunpack.c.l.b16 %v2195
    %v2882 = vunpack.c.h.b16 %v2195
    %v2883 = vunpack.c.l.b16 %v2196
    %v2884 = vunpack.c.h.b16 %v2196
    %v2885 = vunpack.c.l.b16 %v2197
    %v2886 = vunpack.c.h.b16 %v2197
    %v2887 = vunpack.c.l.b16 %v2198
    %v2888 = vunpack.c.h.b16 %v2198
    %v2889 = vunpack.c.l.b16 %v2199
    %v2890 = vunpack.c.h.b16 %v2199
    %v2891 = vunpack.c.l.b16 %v2200
    %v2892 = vunpack.c.h.b16 %v2200
    %v2893 = vunpack.c.l.b16 %v2201
    %v2894 = vunpack.c.h.b16 %v2201
    %v2895 = vpack.c.b16 %v2771, %v2767
    %v2896 = vpack.c.b16 %v2772, %v2768
    %v2897 = vpack.c.b16 %v2773, %v2769
    %v2898 = vpack.c.b16 %v2774, %v2770
    %v2899 = vpack.c.b16 %v2779, %v2775
    %v2900 = vpack.c.b16 %v2780, %v2776
    %v2901 = vpack.c.b16 %v2781, %v2777
    %v2902 = vpack.c.b16 %v2782, %v2778
    %v2903 = vpack.c.b16 %v2787, %v2783
    %v2904 = vpack.c.b16 %v2788, %v2784
    %v2905 = vpack.c.b16 %v2789, %v2785
    %v2906 = vpack.c.b16 %v2790, %v2786
    %v2907 = vpack.c.b16 %v2795, %v2791
    %v2908 = vpack.c.b16 %v2796, %v2792
    %v2909 = vpack.c.b16 %v2797, %v2793
    %v2910 = vpack.c.b16 %v2798, %v2794
    %v2911 = vpack.c.b16 %v2803, %v2799
    %v2912 = vpack.c.b16 %v2804, %v2800
    %v2913 = vpack.c.b16 %v2805, %v2801
    %v2914 = vpack.c.b16 %v2806, %v2802
    %v2915 = vpack.c.b16 %v2811, %v2807
    %v2916 = vpack.c.b16 %v2812, %v2808
    %v2917 = vpack.c.b16 %v2813, %v2809
    %v2918 = vpack.c.b16 %v2814, %v2810
    %v2919 = vpack.c.b16 %v2819, %v2815
    %v2920 = vpack.c.b16 %v2820, %v2816
    %v2921 = vpack.c.b16 %v2821, %v2817
    %v2922 = vpack.c.b16 %v2822, %v2818
    %v2923 = vpack.c.b16 %v2827, %v2823
    %v2924 = vpack.c.b16 %v2828, %v2824
    %v2925 = vpack.c.b16 %v2829, %v2825
    %v2926 = vpack.c.b16 %v2830, %v2826
    %v2927 = vpack.c.b16 %v2835, %v2831
    %v2928 = vpack.c.b16 %v2836, %v2832
    %v2929 = vpack.c.b16 %v2837, %v2833
    %v2930 = vpack.c.b16 %v2838, %v2834
    %v2931 = vpack.c.b16 %v2843, %v2839
    %v2932 = vpack.c.b16 %v2844, %v2840
    %v2933 = vpack.c.b16 %v2845, %v2841
    %v2934 = vpack.c.b16 %v2846, %v2842
    %v2935 = vpack.c.b16 %v2851, %v2847
    %v2936 = vpack.c.b16 %v2852, %v2848
    %v2937 = vpack.c.b16 %v2853, %v2849
    %v2938 = vpack.c.b16 %v2854, %v2850
    %v2939 = vpack.c.b16 %v2859, %v2855
    %v2940 = vpack.c.b16 %v2860, %v2856
    %v2941 = vpack.c.b16 %v2861, %v2857
    %v2942 = vpack.c.b16 %v2862, %v2858
    %v2943 = vpack.c.b16 %v2867, %v2863
    %v2944 = vpack.c.b16 %v2868, %v2864
    %v2945 = vpack.c.b16 %v2869, %v2865
    %v2946 = vpack.c.b16 %v2870, %v2866
    %v2947 = vpack.c.b16 %v2875, %v2871
    %v2948 = vpack.c.b16 %v2876, %v2872
    %v2949 = vpack.c.b16 %v2877, %v2873
    %v2950 = vpack.c.b16 %v2878, %v2874
    %v2951 = vpack.c.b16 %v2883, %v2879
    %v2952 = vpack.c.b16 %v2884, %v2880
    %v2953 = vpack.c.b16 %v2885, %v2881
    %v2954 = vpack.c.b16 %v2886, %v2882
    %v2955 = vpack.c.b16 %v2891, %v2887
    %v2956 = vpack.c.b16 %v2892, %v2888
    %v2957 = vpack.c.b16 %v2893, %v2889
    %v2958 = vpack.c.b16 %v2894, %v2890
    %3023 = vmatprep.subr.bf16.mxu0 %v2896
    %3024 = vmatpush1.bf16.msra.mxu0 %v2895
    %3025 = vmatprep.subr.bf16.mxu0 %v2900
    %3026 = vmatpush1.bf16.msra.mxu0 %v2899
    %3027 = vmatprep.subr.bf16.mxu0 %v2904
    %3028 = vmatpush1.bf16.msra.mxu0 %v2903
    %3029 = vmatprep.subr.bf16.mxu0 %v2908
    %3030 = vmatpush1.bf16.msra.mxu0 %v2907
    %3031 = vmatprep.subr.bf16.mxu0 %v2912
    %3032 = vmatpush1.bf16.msra.mxu0 %v2911
    %3033 = vmatprep.subr.bf16.mxu0 %v2916
    %3034 = vmatpush1.bf16.msra.mxu0 %v2915
    %3035 = vmatprep.subr.bf16.mxu0 %v2920
    %3036 = vmatpush1.bf16.msra.mxu0 %v2919
    %3037 = vmatprep.subr.bf16.mxu0 %v2924
    %3038 = vmatpush1.bf16.msra.mxu0 %v2923
    %3039 = vmatprep.subr.bf16.mxu0 %v2928
    %3040 = vmatpush1.bf16.msra.mxu0 %v2927
    %3041 = vmatprep.subr.bf16.mxu0 %v2932
    %3042 = vmatpush1.bf16.msra.mxu0 %v2931
    %3043 = vmatprep.subr.bf16.mxu0 %v2936
    %3044 = vmatpush1.bf16.msra.mxu0 %v2935
    %3045 = vmatprep.subr.bf16.mxu0 %v2940
    %3046 = vmatpush1.bf16.msra.mxu0 %v2939
    %3047 = vmatprep.subr.bf16.mxu0 %v2944
    %3048 = vmatpush1.bf16.msra.mxu0 %v2943
    %3049 = vmatprep.subr.bf16.mxu0 %v2948
    %3050 = vmatpush1.bf16.msra.mxu0 %v2947
    %3051 = vmatprep.subr.bf16.mxu0 %v2952
    %3052 = vmatpush1.bf16.msra.mxu0 %v2951
    %3053 = vmatprep.subr.bf16.mxu0 %v2956
    %3054 = vmatpush1.bf16.msra.mxu0 %v2955
    %3055 = vmatprep.mubr.bf16.mxu0 %v2135
    %3056 = vmatmul.mubr.bf16.gmra.mrb[0].mxu0 %v2134
    %v3057 = vpop.f32.mrb[0].mxu0
    %v3058 = vadd.f32 %v2636, %v3057
    %v3059 = vpop.f32.mrb[0].mxu0
    %v3060 = vadd.f32 %v2638, %v3059
    %v3061 = vpop.f32.mrb[0].mxu0
    %v3062 = vadd.f32 %v2640, %v3061
    %v3063 = vpop.f32.mrb[0].mxu0
    %v3064 = vadd.f32 %v2642, %v3063
    %3065 = vmatprep.mubr.bf16.mxu0 %v2137
    %3066 = vmatmul.mubr.bf16.gmra.mrb[0].mxu0 %v2136
    %v3067 = vpop.f32.mrb[0].mxu0
    %v3068 = vadd.f32 %v2646, %v3067
    %v3069 = vpop.f32.mrb[0].mxu0
    %v3070 = vadd.f32 %v2648, %v3069
    %v3071 = vpop.f32.mrb[0].mxu0
    %v3072 = vpop.f32.mrb[0].mxu0
    %3073 = vdwg.mxu0
    %3074 = vmatprep.subr.bf16.mxu0 %v2898
    %3075 = vmatpush1.bf16.msra.mxu0 %v2897
    %3076 = vmatprep.subr.bf16.mxu0 %v2902
    %3077 = vmatpush1.bf16.msra.mxu0 %v2901
    %3078 = vmatprep.subr.bf16.mxu0 %v2906
    %3079 = vmatpush1.bf16.msra.mxu0 %v2905
    %3080 = vmatprep.subr.bf16.mxu0 %v2910
    %3081 = vmatpush1.bf16.msra.mxu0 %v2909
    %3082 = vmatprep.subr.bf16.mxu0 %v2914
    %3083 = vmatpush1.bf16.msra.mxu0 %v2913
    %3084 = vmatprep.subr.bf16.mxu0 %v2918
    %3085 = vmatpush1.bf16.msra.mxu0 %v2917
    %3086 = vmatprep.subr.bf16.mxu0 %v2922
    %3087 = vmatpush1.bf16.msra.mxu0 %v2921
    %3088 = vmatprep.subr.bf16.mxu0 %v2926
    %3089 = vmatpush1.bf16.msra.mxu0 %v2925
    %3090 = vmatprep.subr.bf16.mxu0 %v2930
    %3091 = vmatpush1.bf16.msra.mxu0 %v2929
    %3092 = vmatprep.subr.bf16.mxu0 %v2934
    %3093 = vmatpush1.bf16.msra.mxu0 %v2933
    %3094 = vmatprep.subr.bf16.mxu0 %v2938
    %3095 = vmatpush1.bf16.msra.mxu0 %v2937
    %3096 = vmatprep.subr.bf16.mxu0 %v2942
    %3097 = vmatpush1.bf16.msra.mxu0 %v2941
    %3098 = vmatprep.subr.bf16.mxu0 %v2946
    %3099 = vmatpush1.bf16.msra.mxu0 %v2945
    %3100 = vmatprep.subr.bf16.mxu0 %v2950
    %3101 = vmatpush1.bf16.msra.mxu0 %v2949
    %3102 = vmatprep.subr.bf16.mxu0 %v2954
    %3103 = vmatpush1.bf16.msra.mxu0 %v2953
    %3104 = vmatprep.subr.bf16.mxu0 %v2958
    %3105 = vmatpush1.bf16.msra.mxu0 %v2957
    %3106 = vmatprep.mubr.bf16.mxu0 %v2135
    %3107 = vmatmul.mubr.bf16.gmra.mrb[0].mxu0 %v2134
    %v3108 = vpop.f32.mrb[0].mxu0
    %v3109 = vadd.f32 %v2687, %v3108
    %v3110 = vpop.f32.mrb[0].mxu0
    %v3111 = vadd.f32 %v2689, %v3110
    %v3112 = vpop.f32.mrb[0].mxu0
    %v3113 = vadd.f32 %v2691, %v3112
    %v3114 = vpop.f32.mrb[0].mxu0
    %v3115 = vadd.f32 %v2693, %v3114
    %3116 = vmatprep.mubr.bf16.mxu0 %v2137
    %3117 = vmatmul.mubr.bf16.gmra.mrb[0].mxu0 %v2136
    %v3118 = vpop.f32.mrb[0].mxu0
    %v3119 = vadd.f32 %v2697, %v3118
    %v3120 = vpop.f32.mrb[0].mxu0
    %v3121 = vadd.f32 %v2699, %v3120
    %v3122 = vpop.f32.mrb[0].mxu0
    %v3123 = vpop.f32.mrb[0].mxu0
    %3124 = vdwg.mxu0
    %s3125 = scalar_lea.vmem [#allocation5], 1024
    %v3126 = vld [vmem:[%s3125] sm:$0xff]
    %v3127 = vld [vmem:[%s3125 + $0x8] sm:$0xff]
    %v3128 = vld [vmem:[%s3125 + $0x10] sm:$0xff]
    %v3129 = vld [vmem:[%s3125 + $0x18] sm:$0xff]
    %v3130 = vld [vmem:[%s3125 + $0x20] sm:$0xff]
    %v3131 = vld [vmem:[%s3125 + $0x28] sm:$0xff]
    %v3132 = vld [vmem:[%s3125 + $0x30] sm:$0xff]
    %v3133 = vld [vmem:[%s3125 + $0x38] sm:$0xff]
    %v3134 = vld [vmem:[%s3125 + $0x40] sm:$0xff]
    %v3135 = vld [vmem:[%s3125 + $0x48] sm:$0xff]
    %v3136 = vld [vmem:[%s3125 + $0x50] sm:$0xff]
    %v3137 = vld [vmem:[%s3125 + $0x58] sm:$0xff]
    %v3138 = vld [vmem:[%s3125 + $0x60] sm:$0xff]
    %v3139 = vld [vmem:[%s3125 + $0x68] sm:$0xff]
    %v3140 = vld [vmem:[%s3125 + $0x70] sm:$0xff]
    %v3141 = vld [vmem:[%s3125 + $0x78] sm:$0xff]
    %v3142 = vld [vmem:[%s3125 + $0x80] sm:$0xff]
    %v3143 = vld [vmem:[%s3125 + $0x88] sm:$0xff]
    %v3144 = vld [vmem:[%s3125 + $0x90] sm:$0xff]
    %v3145 = vld [vmem:[%s3125 + $0x98] sm:$0xff]
    %v3146 = vld [vmem:[%s3125 + $0xa0] sm:$0xff]
    %v3147 = vld [vmem:[%s3125 + $0xa8] sm:$0xff]
    %v3148 = vld [vmem:[%s3125 + $0xb0] sm:$0xff]
    %v3149 = vld [vmem:[%s3125 + $0xb8] sm:$0xff]
    %v3150 = vld [vmem:[%s3125 + $0xc0] sm:$0xff]
    %v3151 = vld [vmem:[%s3125 + $0xc8] sm:$0xff]
    %v3152 = vld [vmem:[%s3125 + $0xd0] sm:$0xff]
    %v3153 = vld [vmem:[%s3125 + $0xd8] sm:$0xff]
    %v3154 = vld [vmem:[%s3125 + $0xe0] sm:$0xff]
    %v3155 = vld [vmem:[%s3125 + $0xe8] sm:$0xff]
    %v3156 = vld [vmem:[%s3125 + $0xf0] sm:$0xff]
    %v3157 = vld [vmem:[%s3125 + $0xf8] sm:$0xff]
    %v3158 = vld [vmem:[%s3125 + $0x100] sm:$0xff]
    %v3159 = vld [vmem:[%s3125 + $0x108] sm:$0xff]
    %v3160 = vld [vmem:[%s3125 + $0x110] sm:$0xff]
    %v3161 = vld [vmem:[%s3125 + $0x118] sm:$0xff]
    %v3162 = vld [vmem:[%s3125 + $0x120] sm:$0xff]
    %v3163 = vld [vmem:[%s3125 + $0x128] sm:$0xff]
    %v3164 = vld [vmem:[%s3125 + $0x130] sm:$0xff]
    %v3165 = vld [vmem:[%s3125 + $0x138] sm:$0xff]
    %v3166 = vld [vmem:[%s3125 + $0x140] sm:$0xff]
    %v3167 = vld [vmem:[%s3125 + $0x148] sm:$0xff]
    %v3168 = vld [vmem:[%s3125 + $0x150] sm:$0xff]
    %v3169 = vld [vmem:[%s3125 + $0x158] sm:$0xff]
    %v3170 = vld [vmem:[%s3125 + $0x160] sm:$0xff]
    %v3171 = vld [vmem:[%s3125 + $0x168] sm:$0xff]
    %v3172 = vld [vmem:[%s3125 + $0x170] sm:$0xff]
    %v3173 = vld [vmem:[%s3125 + $0x178] sm:$0xff]
    %v3174 = vld [vmem:[%s3125 + $0x180] sm:$0xff]
    %v3175 = vld [vmem:[%s3125 + $0x188] sm:$0xff]
    %v3176 = vld [vmem:[%s3125 + $0x190] sm:$0xff]
    %v3177 = vld [vmem:[%s3125 + $0x198] sm:$0xff]
    %v3178 = vld [vmem:[%s3125 + $0x1a0] sm:$0xff]
    %v3179 = vld [vmem:[%s3125 + $0x1a8] sm:$0xff]
    %v3180 = vld [vmem:[%s3125 + $0x1b0] sm:$0xff]
    %v3181 = vld [vmem:[%s3125 + $0x1b8] sm:$0xff]
    %v3182 = vld [vmem:[%s3125 + $0x1c0] sm:$0xff]
    %v3183 = vld [vmem:[%s3125 + $0x1c8] sm:$0xff]
    %v3184 = vld [vmem:[%s3125 + $0x1d0] sm:$0xff]
    %v3185 = vld [vmem:[%s3125 + $0x1d8] sm:$0xff]
    %v3186 = vld [vmem:[%s3125 + $0x1e0] sm:$0xff]
    %v3187 = vld [vmem:[%s3125 + $0x1e8] sm:$0xff]
    %v3188 = vld [vmem:[%s3125 + $0x1f0] sm:$0xff]
    %v3189 = vld [vmem:[%s3125 + $0x1f8] sm:$0xff]
    %v3190 = vrot.slane %v2134, 2
    %v3191 = vrot.slane %v2136, 2
    %v3192 = vsel %vm785, %v3190, %v3191
    %v3193 = vrot.slane %v2135, 2
    %v3194 = vrot.slane %v2137, 2
    %v3195 = vsel %vm785, %v3193, %v3194
    %v3264 = vunpack.c.l.b16 %v3126
    %v3265 = vunpack.c.h.b16 %v3126
    %v3266 = vunpack.c.l.b16 %v3127
    %v3267 = vunpack.c.h.b16 %v3127
    %v3268 = vunpack.c.l.b16 %v3128
    %v3269 = vunpack.c.h.b16 %v3128
    %v3270 = vunpack.c.l.b16 %v3129
    %v3271 = vunpack.c.h.b16 %v3129
    %v3272 = vunpack.c.l.b16 %v3130
    %v3273 = vunpack.c.h.b16 %v3130
    %v3274 = vunpack.c.l.b16 %v3131
    %v3275 = vunpack.c.h.b16 %v3131
    %v3276 = vunpack.c.l.b16 %v3132
    %v3277 = vunpack.c.h.b16 %v3132
    %v3278 = vunpack.c.l.b16 %v3133
    %v3279 = vunpack.c.h.b16 %v3133
    %v3280 = vunpack.c.l.b16 %v3134
    %v3281 = vunpack.c.h.b16 %v3134
    %v3282 = vunpack.c.l.b16 %v3135
    %v3283 = vunpack.c.h.b16 %v3135
    %v3284 = vunpack.c.l.b16 %v3136
    %v3285 = vunpack.c.h.b16 %v3136
    %v3286 = vunpack.c.l.b16 %v3137
    %v3287 = vunpack.c.h.b16 %v3137
    %v3288 = vunpack.c.l.b16 %v3138
    %v3289 = vunpack.c.h.b16 %v3138
    %v3290 = vunpack.c.l.b16 %v3139
    %v3291 = vunpack.c.h.b16 %v3139
    %v3292 = vunpack.c.l.b16 %v3140
    %v3293 = vunpack.c.h.b16 %v3140
    %v3294 = vunpack.c.l.b16 %v3141
    %v3295 = vunpack.c.h.b16 %v3141
    %v3296 = vunpack.c.l.b16 %v3142
    %v3297 = vunpack.c.h.b16 %v3142
    %v3298 = vunpack.c.l.b16 %v3143
    %v3299 = vunpack.c.h.b16 %v3143
    %v3300 = vunpack.c.l.b16 %v3144
    %v3301 = vunpack.c.h.b16 %v3144
    %v3302 = vunpack.c.l.b16 %v3145
    %v3303 = vunpack.c.h.b16 %v3145
    %v3304 = vunpack.c.l.b16 %v3146
    %v3305 = vunpack.c.h.b16 %v3146
    %v3306 = vunpack.c.l.b16 %v3147
    %v3307 = vunpack.c.h.b16 %v3147
    %v3308 = vunpack.c.l.b16 %v3148
    %v3309 = vunpack.c.h.b16 %v3148
    %v3310 = vunpack.c.l.b16 %v3149
    %v3311 = vunpack.c.h.b16 %v3149
    %v3312 = vunpack.c.l.b16 %v3150
    %v3313 = vunpack.c.h.b16 %v3150
    %v3314 = vunpack.c.l.b16 %v3151
    %v3315 = vunpack.c.h.b16 %v3151
    %v3316 = vunpack.c.l.b16 %v3152
    %v3317 = vunpack.c.h.b16 %v3152
    %v3318 = vunpack.c.l.b16 %v3153
    %v3319 = vunpack.c.h.b16 %v3153
    %v3320 = vunpack.c.l.b16 %v3154
    %v3321 = vunpack.c.h.b16 %v3154
    %v3322 = vunpack.c.l.b16 %v3155
    %v3323 = vunpack.c.h.b16 %v3155
    %v3324 = vunpack.c.l.b16 %v3156
    %v3325 = vunpack.c.h.b16 %v3156
    %v3326 = vunpack.c.l.b16 %v3157
    %v3327 = vunpack.c.h.b16 %v3157
    %v3328 = vunpack.c.l.b16 %v3158
    %v3329 = vunpack.c.h.b16 %v3158
    %v3330 = vunpack.c.l.b16 %v3159
    %v3331 = vunpack.c.h.b16 %v3159
    %v3332 = vunpack.c.l.b16 %v3160
    %v3333 = vunpack.c.h.b16 %v3160
    %v3334 = vunpack.c.l.b16 %v3161
    %v3335 = vunpack.c.h.b16 %v3161
    %v3336 = vunpack.c.l.b16 %v3162
    %v3337 = vunpack.c.h.b16 %v3162
    %v3338 = vunpack.c.l.b16 %v3163
    %v3339 = vunpack.c.h.b16 %v3163
    %v3340 = vunpack.c.l.b16 %v3164
    %v3341 = vunpack.c.h.b16 %v3164
    %v3342 = vunpack.c.l.b16 %v3165
    %v3343 = vunpack.c.h.b16 %v3165
    %v3344 = vunpack.c.l.b16 %v3166
    %v3345 = vunpack.c.h.b16 %v3166
    %v3346 = vunpack.c.l.b16 %v3167
    %v3347 = vunpack.c.h.b16 %v3167
    %v3348 = vunpack.c.l.b16 %v3168
    %v3349 = vunpack.c.h.b16 %v3168
    %v3350 = vunpack.c.l.b16 %v3169
    %v3351 = vunpack.c.h.b16 %v3169
    %v3352 = vunpack.c.l.b16 %v3170
    %v3353 = vunpack.c.h.b16 %v3170
    %v3354 = vunpack.c.l.b16 %v3171
    %v3355 = vunpack.c.h.b16 %v3171
    %v3356 = vunpack.c.l.b16 %v3172
    %v3357 = vunpack.c.h.b16 %v3172
    %v3358 = vunpack.c.l.b16 %v3173
    %v3359 = vunpack.c.h.b16 %v3173
    %v3360 = vunpack.c.l.b16 %v3174
    %v3361 = vunpack.c.h.b16 %v3174
    %v3362 = vunpack.c.l.b16 %v3175
    %v3363 = vunpack.c.h.b16 %v3175
    %v3364 = vunpack.c.l.b16 %v3176
    %v3365 = vunpack.c.h.b16 %v3176
    %v3366 = vunpack.c.l.b16 %v3177
    %v3367 = vunpack.c.h.b16 %v3177
    %v3368 = vunpack.c.l.b16 %v3178
    %v3369 = vunpack.c.h.b16 %v3178
    %v3370 = vunpack.c.l.b16 %v3179
    %v3371 = vunpack.c.h.b16 %v3179
    %v3372 = vunpack.c.l.b16 %v3180
    %v3373 = vunpack.c.h.b16 %v3180
    %v3374 = vunpack.c.l.b16 %v3181
    %v3375 = vunpack.c.h.b16 %v3181
    %v3376 = vunpack.c.l.b16 %v3182
    %v3377 = vunpack.c.h.b16 %v3182
    %v3378 = vunpack.c.l.b16 %v3183
    %v3379 = vunpack.c.h.b16 %v3183
    %v3380 = vunpack.c.l.b16 %v3184
    %v3381 = vunpack.c.h.b16 %v3184
    %v3382 = vunpack.c.l.b16 %v3185
    %v3383 = vunpack.c.h.b16 %v3185
    %v3384 = vunpack.c.l.b16 %v3186
    %v3385 = vunpack.c.h.b16 %v3186
    %v3386 = vunpack.c.l.b16 %v3187
    %v3387 = vunpack.c.h.b16 %v3187
    %v3388 = vunpack.c.l.b16 %v3188
    %v3389 = vunpack.c.h.b16 %v3188
    %v3390 = vunpack.c.l.b16 %v3189
    %v3391 = vunpack.c.h.b16 %v3189
    %v3392 = vpack.c.b16 %v3268, %v3264
    %v3393 = vpack.c.b16 %v3269, %v3265
    %v3394 = vpack.c.b16 %v3270, %v3266
    %v3395 = vpack.c.b16 %v3271, %v3267
    %v3396 = vpack.c.b16 %v3276, %v3272
    %v3397 = vpack.c.b16 %v3277, %v3273
    %v3398 = vpack.c.b16 %v3278, %v3274
    %v3399 = vpack.c.b16 %v3279, %v3275
    %v3400 = vpack.c.b16 %v3284, %v3280
    %v3401 = vpack.c.b16 %v3285, %v3281
    %v3402 = vpack.c.b16 %v3286, %v3282
    %v3403 = vpack.c.b16 %v3287, %v3283
    %v3404 = vpack.c.b16 %v3292, %v3288
    %v3405 = vpack.c.b16 %v3293, %v3289
    %v3406 = vpack.c.b16 %v3294, %v3290
    %v3407 = vpack.c.b16 %v3295, %v3291
    %v3408 = vpack.c.b16 %v3300, %v3296
    %v3409 = vpack.c.b16 %v3301, %v3297
    %v3410 = vpack.c.b16 %v3302, %v3298
    %v3411 = vpack.c.b16 %v3303, %v3299
    %v3412 = vpack.c.b16 %v3308, %v3304
    %v3413 = vpack.c.b16 %v3309, %v3305
    %v3414 = vpack.c.b16 %v3310, %v3306
    %v3415 = vpack.c.b16 %v3311, %v3307
    %v3416 = vpack.c.b16 %v3316, %v3312
    %v3417 = vpack.c.b16 %v3317, %v3313
    %v3418 = vpack.c.b16 %v3318, %v3314
    %v3419 = vpack.c.b16 %v3319, %v3315
    %v3420 = vpack.c.b16 %v3324, %v3320
    %v3421 = vpack.c.b16 %v3325, %v3321
    %v3422 = vpack.c.b16 %v3326, %v3322
    %v3423 = vpack.c.b16 %v3327, %v3323
    %v3424 = vpack.c.b16 %v3332, %v3328
    %v3425 = vpack.c.b16 %v3333, %v3329
    %v3426 = vpack.c.b16 %v3334, %v3330
    %v3427 = vpack.c.b16 %v3335, %v3331
    %v3428 = vpack.c.b16 %v3340, %v3336
    %v3429 = vpack.c.b16 %v3341, %v3337
    %v3430 = vpack.c.b16 %v3342, %v3338
    %v3431 = vpack.c.b16 %v3343, %v3339
    %v3432 = vpack.c.b16 %v3348, %v3344
    %v3433 = vpack.c.b16 %v3349, %v3345
    %v3434 = vpack.c.b16 %v3350, %v3346
    %v3435 = vpack.c.b16 %v3351, %v3347
    %v3436 = vpack.c.b16 %v3356, %v3352
    %v3437 = vpack.c.b16 %v3357, %v3353
    %v3438 = vpack.c.b16 %v3358, %v3354
    %v3439 = vpack.c.b16 %v3359, %v3355
    %v3440 = vpack.c.b16 %v3364, %v3360
    %v3441 = vpack.c.b16 %v3365, %v3361
    %v3442 = vpack.c.b16 %v3366, %v3362
    %v3443 = vpack.c.b16 %v3367, %v3363
    %v3444 = vpack.c.b16 %v3372, %v3368
    %v3445 = vpack.c.b16 %v3373, %v3369
    %v3446 = vpack.c.b16 %v3374, %v3370
    %v3447 = vpack.c.b16 %v3375, %v3371
    %v3448 = vpack.c.b16 %v3380, %v3376
    %v3449 = vpack.c.b16 %v3381, %v3377
    %v3450 = vpack.c.b16 %v3382, %v3378
    %v3451 = vpack.c.b16 %v3383, %v3379
    %v3452 = vpack.c.b16 %v3388, %v3384
    %v3453 = vpack.c.b16 %v3389, %v3385
    %v3454 = vpack.c.b16 %v3390, %v3386
    %v3455 = vpack.c.b16 %v3391, %v3387
    %3520 = vmatprep.subr.bf16.mxu0 %v3393
    %3521 = vmatpush1.bf16.msra.mxu0 %v3392
    %3522 = vmatprep.subr.bf16.mxu0 %v3397
    %3523 = vmatpush1.bf16.msra.mxu0 %v3396
    %3524 = vmatprep.subr.bf16.mxu0 %v3401
    %3525 = vmatpush1.bf16.msra.mxu0 %v3400
    %3526 = vmatprep.subr.bf16.mxu0 %v3405
    %3527 = vmatpush1.bf16.msra.mxu0 %v3404
    %3528 = vmatprep.subr.bf16.mxu0 %v3409
    %3529 = vmatpush1.bf16.msra.mxu0 %v3408
    %3530 = vmatprep.subr.bf16.mxu0 %v3413
    %3531 = vmatpush1.bf16.msra.mxu0 %v3412
    %3532 = vmatprep.subr.bf16.mxu0 %v3417
    %3533 = vmatpush1.bf16.msra.mxu0 %v3416
    %3534 = vmatprep.subr.bf16.mxu0 %v3421
    %3535 = vmatpush1.bf16.msra.mxu0 %v3420
    %3536 = vmatprep.subr.bf16.mxu0 %v3425
    %3537 = vmatpush1.bf16.msra.mxu0 %v3424
    %3538 = vmatprep.subr.bf16.mxu0 %v3429
    %3539 = vmatpush1.bf16.msra.mxu0 %v3428
    %3540 = vmatprep.subr.bf16.mxu0 %v3433
    %3541 = vmatpush1.bf16.msra.mxu0 %v3432
    %3542 = vmatprep.subr.bf16.mxu0 %v3437
    %3543 = vmatpush1.bf16.msra.mxu0 %v3436
    %3544 = vmatprep.subr.bf16.mxu0 %v3441
    %3545 = vmatpush1.bf16.msra.mxu0 %v3440
    %3546 = vmatprep.subr.bf16.mxu0 %v3445
    %3547 = vmatpush1.bf16.msra.mxu0 %v3444
    %3548 = vmatprep.subr.bf16.mxu0 %v3449
    %3549 = vmatpush1.bf16.msra.mxu0 %v3448
    %3550 = vmatprep.subr.bf16.mxu0 %v3453
    %3551 = vmatpush1.bf16.msra.mxu0 %v3452
    %3552 = vmatprep.mubr.bf16.mxu0 %v3195
    %3553 = vmatmul.mubr.bf16.gmra.mrb[0].mxu0 %v3192
    %v3554 = vpop.f32.mrb[0].mxu0
    %v3555 = vadd.f32 0.0, %v3554
    %v3556 = vpop.f32.mrb[0].mxu0
    %v3557 = vadd.f32 0.0, %v3556
    %v3558 = vpop.f32.mrb[0].mxu0
    %v3559 = vadd.f32 0.0, %v3558
    %v3560 = vpop.f32.mrb[0].mxu0
    %v3561 = vadd.f32 0.0, %v3560
    %3562 = vmatprep.mubr.bf16.mxu0 %v3194
    %3563 = vmatmul.mubr.bf16.gmra.mrb[0].mxu0 %v3191
    %v3564 = vpop.f32.mrb[0].mxu0
    %v3565 = vadd.f32 0.0, %v3564
    %v3566 = vpop.f32.mrb[0].mxu0
    %v3567 = vadd.f32 0.0, %v3566
    %v3568 = vpop.f32.mrb[0].mxu0
    %v3569 = vpop.f32.mrb[0].mxu0
    %3570 = vdwg.mxu0
    %3571 = vmatprep.subr.bf16.mxu0 %v3395
    %3572 = vmatpush1.bf16.msra.mxu0 %v3394
    %3573 = vmatprep.subr.bf16.mxu0 %v3399
    %3574 = vmatpush1.bf16.msra.mxu0 %v3398
    %3575 = vmatprep.subr.bf16.mxu0 %v3403
    %3576 = vmatpush1.bf16.msra.mxu0 %v3402
    %3577 = vmatprep.subr.bf16.mxu0 %v3407
    %3578 = vmatpush1.bf16.msra.mxu0 %v3406
    %3579 = vmatprep.subr.bf16.mxu0 %v3411
    %3580 = vmatpush1.bf16.msra.mxu0 %v3410
    %3581 = vmatprep.subr.bf16.mxu0 %v3415
    %3582 = vmatpush1.bf16.msra.mxu0 %v3414
    %3583 = vmatprep.subr.bf16.mxu0 %v3419
    %3584 = vmatpush1.bf16.msra.mxu0 %v3418
    %3585 = vmatprep.subr.bf16.mxu0 %v3423
    %3586 = vmatpush1.bf16.msra.mxu0 %v3422
    %3587 = vmatprep.subr.bf16.mxu0 %v3427
    %3588 = vmatpush1.bf16.msra.mxu0 %v3426
    %3589 = vmatprep.subr.bf16.mxu0 %v3431
    %3590 = vmatpush1.bf16.msra.mxu0 %v3430
    %3591 = vmatprep.subr.bf16.mxu0 %v3435
    %3592 = vmatpush1.bf16.msra.mxu0 %v3434
    %3593 = vmatprep.subr.bf16.mxu0 %v3439
    %3594 = vmatpush1.bf16.msra.mxu0 %v3438
    %3595 = vmatprep.subr.bf16.mxu0 %v3443
    %3596 = vmatpush1.bf16.msra.mxu0 %v3442
    %3597 = vmatprep.subr.bf16.mxu0 %v3447
    %3598 = vmatpush1.bf16.msra.mxu0 %v3446
    %3599 = vmatprep.subr.bf16.mxu0 %v3451
    %3600 = vmatpush1.bf16.msra.mxu0 %v3450
    %3601 = vmatprep.subr.bf16.mxu0 %v3455
    %3602 = vmatpush1.bf16.msra.mxu0 %v3454
    %3603 = vmatprep.mubr.bf16.mxu0 %v3195
    %3604 = vmatmul.mubr.bf16.gmra.mrb[0].mxu0 %v3192
    %v3605 = vpop.f32.mrb[0].mxu0
    %v3606 = vadd.f32 0.0, %v3605
    %v3607 = vpop.f32.mrb[0].mxu0
    %v3608 = vadd.f32 0.0, %v3607
    %v3609 = vpop.f32.mrb[0].mxu0
    %v3610 = vadd.f32 0.0, %v3609
    %v3611 = vpop.f32.mrb[0].mxu0
    %v3612 = vadd.f32 0.0, %v3611
    %3613 = vmatprep.mubr.bf16.mxu0 %v3194
    %3614 = vmatmul.mubr.bf16.gmra.mrb[0].mxu0 %v3191
    %v3615 = vpop.f32.mrb[0].mxu0
    %v3616 = vadd.f32 0.0, %v3615
    %v3617 = vpop.f32.mrb[0].mxu0
    %v3618 = vadd.f32 0.0, %v3617
    %v3619 = vpop.f32.mrb[0].mxu0
    %v3620 = vpop.f32.mrb[0].mxu0
    %3621 = vdwg.mxu0
    %v3622 = vadd.f32 %v3058, %v3555
    %v3623 = vadd.f32 %v3060, %v3557
    %v3624 = vadd.f32 %v3109, %v3606
    %v3625 = vadd.f32 %v3111, %v3608
    %v3626 = vadd.f32 %v3062, %v3559
    %v3627 = vadd.f32 %v3064, %v3561
    %v3628 = vadd.f32 %v3113, %v3610
    %v3629 = vadd.f32 %v3115, %v3612
    %v3630 = vadd.f32 %v3068, %v3565
    %v3631 = vadd.f32 %v3070, %v3567
    %v3632 = vadd.f32 %v3119, %v3616
    %v3633 = vadd.f32 %v3121, %v3618
    %s3634 = scalar_lea.vmem [#allocation5], 1536
    %v3635 = vld [vmem:[%s3634] sm:$0xff]
    %v3636 = vld [vmem:[%s3634 + $0x8] sm:$0xff]
    %v3637 = vld [vmem:[%s3634 + $0x10] sm:$0xff]
    %v3638 = vld [vmem:[%s3634 + $0x18] sm:$0xff]
    %v3639 = vld [vmem:[%s3634 + $0x20] sm:$0xff]
    %v3640 = vld [vmem:[%s3634 + $0x28] sm:$0xff]
    %v3641 = vld [vmem:[%s3634 + $0x30] sm:$0xff]
    %v3642 = vld [vmem:[%s3634 + $0x38] sm:$0xff]
    %v3643 = vld [vmem:[%s3634 + $0x40] sm:$0xff]
    %v3644 = vld [vmem:[%s3634 + $0x48] sm:$0xff]
    %v3645 = vld [vmem:[%s3634 + $0x50] sm:$0xff]
    %v3646 = vld [vmem:[%s3634 + $0x58] sm:$0xff]
    %v3647 = vld [vmem:[%s3634 + $0x60] sm:$0xff]
    %v3648 = vld [vmem:[%s3634 + $0x68] sm:$0xff]
    %v3649 = vld [vmem:[%s3634 + $0x70] sm:$0xff]
    %v3650 = vld [vmem:[%s3634 + $0x78] sm:$0xff]
    %v3651 = vld [vmem:[%s3634 + $0x80] sm:$0xff]
    %v3652 = vld [vmem:[%s3634 + $0x88] sm:$0xff]
    %v3653 = vld [vmem:[%s3634 + $0x90] sm:$0xff]
    %v3654 = vld [vmem:[%s3634 + $0x98] sm:$0xff]
    %v3655 = vld [vmem:[%s3634 + $0xa0] sm:$0xff]
    %v3656 = vld [vmem:[%s3634 + $0xa8] sm:$0xff]
    %v3657 = vld [vmem:[%s3634 + $0xb0] sm:$0xff]
    %v3658 = vld [vmem:[%s3634 + $0xb8] sm:$0xff]
    %v3659 = vld [vmem:[%s3634 + $0xc0] sm:$0xff]
    %v3660 = vld [vmem:[%s3634 + $0xc8] sm:$0xff]
    %v3661 = vld [vmem:[%s3634 + $0xd0] sm:$0xff]
    %v3662 = vld [vmem:[%s3634 + $0xd8] sm:$0xff]
    %v3663 = vld [vmem:[%s3634 + $0xe0] sm:$0xff]
    %v3664 = vld [vmem:[%s3634 + $0xe8] sm:$0xff]
    %v3665 = vld [vmem:[%s3634 + $0xf0] sm:$0xff]
    %v3666 = vld [vmem:[%s3634 + $0xf8] sm:$0xff]
    %v3667 = vld [vmem:[%s3634 + $0x100] sm:$0xff]
    %v3668 = vld [vmem:[%s3634 + $0x108] sm:$0xff]
    %v3669 = vld [vmem:[%s3634 + $0x110] sm:$0xff]
    %v3670 = vld [vmem:[%s3634 + $0x118] sm:$0xff]
    %v3671 = vld [vmem:[%s3634 + $0x120] sm:$0xff]
    %v3672 = vld [vmem:[%s3634 + $0x128] sm:$0xff]
    %v3673 = vld [vmem:[%s3634 + $0x130] sm:$0xff]
    %v3674 = vld [vmem:[%s3634 + $0x138] sm:$0xff]
    %v3675 = vld [vmem:[%s3634 + $0x140] sm:$0xff]
    %v3676 = vld [vmem:[%s3634 + $0x148] sm:$0xff]
    %v3677 = vld [vmem:[%s3634 + $0x150] sm:$0xff]
    %v3678 = vld [vmem:[%s3634 + $0x158] sm:$0xff]
    %v3679 = vld [vmem:[%s3634 + $0x160] sm:$0xff]
    %v3680 = vld [vmem:[%s3634 + $0x168] sm:$0xff]
    %v3681 = vld [vmem:[%s3634 + $0x170] sm:$0xff]
    %v3682 = vld [vmem:[%s3634 + $0x178] sm:$0xff]
    %v3683 = vld [vmem:[%s3634 + $0x180] sm:$0xff]
    %v3684 = vld [vmem:[%s3634 + $0x188] sm:$0xff]
    %v3685 = vld [vmem:[%s3634 + $0x190] sm:$0xff]
    %v3686 = vld [vmem:[%s3634 + $0x198] sm:$0xff]
    %v3687 = vld [vmem:[%s3634 + $0x1a0] sm:$0xff]
    %v3688 = vld [vmem:[%s3634 + $0x1a8] sm:$0xff]
    %v3689 = vld [vmem:[%s3634 + $0x1b0] sm:$0xff]
    %v3690 = vld [vmem:[%s3634 + $0x1b8] sm:$0xff]
    %v3691 = vld [vmem:[%s3634 + $0x1c0] sm:$0xff]
    %v3692 = vld [vmem:[%s3634 + $0x1c8] sm:$0xff]
    %v3693 = vld [vmem:[%s3634 + $0x1d0] sm:$0xff]
    %v3694 = vld [vmem:[%s3634 + $0x1d8] sm:$0xff]
    %v3695 = vld [vmem:[%s3634 + $0x1e0] sm:$0xff]
    %v3696 = vld [vmem:[%s3634 + $0x1e8] sm:$0xff]
    %v3697 = vld [vmem:[%s3634 + $0x1f0] sm:$0xff]
    %v3698 = vld [vmem:[%s3634 + $0x1f8] sm:$0xff]
    %v3699 = vrot.slane %v2134, 3
    %v3700 = vrot.slane %v2136, 3
    %v3701 = vsel %vm1120, %v3699, %v3700
    %v3702 = vrot.slane %v2135, 3
    %v3703 = vrot.slane %v2137, 3
    %v3704 = vsel %vm1120, %v3702, %v3703
    %v3773 = vunpack.c.l.b16 %v3635
    %v3774 = vunpack.c.h.b16 %v3635
    %v3775 = vunpack.c.l.b16 %v3636
    %v3776 = vunpack.c.h.b16 %v3636
    %v3777 = vunpack.c.l.b16 %v3637
    %v3778 = vunpack.c.h.b16 %v3637
    %v3779 = vunpack.c.l.b16 %v3638
    %v3780 = vunpack.c.h.b16 %v3638
    %v3781 = vunpack.c.l.b16 %v3639
    %v3782 = vunpack.c.h.b16 %v3639
    %v3783 = vunpack.c.l.b16 %v3640
    %v3784 = vunpack.c.h.b16 %v3640
    %v3785 = vunpack.c.l.b16 %v3641
    %v3786 = vunpack.c.h.b16 %v3641
    %v3787 = vunpack.c.l.b16 %v3642
    %v3788 = vunpack.c.h.b16 %v3642
    %v3789 = vunpack.c.l.b16 %v3643
    %v3790 = vunpack.c.h.b16 %v3643
    %v3791 = vunpack.c.l.b16 %v3644
    %v3792 = vunpack.c.h.b16 %v3644
    %v3793 = vunpack.c.l.b16 %v3645
    %v3794 = vunpack.c.h.b16 %v3645
    %v3795 = vunpack.c.l.b16 %v3646
    %v3796 = vunpack.c.h.b16 %v3646
    %v3797 = vunpack.c.l.b16 %v3647
    %v3798 = vunpack.c.h.b16 %v3647
    %v3799 = vunpack.c.l.b16 %v3648
    %v3800 = vunpack.c.h.b16 %v3648
    %v3801 = vunpack.c.l.b16 %v3649
    %v3802 = vunpack.c.h.b16 %v3649
    %v3803 = vunpack.c.l.b16 %v3650
    %v3804 = vunpack.c.h.b16 %v3650
    %v3805 = vunpack.c.l.b16 %v3651
    %v3806 = vunpack.c.h.b16 %v3651
    %v3807 = vunpack.c.l.b16 %v3652
    %v3808 = vunpack.c.h.b16 %v3652
    %v3809 = vunpack.c.l.b16 %v3653
    %v3810 = vunpack.c.h.b16 %v3653
    %v3811 = vunpack.c.l.b16 %v3654
    %v3812 = vunpack.c.h.b16 %v3654
    %v3813 = vunpack.c.l.b16 %v3655
    %v3814 = vunpack.c.h.b16 %v3655
    %v3815 = vunpack.c.l.b16 %v3656
    %v3816 = vunpack.c.h.b16 %v3656
    %v3817 = vunpack.c.l.b16 %v3657
    %v3818 = vunpack.c.h.b16 %v3657
    %v3819 = vunpack.c.l.b16 %v3658
    %v3820 = vunpack.c.h.b16 %v3658
    %v3821 = vunpack.c.l.b16 %v3659
    %v3822 = vunpack.c.h.b16 %v3659
    %v3823 = vunpack.c.l.b16 %v3660
    %v3824 = vunpack.c.h.b16 %v3660
    %v3825 = vunpack.c.l.b16 %v3661
    %v3826 = vunpack.c.h.b16 %v3661
    %v3827 = vunpack.c.l.b16 %v3662
    %v3828 = vunpack.c.h.b16 %v3662
    %v3829 = vunpack.c.l.b16 %v3663
    %v3830 = vunpack.c.h.b16 %v3663
    %v3831 = vunpack.c.l.b16 %v3664
    %v3832 = vunpack.c.h.b16 %v3664
    %v3833 = vunpack.c.l.b16 %v3665
    %v3834 = vunpack.c.h.b16 %v3665
    %v3835 = vunpack.c.l.b16 %v3666
    %v3836 = vunpack.c.h.b16 %v3666
    %v3837 = vunpack.c.l.b16 %v3667
    %v3838 = vunpack.c.h.b16 %v3667
    %v3839 = vunpack.c.l.b16 %v3668
    %v3840 = vunpack.c.h.b16 %v3668
    %v3841 = vunpack.c.l.b16 %v3669
    %v3842 = vunpack.c.h.b16 %v3669
    %v3843 = vunpack.c.l.b16 %v3670
    %v3844 = vunpack.c.h.b16 %v3670
    %v3845 = vunpack.c.l.b16 %v3671
    %v3846 = vunpack.c.h.b16 %v3671
    %v3847 = vunpack.c.l.b16 %v3672
    %v3848 = vunpack.c.h.b16 %v3672
    %v3849 = vunpack.c.l.b16 %v3673
    %v3850 = vunpack.c.h.b16 %v3673
    %v3851 = vunpack.c.l.b16 %v3674
    %v3852 = vunpack.c.h.b16 %v3674
    %v3853 = vunpack.c.l.b16 %v3675
    %v3854 = vunpack.c.h.b16 %v3675
    %v3855 = vunpack.c.l.b16 %v3676
    %v3856 = vunpack.c.h.b16 %v3676
    %v3857 = vunpack.c.l.b16 %v3677
    %v3858 = vunpack.c.h.b16 %v3677
    %v3859 = vunpack.c.l.b16 %v3678
    %v3860 = vunpack.c.h.b16 %v3678
    %v3861 = vunpack.c.l.b16 %v3679
    %v3862 = vunpack.c.h.b16 %v3679
    %v3863 = vunpack.c.l.b16 %v3680
    %v3864 = vunpack.c.h.b16 %v3680
    %v3865 = vunpack.c.l.b16 %v3681
    %v3866 = vunpack.c.h.b16 %v3681
    %v3867 = vunpack.c.l.b16 %v3682
    %v3868 = vunpack.c.h.b16 %v3682
    %v3869 = vunpack.c.l.b16 %v3683
    %v3870 = vunpack.c.h.b16 %v3683
    %v3871 = vunpack.c.l.b16 %v3684
    %v3872 = vunpack.c.h.b16 %v3684
    %v3873 = vunpack.c.l.b16 %v3685
    %v3874 = vunpack.c.h.b16 %v3685
    %v3875 = vunpack.c.l.b16 %v3686
    %v3876 = vunpack.c.h.b16 %v3686
    %v3877 = vunpack.c.l.b16 %v3687
    %v3878 = vunpack.c.h.b16 %v3687
    %v3879 = vunpack.c.l.b16 %v3688
    %v3880 = vunpack.c.h.b16 %v3688
    %v3881 = vunpack.c.l.b16 %v3689
    %v3882 = vunpack.c.h.b16 %v3689
    %v3883 = vunpack.c.l.b16 %v3690
    %v3884 = vunpack.c.h.b16 %v3690
    %v3885 = vunpack.c.l.b16 %v3691
    %v3886 = vunpack.c.h.b16 %v3691
    %v3887 = vunpack.c.l.b16 %v3692
    %v3888 = vunpack.c.h.b16 %v3692
    %v3889 = vunpack.c.l.b16 %v3693
    %v3890 = vunpack.c.h.b16 %v3693
    %v3891 = vunpack.c.l.b16 %v3694
    %v3892 = vunpack.c.h.b16 %v3694
    %v3893 = vunpack.c.l.b16 %v3695
    %v3894 = vunpack.c.h.b16 %v3695
    %v3895 = vunpack.c.l.b16 %v3696
    %v3896 = vunpack.c.h.b16 %v3696
    %v3897 = vunpack.c.l.b16 %v3697
    %v3898 = vunpack.c.h.b16 %v3697
    %v3899 = vunpack.c.l.b16 %v3698
    %v3900 = vunpack.c.h.b16 %v3698
    %v3901 = vpack.c.b16 %v3777, %v3773
    %v3902 = vpack.c.b16 %v3778, %v3774
    %v3903 = vpack.c.b16 %v3779, %v3775
    %v3904 = vpack.c.b16 %v3780, %v3776
    %v3905 = vpack.c.b16 %v3785, %v3781
    %v3906 = vpack.c.b16 %v3786, %v3782
    %v3907 = vpack.c.b16 %v3787, %v3783
    %v3908 = vpack.c.b16 %v3788, %v3784
    %v3909 = vpack.c.b16 %v3793, %v3789
    %v3910 = vpack.c.b16 %v3794, %v3790
    %v3911 = vpack.c.b16 %v3795, %v3791
    %v3912 = vpack.c.b16 %v3796, %v3792
    %v3913 = vpack.c.b16 %v3801, %v3797
    %v3914 = vpack.c.b16 %v3802, %v3798
    %v3915 = vpack.c.b16 %v3803, %v3799
    %v3916 = vpack.c.b16 %v3804, %v3800
    %v3917 = vpack.c.b16 %v3809, %v3805
    %v3918 = vpack.c.b16 %v3810, %v3806
    %v3919 = vpack.c.b16 %v3811, %v3807
    %v3920 = vpack.c.b16 %v3812, %v3808
    %v3921 = vpack.c.b16 %v3817, %v3813
    %v3922 = vpack.c.b16 %v3818, %v3814
    %v3923 = vpack.c.b16 %v3819, %v3815
    %v3924 = vpack.c.b16 %v3820, %v3816
    %v3925 = vpack.c.b16 %v3825, %v3821
    %v3926 = vpack.c.b16 %v3826, %v3822
    %v3927 = vpack.c.b16 %v3827, %v3823
    %v3928 = vpack.c.b16 %v3828, %v3824
    %v3929 = vpack.c.b16 %v3833, %v3829
    %v3930 = vpack.c.b16 %v3834, %v3830
    %v3931 = vpack.c.b16 %v3835, %v3831
    %v3932 = vpack.c.b16 %v3836, %v3832
    %v3933 = vpack.c.b16 %v3841, %v3837
    %v3934 = vpack.c.b16 %v3842, %v3838
    %v3935 = vpack.c.b16 %v3843, %v3839
    %v3936 = vpack.c.b16 %v3844, %v3840
    %v3937 = vpack.c.b16 %v3849, %v3845
    %v3938 = vpack.c.b16 %v3850, %v3846
    %v3939 = vpack.c.b16 %v3851, %v3847
    %v3940 = vpack.c.b16 %v3852, %v3848
    %v3941 = vpack.c.b16 %v3857, %v3853
    %v3942 = vpack.c.b16 %v3858, %v3854
    %v3943 = vpack.c.b16 %v3859, %v3855
    %v3944 = vpack.c.b16 %v3860, %v3856
    %v3945 = vpack.c.b16 %v3865, %v3861
    %v3946 = vpack.c.b16 %v3866, %v3862
    %v3947 = vpack.c.b16 %v3867, %v3863
    %v3948 = vpack.c.b16 %v3868, %v3864
    %v3949 = vpack.c.b16 %v3873, %v3869
    %v3950 = vpack.c.b16 %v3874, %v3870
    %v3951 = vpack.c.b16 %v3875, %v3871
    %v3952 = vpack.c.b16 %v3876, %v3872
    %v3953 = vpack.c.b16 %v3881, %v3877
    %v3954 = vpack.c.b16 %v3882, %v3878
    %v3955 = vpack.c.b16 %v3883, %v3879
    %v3956 = vpack.c.b16 %v3884, %v3880
    %v3957 = vpack.c.b16 %v3889, %v3885
    %v3958 = vpack.c.b16 %v3890, %v3886
    %v3959 = vpack.c.b16 %v3891, %v3887
    %v3960 = vpack.c.b16 %v3892, %v3888
    %v3961 = vpack.c.b16 %v3897, %v3893
    %v3962 = vpack.c.b16 %v3898, %v3894
    %v3963 = vpack.c.b16 %v3899, %v3895
    %v3964 = vpack.c.b16 %v3900, %v3896
    %4029 = vmatprep.subr.bf16.mxu0 %v3902
    %4030 = vmatpush1.bf16.msra.mxu0 %v3901
    %4031 = vmatprep.subr.bf16.mxu0 %v3906
    %4032 = vmatpush1.bf16.msra.mxu0 %v3905
    %4033 = vmatprep.subr.bf16.mxu0 %v3910
    %4034 = vmatpush1.bf16.msra.mxu0 %v3909
    %4035 = vmatprep.subr.bf16.mxu0 %v3914
    %4036 = vmatpush1.bf16.msra.mxu0 %v3913
    %4037 = vmatprep.subr.bf16.mxu0 %v3918
    %4038 = vmatpush1.bf16.msra.mxu0 %v3917
    %4039 = vmatprep.subr.bf16.mxu0 %v3922
    %4040 = vmatpush1.bf16.msra.mxu0 %v3921
    %4041 = vmatprep.subr.bf16.mxu0 %v3926
    %4042 = vmatpush1.bf16.msra.mxu0 %v3925
    %4043 = vmatprep.subr.bf16.mxu0 %v3930
    %4044 = vmatpush1.bf16.msra.mxu0 %v3929
    %4045 = vmatprep.subr.bf16.mxu0 %v3934
    %4046 = vmatpush1.bf16.msra.mxu0 %v3933
    %4047 = vmatprep.subr.bf16.mxu0 %v3938
    %4048 = vmatpush1.bf16.msra.mxu0 %v3937
    %4049 = vmatprep.subr.bf16.mxu0 %v3942
    %4050 = vmatpush1.bf16.msra.mxu0 %v3941
    %4051 = vmatprep.subr.bf16.mxu0 %v3946
    %4052 = vmatpush1.bf16.msra.mxu0 %v3945
    %4053 = vmatprep.subr.bf16.mxu0 %v3950
    %4054 = vmatpush1.bf16.msra.mxu0 %v3949
    %4055 = vmatprep.subr.bf16.mxu0 %v3954
    %4056 = vmatpush1.bf16.msra.mxu0 %v3953
    %4057 = vmatprep.subr.bf16.mxu0 %v3958
    %4058 = vmatpush1.bf16.msra.mxu0 %v3957
    %4059 = vmatprep.subr.bf16.mxu0 %v3962
    %4060 = vmatpush1.bf16.msra.mxu0 %v3961
    %4061 = vmatprep.mubr.bf16.mxu0 %v3704
    %4062 = vmatmul.mubr.bf16.gmra.mrb[0].mxu0 %v3701
    %v4063 = vpop.f32.mrb[0].mxu0
    %v4064 = vadd.f32 0.0, %v4063
    %v4065 = vpop.f32.mrb[0].mxu0
    %v4066 = vadd.f32 0.0, %v4065
    %v4067 = vpop.f32.mrb[0].mxu0
    %v4068 = vadd.f32 0.0, %v4067
    %v4069 = vpop.f32.mrb[0].mxu0
    %v4070 = vadd.f32 0.0, %v4069
    %4071 = vmatprep.mubr.bf16.mxu0 %v3703
    %4072 = vmatmul.mubr.bf16.gmra.mrb[0].mxu0 %v3700
    %v4073 = vpop.f32.mrb[0].mxu0
    %v4074 = vadd.f32 0.0, %v4073
    %v4075 = vpop.f32.mrb[0].mxu0
    %v4076 = vadd.f32 0.0, %v4075
    %v4077 = vpop.f32.mrb[0].mxu0
    %v4078 = vpop.f32.mrb[0].mxu0
    %4079 = vdwg.mxu0
    %4080 = vmatprep.subr.bf16.mxu0 %v3904
    %4081 = vmatpush1.bf16.msra.mxu0 %v3903
    %4082 = vmatprep.subr.bf16.mxu0 %v3908
    %4083 = vmatpush1.bf16.msra.mxu0 %v3907
    %4084 = vmatprep.subr.bf16.mxu0 %v3912
    %4085 = vmatpush1.bf16.msra.mxu0 %v3911
    %4086 = vmatprep.subr.bf16.mxu0 %v3916
    %4087 = vmatpush1.bf16.msra.mxu0 %v3915
    %4088 = vmatprep.subr.bf16.mxu0 %v3920
    %4089 = vmatpush1.bf16.msra.mxu0 %v3919
    %4090 = vmatprep.subr.bf16.mxu0 %v3924
    %4091 = vmatpush1.bf16.msra.mxu0 %v3923
    %4092 = vmatprep.subr.bf16.mxu0 %v3928
    %4093 = vmatpush1.bf16.msra.mxu0 %v3927
    %4094 = vmatprep.subr.bf16.mxu0 %v3932
    %4095 = vmatpush1.bf16.msra.mxu0 %v3931
    %4096 = vmatprep.subr.bf16.mxu0 %v3936
    %4097 = vmatpush1.bf16.msra.mxu0 %v3935
    %4098 = vmatprep.subr.bf16.mxu0 %v3940
    %4099 = vmatpush1.bf16.msra.mxu0 %v3939
    %4100 = vmatprep.subr.bf16.mxu0 %v3944
    %4101 = vmatpush1.bf16.msra.mxu0 %v3943
    %4102 = vmatprep.subr.bf16.mxu0 %v3948
    %4103 = vmatpush1.bf16.msra.mxu0 %v3947
    %4104 = vmatprep.subr.bf16.mxu0 %v3952
    %4105 = vmatpush1.bf16.msra.mxu0 %v3951
    %4106 = vmatprep.subr.bf16.mxu0 %v3956
    %4107 = vmatpush1.bf16.msra.mxu0 %v3955
    %4108 = vmatprep.subr.bf16.mxu0 %v3960
    %4109 = vmatpush1.bf16.msra.mxu0 %v3959
    %4110 = vmatprep.subr.bf16.mxu0 %v3964
    %4111 = vmatpush1.bf16.msra.mxu0 %v3963
    %4112 = vmatprep.mubr.bf16.mxu0 %v3704
    %4113 = vmatmul.mubr.bf16.gmra.mrb[0].mxu0 %v3701
    %v4114 = vpop.f32.mrb[0].mxu0
    %v4115 = vadd.f32 0.0, %v4114
    %v4116 = vpop.f32.mrb[0].mxu0
    %v4117 = vadd.f32 0.0, %v4116
    %v4118 = vpop.f32.mrb[0].mxu0
    %v4119 = vadd.f32 0.0, %v4118
    %v4120 = vpop.f32.mrb[0].mxu0
    %v4121 = vadd.f32 0.0, %v4120
    %4122 = vmatprep.mubr.bf16.mxu0 %v3703
    %4123 = vmatmul.mubr.bf16.gmra.mrb[0].mxu0 %v3700
    %v4124 = vpop.f32.mrb[0].mxu0
    %v4125 = vadd.f32 0.0, %v4124
    %v4126 = vpop.f32.mrb[0].mxu0
    %v4127 = vadd.f32 0.0, %v4126
    %v4128 = vpop.f32.mrb[0].mxu0
    %v4129 = vpop.f32.mrb[0].mxu0
    %4130 = vdwg.mxu0
    %v4131 = vadd.f32 %v3622, %v4064
    %v4132 = vadd.f32 %v3623, %v4066
    %v4133 = vadd.f32 %v3624, %v4115
    %v4134 = vadd.f32 %v3625, %v4117
    %v4135 = vadd.f32 %v3626, %v4068
    %v4136 = vadd.f32 %v3627, %v4070
    %v4137 = vadd.f32 %v3628, %v4119
    %v4138 = vadd.f32 %v3629, %v4121
    %v4139 = vadd.f32 %v3630, %v4074
    %v4140 = vadd.f32 %v3631, %v4076
    %v4141 = vadd.f32 %v3632, %v4125
    %v4142 = vadd.f32 %v3633, %v4127
    %s4143 = scalar_lea.vmem [#allocation5], 2048
    %v4144 = vld [vmem:[%s4143] sm:$0xff]
    %v4145 = vld [vmem:[%s4143 + $0x8] sm:$0xff]
    %v4146 = vld [vmem:[%s4143 + $0x10] sm:$0xff]
    %v4147 = vld [vmem:[%s4143 + $0x18] sm:$0xff]
    %v4148 = vld [vmem:[%s4143 + $0x20] sm:$0xff]
    %v4149 = vld [vmem:[%s4143 + $0x28] sm:$0xff]
    %v4150 = vld [vmem:[%s4143 + $0x30] sm:$0xff]
    %v4151 = vld [vmem:[%s4143 + $0x38] sm:$0xff]
    %v4152 = vld [vmem:[%s4143 + $0x40] sm:$0xff]
    %v4153 = vld [vmem:[%s4143 + $0x48] sm:$0xff]
    %v4154 = vld [vmem:[%s4143 + $0x50] sm:$0xff]
    %v4155 = vld [vmem:[%s4143 + $0x58] sm:$0xff]
    %v4156 = vld [vmem:[%s4143 + $0x60] sm:$0xff]
    %v4157 = vld [vmem:[%s4143 + $0x68] sm:$0xff]
    %v4158 = vld [vmem:[%s4143 + $0x70] sm:$0xff]
    %v4159 = vld [vmem:[%s4143 + $0x78] sm:$0xff]
    %v4160 = vld [vmem:[%s4143 + $0x80] sm:$0xff]
    %v4161 = vld [vmem:[%s4143 + $0x88] sm:$0xff]
    %v4162 = vld [vmem:[%s4143 + $0x90] sm:$0xff]
    %v4163 = vld [vmem:[%s4143 + $0x98] sm:$0xff]
    %v4164 = vld [vmem:[%s4143 + $0xa0] sm:$0xff]
    %v4165 = vld [vmem:[%s4143 + $0xa8] sm:$0xff]
    %v4166 = vld [vmem:[%s4143 + $0xb0] sm:$0xff]
    %v4167 = vld [vmem:[%s4143 + $0xb8] sm:$0xff]
    %v4168 = vld [vmem:[%s4143 + $0xc0] sm:$0xff]
    %v4169 = vld [vmem:[%s4143 + $0xc8] sm:$0xff]
    %v4170 = vld [vmem:[%s4143 + $0xd0] sm:$0xff]
    %v4171 = vld [vmem:[%s4143 + $0xd8] sm:$0xff]
    %v4172 = vld [vmem:[%s4143 + $0xe0] sm:$0xff]
    %v4173 = vld [vmem:[%s4143 + $0xe8] sm:$0xff]
    %v4174 = vld [vmem:[%s4143 + $0xf0] sm:$0xff]
    %v4175 = vld [vmem:[%s4143 + $0xf8] sm:$0xff]
    %v4176 = vld [vmem:[%s4143 + $0x100] sm:$0xff]
    %v4177 = vld [vmem:[%s4143 + $0x108] sm:$0xff]
    %v4178 = vld [vmem:[%s4143 + $0x110] sm:$0xff]
    %v4179 = vld [vmem:[%s4143 + $0x118] sm:$0xff]
    %v4180 = vld [vmem:[%s4143 + $0x120] sm:$0xff]
    %v4181 = vld [vmem:[%s4143 + $0x128] sm:$0xff]
    %v4182 = vld [vmem:[%s4143 + $0x130] sm:$0xff]
    %v4183 = vld [vmem:[%s4143 + $0x138] sm:$0xff]
    %v4184 = vld [vmem:[%s4143 + $0x140] sm:$0xff]
    %v4185 = vld [vmem:[%s4143 + $0x148] sm:$0xff]
    %v4186 = vld [vmem:[%s4143 + $0x150] sm:$0xff]
    %v4187 = vld [vmem:[%s4143 + $0x158] sm:$0xff]
    %v4188 = vld [vmem:[%s4143 + $0x160] sm:$0xff]
    %v4189 = vld [vmem:[%s4143 + $0x168] sm:$0xff]
    %v4190 = vld [vmem:[%s4143 + $0x170] sm:$0xff]
    %v4191 = vld [vmem:[%s4143 + $0x178] sm:$0xff]
    %v4192 = vld [vmem:[%s4143 + $0x180] sm:$0xff]
    %v4193 = vld [vmem:[%s4143 + $0x188] sm:$0xff]
    %v4194 = vld [vmem:[%s4143 + $0x190] sm:$0xff]
    %v4195 = vld [vmem:[%s4143 + $0x198] sm:$0xff]
    %v4196 = vld [vmem:[%s4143 + $0x1a0] sm:$0xff]
    %v4197 = vld [vmem:[%s4143 + $0x1a8] sm:$0xff]
    %v4198 = vld [vmem:[%s4143 + $0x1b0] sm:$0xff]
    %v4199 = vld [vmem:[%s4143 + $0x1b8] sm:$0xff]
    %v4200 = vld [vmem:[%s4143 + $0x1c0] sm:$0xff]
    %v4201 = vld [vmem:[%s4143 + $0x1c8] sm:$0xff]
    %v4202 = vld [vmem:[%s4143 + $0x1d0] sm:$0xff]
    %v4203 = vld [vmem:[%s4143 + $0x1d8] sm:$0xff]
    %v4204 = vld [vmem:[%s4143 + $0x1e0] sm:$0xff]
    %v4205 = vld [vmem:[%s4143 + $0x1e8] sm:$0xff]
    %v4206 = vld [vmem:[%s4143 + $0x1f0] sm:$0xff]
    %v4207 = vld [vmem:[%s4143 + $0x1f8] sm:$0xff]
    %vm4208 = vcmask 1043456
    %v4209 = vrot.slane %v2134, 4
    %v4210 = vrot.slane %v2136, 4
    %v4211 = vsel %vm4208, %v4209, %v4210
    %v4212 = vrot.slane %v2135, 4
    %v4213 = vrot.slane %v2137, 4
    %v4214 = vsel %vm4208, %v4212, %v4213
    %v4283 = vunpack.c.l.b16 %v4144
    %v4284 = vunpack.c.h.b16 %v4144
    %v4285 = vunpack.c.l.b16 %v4145
    %v4286 = vunpack.c.h.b16 %v4145
    %v4287 = vunpack.c.l.b16 %v4146
    %v4288 = vunpack.c.h.b16 %v4146
    %v4289 = vunpack.c.l.b16 %v4147
    %v4290 = vunpack.c.h.b16 %v4147
    %v4291 = vunpack.c.l.b16 %v4148
    %v4292 = vunpack.c.h.b16 %v4148
    %v4293 = vunpack.c.l.b16 %v4149
    %v4294 = vunpack.c.h.b16 %v4149
    %v4295 = vunpack.c.l.b16 %v4150
    %v4296 = vunpack.c.h.b16 %v4150
    %v4297 = vunpack.c.l.b16 %v4151
    %v4298 = vunpack.c.h.b16 %v4151
    %v4299 = vunpack.c.l.b16 %v4152
    %v4300 = vunpack.c.h.b16 %v4152
    %v4301 = vunpack.c.l.b16 %v4153
    %v4302 = vunpack.c.h.b16 %v4153
    %v4303 = vunpack.c.l.b16 %v4154
    %v4304 = vunpack.c.h.b16 %v4154
    %v4305 = vunpack.c.l.b16 %v4155
    %v4306 = vunpack.c.h.b16 %v4155
    %v4307 = vunpack.c.l.b16 %v4156
    %v4308 = vunpack.c.h.b16 %v4156
    %v4309 = vunpack.c.l.b16 %v4157
    %v4310 = vunpack.c.h.b16 %v4157
    %v4311 = vunpack.c.l.b16 %v4158
    %v4312 = vunpack.c.h.b16 %v4158
    %v4313 = vunpack.c.l.b16 %v4159
    %v4314 = vunpack.c.h.b16 %v4159
    %v4315 = vunpack.c.l.b16 %v4160
    %v4316 = vunpack.c.h.b16 %v4160
    %v4317 = vunpack.c.l.b16 %v4161
    %v4318 = vunpack.c.h.b16 %v4161
    %v4319 = vunpack.c.l.b16 %v4162
    %v4320 = vunpack.c.h.b16 %v4162
    %v4321 = vunpack.c.l.b16 %v4163
    %v4322 = vunpack.c.h.b16 %v4163
    %v4323 = vunpack.c.l.b16 %v4164
    %v4324 = vunpack.c.h.b16 %v4164
    %v4325 = vunpack.c.l.b16 %v4165
    %v4326 = vunpack.c.h.b16 %v4165
    %v4327 = vunpack.c.l.b16 %v4166
    %v4328 = vunpack.c.h.b16 %v4166
    %v4329 = vunpack.c.l.b16 %v4167
    %v4330 = vunpack.c.h.b16 %v4167
    %v4331 = vunpack.c.l.b16 %v4168
    %v4332 = vunpack.c.h.b16 %v4168
    %v4333 = vunpack.c.l.b16 %v4169
    %v4334 = vunpack.c.h.b16 %v4169
    %v4335 = vunpack.c.l.b16 %v4170
    %v4336 = vunpack.c.h.b16 %v4170
    %v4337 = vunpack.c.l.b16 %v4171
    %v4338 = vunpack.c.h.b16 %v4171
    %v4339 = vunpack.c.l.b16 %v4172
    %v4340 = vunpack.c.h.b16 %v4172
    %v4341 = vunpack.c.l.b16 %v4173
    %v4342 = vunpack.c.h.b16 %v4173
    %v4343 = vunpack.c.l.b16 %v4174
    %v4344 = vunpack.c.h.b16 %v4174
    %v4345 = vunpack.c.l.b16 %v4175
    %v4346 = vunpack.c.h.b16 %v4175
    %v4347 = vunpack.c.l.b16 %v4176
    %v4348 = vunpack.c.h.b16 %v4176
    %v4349 = vunpack.c.l.b16 %v4177
    %v4350 = vunpack.c.h.b16 %v4177
    %v4351 = vunpack.c.l.b16 %v4178
    %v4352 = vunpack.c.h.b16 %v4178
    %v4353 = vunpack.c.l.b16 %v4179
    %v4354 = vunpack.c.h.b16 %v4179
    %v4355 = vunpack.c.l.b16 %v4180
    %v4356 = vunpack.c.h.b16 %v4180
    %v4357 = vunpack.c.l.b16 %v4181
    %v4358 = vunpack.c.h.b16 %v4181
    %v4359 = vunpack.c.l.b16 %v4182
    %v4360 = vunpack.c.h.b16 %v4182
    %v4361 = vunpack.c.l.b16 %v4183
    %v4362 = vunpack.c.h.b16 %v4183
    %v4363 = vunpack.c.l.b16 %v4184
    %v4364 = vunpack.c.h.b16 %v4184
    %v4365 = vunpack.c.l.b16 %v4185
    %v4366 = vunpack.c.h.b16 %v4185
    %v4367 = vunpack.c.l.b16 %v4186
    %v4368 = vunpack.c.h.b16 %v4186
    %v4369 = vunpack.c.l.b16 %v4187
    %v4370 = vunpack.c.h.b16 %v4187
    %v4371 = vunpack.c.l.b16 %v4188
    %v4372 = vunpack.c.h.b16 %v4188
    %v4373 = vunpack.c.l.b16 %v4189
    %v4374 = vunpack.c.h.b16 %v4189
    %v4375 = vunpack.c.l.b16 %v4190
    %v4376 = vunpack.c.h.b16 %v4190
    %v4377 = vunpack.c.l.b16 %v4191
    %v4378 = vunpack.c.h.b16 %v4191
    %v4379 = vunpack.c.l.b16 %v4192
    %v4380 = vunpack.c.h.b16 %v4192
    %v4381 = vunpack.c.l.b16 %v4193
    %v4382 = vunpack.c.h.b16 %v4193
    %v4383 = vunpack.c.l.b16 %v4194
    %v4384 = vunpack.c.h.b16 %v4194
    %v4385 = vunpack.c.l.b16 %v4195
    %v4386 = vunpack.c.h.b16 %v4195
    %v4387 = vunpack.c.l.b16 %v4196
    %v4388 = vunpack.c.h.b16 %v4196
    %v4389 = vunpack.c.l.b16 %v4197
    %v4390 = vunpack.c.h.b16 %v4197
    %v4391 = vunpack.c.l.b16 %v4198
    %v4392 = vunpack.c.h.b16 %v4198
    %v4393 = vunpack.c.l.b16 %v4199
    %v4394 = vunpack.c.h.b16 %v4199
    %v4395 = vunpack.c.l.b16 %v4200
    %v4396 = vunpack.c.h.b16 %v4200
    %v4397 = vunpack.c.l.b16 %v4201
    %v4398 = vunpack.c.h.b16 %v4201
    %v4399 = vunpack.c.l.b16 %v4202
    %v4400 = vunpack.c.h.b16 %v4202
    %v4401 = vunpack.c.l.b16 %v4203
    %v4402 = vunpack.c.h.b16 %v4203
    %v4403 = vunpack.c.l.b16 %v4204
    %v4404 = vunpack.c.h.b16 %v4204
    %v4405 = vunpack.c.l.b16 %v4205
    %v4406 = vunpack.c.h.b16 %v4205
    %v4407 = vunpack.c.l.b16 %v4206
    %v4408 = vunpack.c.h.b16 %v4206
    %v4409 = vunpack.c.l.b16 %v4207
    %v4410 = vunpack.c.h.b16 %v4207
    %v4411 = vpack.c.b16 %v4287, %v4283
    %v4412 = vpack.c.b16 %v4288, %v4284
    %v4413 = vpack.c.b16 %v4289, %v4285
    %v4414 = vpack.c.b16 %v4290, %v4286
    %v4415 = vpack.c.b16 %v4295, %v4291
    %v4416 = vpack.c.b16 %v4296, %v4292
    %v4417 = vpack.c.b16 %v4297, %v4293
    %v4418 = vpack.c.b16 %v4298, %v4294
    %v4419 = vpack.c.b16 %v4303, %v4299
    %v4420 = vpack.c.b16 %v4304, %v4300
    %v4421 = vpack.c.b16 %v4305, %v4301
    %v4422 = vpack.c.b16 %v4306, %v4302
    %v4423 = vpack.c.b16 %v4311, %v4307
    %v4424 = vpack.c.b16 %v4312, %v4308
    %v4425 = vpack.c.b16 %v4313, %v4309
    %v4426 = vpack.c.b16 %v4314, %v4310
    %v4427 = vpack.c.b16 %v4319, %v4315
    %v4428 = vpack.c.b16 %v4320, %v4316
    %v4429 = vpack.c.b16 %v4321, %v4317
    %v4430 = vpack.c.b16 %v4322, %v4318
    %v4431 = vpack.c.b16 %v4327, %v4323
    %v4432 = vpack.c.b16 %v4328, %v4324
    %v4433 = vpack.c.b16 %v4329, %v4325
    %v4434 = vpack.c.b16 %v4330, %v4326
    %v4435 = vpack.c.b16 %v4335, %v4331
    %v4436 = vpack.c.b16 %v4336, %v4332
    %v4437 = vpack.c.b16 %v4337, %v4333
    %v4438 = vpack.c.b16 %v4338, %v4334
    %v4439 = vpack.c.b16 %v4343, %v4339
    %v4440 = vpack.c.b16 %v4344, %v4340
    %v4441 = vpack.c.b16 %v4345, %v4341
    %v4442 = vpack.c.b16 %v4346, %v4342
    %v4443 = vpack.c.b16 %v4351, %v4347
    %v4444 = vpack.c.b16 %v4352, %v4348
    %v4445 = vpack.c.b16 %v4353, %v4349
    %v4446 = vpack.c.b16 %v4354, %v4350
    %v4447 = vpack.c.b16 %v4359, %v4355
    %v4448 = vpack.c.b16 %v4360, %v4356
    %v4449 = vpack.c.b16 %v4361, %v4357
    %v4450 = vpack.c.b16 %v4362, %v4358
    %v4451 = vpack.c.b16 %v4367, %v4363
    %v4452 = vpack.c.b16 %v4368, %v4364
    %v4453 = vpack.c.b16 %v4369, %v4365
    %v4454 = vpack.c.b16 %v4370, %v4366
    %v4455 = vpack.c.b16 %v4375, %v4371
    %v4456 = vpack.c.b16 %v4376, %v4372
    %v4457 = vpack.c.b16 %v4377, %v4373
    %v4458 = vpack.c.b16 %v4378, %v4374
    %v4459 = vpack.c.b16 %v4383, %v4379
    %v4460 = vpack.c.b16 %v4384, %v4380
    %v4461 = vpack.c.b16 %v4385, %v4381
    %v4462 = vpack.c.b16 %v4386, %v4382
    %v4463 = vpack.c.b16 %v4391, %v4387
    %v4464 = vpack.c.b16 %v4392, %v4388
    %v4465 = vpack.c.b16 %v4393, %v4389
    %v4466 = vpack.c.b16 %v4394, %v4390
    %v4467 = vpack.c.b16 %v4399, %v4395
    %v4468 = vpack.c.b16 %v4400, %v4396
    %v4469 = vpack.c.b16 %v4401, %v4397
    %v4470 = vpack.c.b16 %v4402, %v4398
    %v4471 = vpack.c.b16 %v4407, %v4403
    %v4472 = vpack.c.b16 %v4408, %v4404
    %v4473 = vpack.c.b16 %v4409, %v4405
    %v4474 = vpack.c.b16 %v4410, %v4406
    %4539 = vmatprep.subr.bf16.mxu0 %v4412
    %4540 = vmatpush1.bf16.msra.mxu0 %v4411
    %4541 = vmatprep.subr.bf16.mxu0 %v4416
    %4542 = vmatpush1.bf16.msra.mxu0 %v4415
    %4543 = vmatprep.subr.bf16.mxu0 %v4420
    %4544 = vmatpush1.bf16.msra.mxu0 %v4419
    %4545 = vmatprep.subr.bf16.mxu0 %v4424
    %4546 = vmatpush1.bf16.msra.mxu0 %v4423
    %4547 = vmatprep.subr.bf16.mxu0 %v4428
    %4548 = vmatpush1.bf16.msra.mxu0 %v4427
    %4549 = vmatprep.subr.bf16.mxu0 %v4432
    %4550 = vmatpush1.bf16.msra.mxu0 %v4431
    %4551 = vmatprep.subr.bf16.mxu0 %v4436
    %4552 = vmatpush1.bf16.msra.mxu0 %v4435
    %4553 = vmatprep.subr.bf16.mxu0 %v4440
    %4554 = vmatpush1.bf16.msra.mxu0 %v4439
    %4555 = vmatprep.subr.bf16.mxu0 %v4444
    %4556 = vmatpush1.bf16.msra.mxu0 %v4443
    %4557 = vmatprep.subr.bf16.mxu0 %v4448
    %4558 = vmatpush1.bf16.msra.mxu0 %v4447
    %4559 = vmatprep.subr.bf16.mxu0 %v4452
    %4560 = vmatpush1.bf16.msra.mxu0 %v4451
    %4561 = vmatprep.subr.bf16.mxu0 %v4456
    %4562 = vmatpush1.bf16.msra.mxu0 %v4455
    %4563 = vmatprep.subr.bf16.mxu0 %v4460
    %4564 = vmatpush1.bf16.msra.mxu0 %v4459
    %4565 = vmatprep.subr.bf16.mxu0 %v4464
    %4566 = vmatpush1.bf16.msra.mxu0 %v4463
    %4567 = vmatprep.subr.bf16.mxu0 %v4468
    %4568 = vmatpush1.bf16.msra.mxu0 %v4467
    %4569 = vmatprep.subr.bf16.mxu0 %v4472
    %4570 = vmatpush1.bf16.msra.mxu0 %v4471
    %4571 = vmatprep.mubr.bf16.mxu0 %v4214
    %4572 = vmatmul.mubr.bf16.gmra.mrb[0].mxu0 %v4211
    %v4573 = vpop.f32.mrb[0].mxu0
    %v4574 = vadd.f32 0.0, %v4573
    %v4575 = vpop.f32.mrb[0].mxu0
    %v4576 = vadd.f32 0.0, %v4575
    %v4577 = vpop.f32.mrb[0].mxu0
    %v4578 = vadd.f32 0.0, %v4577
    %v4579 = vpop.f32.mrb[0].mxu0
    %v4580 = vadd.f32 0.0, %v4579
    %4581 = vmatprep.mubr.bf16.mxu0 %v4213
    %4582 = vmatmul.mubr.bf16.gmra.mrb[0].mxu0 %v4210
    %v4583 = vpop.f32.mrb[0].mxu0
    %v4584 = vadd.f32 0.0, %v4583
    %v4585 = vpop.f32.mrb[0].mxu0
    %v4586 = vadd.f32 0.0, %v4585
    %v4587 = vpop.f32.mrb[0].mxu0
    %v4588 = vpop.f32.mrb[0].mxu0
    %4589 = vdwg.mxu0
    %4590 = vmatprep.subr.bf16.mxu0 %v4414
    %4591 = vmatpush1.bf16.msra.mxu0 %v4413
    %4592 = vmatprep.subr.bf16.mxu0 %v4418
    %4593 = vmatpush1.bf16.msra.mxu0 %v4417
    %4594 = vmatprep.subr.bf16.mxu0 %v4422
    %4595 = vmatpush1.bf16.msra.mxu0 %v4421
    %4596 = vmatprep.subr.bf16.mxu0 %v4426
    %4597 = vmatpush1.bf16.msra.mxu0 %v4425
    %4598 = vmatprep.subr.bf16.mxu0 %v4430
    %4599 = vmatpush1.bf16.msra.mxu0 %v4429
    %4600 = vmatprep.subr.bf16.mxu0 %v4434
    %4601 = vmatpush1.bf16.msra.mxu0 %v4433
    %4602 = vmatprep.subr.bf16.mxu0 %v4438
    %4603 = vmatpush1.bf16.msra.mxu0 %v4437
    %4604 = vmatprep.subr.bf16.mxu0 %v4442
    %4605 = vmatpush1.bf16.msra.mxu0 %v4441
    %4606 = vmatprep.subr.bf16.mxu0 %v4446
    %4607 = vmatpush1.bf16.msra.mxu0 %v4445
    %4608 = vmatprep.subr.bf16.mxu0 %v4450
    %4609 = vmatpush1.bf16.msra.mxu0 %v4449
    %4610 = vmatprep.subr.bf16.mxu0 %v4454
    %4611 = vmatpush1.bf16.msra.mxu0 %v4453
    %4612 = vmatprep.subr.bf16.mxu0 %v4458
    %4613 = vmatpush1.bf16.msra.mxu0 %v4457
    %4614 = vmatprep.subr.bf16.mxu0 %v4462
    %4615 = vmatpush1.bf16.msra.mxu0 %v4461
    %4616 = vmatprep.subr.bf16.mxu0 %v4466
    %4617 = vmatpush1.bf16.msra.mxu0 %v4465
    %4618 = vmatprep.subr.bf16.mxu0 %v4470
    %4619 = vmatpush1.bf16.msra.mxu0 %v4469
    %4620 = vmatprep.subr.bf16.mxu0 %v4474
    %4621 = vmatpush1.bf16.msra.mxu0 %v4473
    %4622 = vmatprep.mubr.bf16.mxu0 %v4214
    %4623 = vmatmul.mubr.bf16.gmra.mrb[0].mxu0 %v4211
    %v4624 = vpop.f32.mrb[0].mxu0
    %v4625 = vadd.f32 0.0, %v4624
    %v4626 = vpop.f32.mrb[0].mxu0
    %v4627 = vadd.f32 0.0, %v4626
    %v4628 = vpop.f32.mrb[0].mxu0
    %v4629 = vadd.f32 0.0, %v4628
    %v4630 = vpop.f32.mrb[0].mxu0
    %v4631 = vadd.f32 0.0, %v4630
    %4632 = vmatprep.mubr.bf16.mxu0 %v4213
    %4633 = vmatmul.mubr.bf16.gmra.mrb[0].mxu0 %v4210
    %v4634 = vpop.f32.mrb[0].mxu0
    %v4635 = vadd.f32 0.0, %v4634
    %v4636 = vpop.f32.mrb[0].mxu0
    %v4637 = vadd.f32 0.0, %v4636
    %v4638 = vpop.f32.mrb[0].mxu0
    %v4639 = vpop.f32.mrb[0].mxu0
    %4640 = vdwg.mxu0
    %v4641 = vadd.f32 %v4131, %v4574
    %v4642 = vadd.f32 %v4132, %v4576
    %v4643 = vadd.f32 %v4133, %v4625
    %v4644 = vadd.f32 %v4134, %v4627
    %v4645 = vadd.f32 %v4135, %v4578
    %v4646 = vadd.f32 %v4136, %v4580
    %v4647 = vadd.f32 %v4137, %v4629
    %v4648 = vadd.f32 %v4138, %v4631
    %v4649 = vadd.f32 %v4139, %v4584
    %v4650 = vadd.f32 %v4140, %v4586
    %v4651 = vadd.f32 %v4141, %v4635
    %v4652 = vadd.f32 %v4142, %v4637
    %v4653 = vld [vmem:[#allocation7] sm:$0xf]
    %v4655 = vlaneseq
    %v4656 = vshrl.u32 %v4655, 7
    %v4657 = vsub.s32 0, %v4656
    %v4658 = vrot.slane %v4653, %v4657
    %v4659 = vlaneseq
    %v4660 = vshrl.u32 %v4659, 7
    %v4661 = vsub.s32 1, %v4660
    %v4662 = vrot.slane %v4653, %v4661
    %v4663 = vlaneseq
    %v4664 = vshrl.u32 %v4663, 7
    %v4665 = vsub.s32 2, %v4664
    %v4666 = vrot.slane %v4653, %v4665
    %v4667 = vlaneseq
    %v4668 = vshrl.u32 %v4667, 7
    %v4669 = vsub.s32 3, %v4668
    %v4670 = vrot.slane %v4653, %v4669
    %v4675 = vadd.f32 %v4641, %v4658
    %v4676 = vadd.f32 %v4642, %v4662
    %v4677 = vadd.f32 %v4643, %v4666
    %v4678 = vadd.f32 %v4644, %v4670
    %v4679 = vadd.f32 %v4645, %v4658
    %v4680 = vadd.f32 %v4646, %v4662
    %v4681 = vadd.f32 %v4647, %v4666
    %v4682 = vadd.f32 %v4648, %v4670
    %v4683 = vadd.f32 %v4649, %v4658
    %v4684 = vadd.f32 %v4650, %v4662
    %v4685 = vadd.f32 %v4651, %v4666
    %v4686 = vadd.f32 %v4652, %v4670
    %v4687 = vmax.f32 %v4675, 0.0
    %v4688 = vmax.f32 %v4676, 0.0
    %v4689 = vmax.f32 %v4677, 0.0
    %v4690 = vmax.f32 %v4678, 0.0
    %v4691 = vmax.f32 %v4679, 0.0
    %v4692 = vmax.f32 %v4680, 0.0
    %v4693 = vmax.f32 %v4681, 0.0
    %v4694 = vmax.f32 %v4682, 0.0
    %v4695 = vmax.f32 %v4683, 0.0
    %v4696 = vmax.f32 %v4684, 0.0
    %v4697 = vmax.f32 %v4685, 0.0
    %v4698 = vmax.f32 %v4686, 0.0
    %v4699 = vmax.f32 %v4687, %v4689
    %v4700 = vmax.f32 %v4688, %v4690
    %v4701 = vmax.f32 %v4691, %v4693
    %v4702 = vmax.f32 %v4692, %v4694
    %v4703 = vmax.f32 %v4695, %v4697
    %v4704 = vmax.f32 %v4696, %v4698
    %v4707 = vrot.slane %v4699, 2
    %v4708 = vrot.slane %v4700, 2
    %v4711 = vmax.f32 %v4699, %v4707
    %v4712 = vmax.f32 %v4700, %v4708
    %v4713 = vpack.c.bf16 %v4711, %v4711
    %v4714 = vpack.c.bf16 %v4712, %v4712
    %v4715 = vld [vmem:[%s5] sm:$0xf]
    %v4716 = vld [vmem:[%s5 + $0x4] sm:$0xf]
    %v4717 = vld [vmem:[%s5 + $0x8] sm:$0xf]
    %v4718 = vld [vmem:[%s5 + $0xc] sm:$0xf]
    %v4719 = vld [vmem:[%s5 + $0x10] sm:$0xf]
    %v4720 = vld [vmem:[%s5 + $0x14] sm:$0xf]
    %v4721 = vld [vmem:[%s5 + $0x18] sm:$0xf]
    %v4722 = vld [vmem:[%s5 + $0x1c] sm:$0xf]
    %v4723 = vld [vmem:[%s5 + $0x20] sm:$0xf]
    %v4724 = vld [vmem:[%s5 + $0x24] sm:$0xf]
    %v4725 = vld [vmem:[%s5 + $0x28] sm:$0xf]
    %v4726 = vld [vmem:[%s5 + $0x2c] sm:$0xf]
    %v4727 = vld [vmem:[%s5 + $0x30] sm:$0xf]
    %v4728 = vld [vmem:[%s5 + $0x34] sm:$0xf]
    %v4729 = vld [vmem:[%s5 + $0x38] sm:$0xf]
    %v4730 = vld [vmem:[%s5 + $0x3c] sm:$0xf]
    %v4731 = vld [vmem:[%s5 + $0x40] sm:$0xf]
    %v4732 = vld [vmem:[%s5 + $0x44] sm:$0xf]
    %v4733 = vld [vmem:[%s5 + $0x48] sm:$0xf]
    %v4734 = vld [vmem:[%s5 + $0x4c] sm:$0xf]
    %v4735 = vld [vmem:[%s5 + $0x50] sm:$0xf]
    %v4736 = vld [vmem:[%s5 + $0x54] sm:$0xf]
    %v4737 = vld [vmem:[%s5 + $0x58] sm:$0xf]
    %v4738 = vld [vmem:[%s5 + $0x5c] sm:$0xf]
    %v4739 = vld [vmem:[%s5 + $0x60] sm:$0xf]
    %v4740 = vld [vmem:[%s5 + $0x64] sm:$0xf]
    %v4741 = vld [vmem:[%s5 + $0x68] sm:$0xf]
    %v4742 = vld [vmem:[%s5 + $0x6c] sm:$0xf]
    %v4743 = vld [vmem:[%s5 + $0x70] sm:$0xf]
    %v4744 = vld [vmem:[%s5 + $0x74] sm:$0xf]
    %v4745 = vld [vmem:[%s5 + $0x78] sm:$0xf]
    %v4746 = vld [vmem:[%s5 + $0x7c] sm:$0xf]
    %s4747 = scalar_lea.vmem %s5, 128
    %v4748 = vld [vmem:[%s4747] sm:$0xf]
    %v4749 = vld [vmem:[%s4747 + $0x4] sm:$0xf]
    %v4750 = vld [vmem:[%s4747 + $0x8] sm:$0xf]
    %v4751 = vld [vmem:[%s4747 + $0xc] sm:$0xf]
    %v4752 = vld [vmem:[%s4747 + $0x10] sm:$0xf]
    %v4753 = vld [vmem:[%s4747 + $0x14] sm:$0xf]
    %v4754 = vld [vmem:[%s4747 + $0x18] sm:$0xf]
    %v4755 = vld [vmem:[%s4747 + $0x1c] sm:$0xf]
    %v4756 = vld [vmem:[%s4747 + $0x20] sm:$0xf]
    %v4757 = vld [vmem:[%s4747 + $0x24] sm:$0xf]
    %v4758 = vld [vmem:[%s4747 + $0x28] sm:$0xf]
    %v4759 = vld [vmem:[%s4747 + $0x2c] sm:$0xf]
    %v4760 = vld [vmem:[%s4747 + $0x30] sm:$0xf]
    %v4761 = vld [vmem:[%s4747 + $0x34] sm:$0xf]
    %v4762 = vld [vmem:[%s4747 + $0x38] sm:$0xf]
    %v4763 = vld [vmem:[%s4747 + $0x3c] sm:$0xf]
    %v4764 = vld [vmem:[%s4747 + $0x40] sm:$0xf]
    %v4765 = vld [vmem:[%s4747 + $0x44] sm:$0xf]
    %v4766 = vld [vmem:[%s4747 + $0x48] sm:$0xf]
    %v4767 = vld [vmem:[%s4747 + $0x4c] sm:$0xf]
    %v4768 = vld [vmem:[%s4747 + $0x50] sm:$0xf]
    %v4769 = vld [vmem:[%s4747 + $0x54] sm:$0xf]
    %v4770 = vld [vmem:[%s4747 + $0x58] sm:$0xf]
    %v4771 = vld [vmem:[%s4747 + $0x5c] sm:$0xf]
    %v4772 = vld [vmem:[%s4747 + $0x60] sm:$0xf]
    %v4773 = vld [vmem:[%s4747 + $0x64] sm:$0xf]
    %v4774 = vld [vmem:[%s4747 + $0x68] sm:$0xf]
    %v4775 = vld [vmem:[%s4747 + $0x6c] sm:$0xf]
    %v4776 = vld [vmem:[%s4747 + $0x70] sm:$0xf]
    %v4777 = vld [vmem:[%s4747 + $0x74] sm:$0xf]
    %v4778 = vld [vmem:[%s4747 + $0x78] sm:$0xf]
    %v4779 = vld [vmem:[%s4747 + $0x7c] sm:$0xf]
    %v4782 = vrot.slane %v4713, 2
    %v4783 = vrot.slane %v4714, 2
    %v4818 = vunpack.c.l.b16 %v4748
    %v4819 = vunpack.c.l.b16 %v4749
    %v4820 = vunpack.c.l.b16 %v4750
    %v4821 = vunpack.c.l.b16 %v4751
    %v4822 = vunpack.c.l.b16 %v4752
    %v4823 = vunpack.c.l.b16 %v4753
    %v4824 = vunpack.c.l.b16 %v4754
    %v4825 = vunpack.c.l.b16 %v4755
    %v4826 = vunpack.c.l.b16 %v4756
    %v4827 = vunpack.c.l.b16 %v4757
    %v4828 = vunpack.c.l.b16 %v4758
    %v4829 = vunpack.c.l.b16 %v4759
    %v4830 = vunpack.c.l.b16 %v4760
    %v4831 = vunpack.c.l.b16 %v4761
    %v4832 = vunpack.c.l.b16 %v4762
    %v4833 = vunpack.c.l.b16 %v4763
    %v4834 = vunpack.c.l.b16 %v4764
    %v4835 = vunpack.c.l.b16 %v4765
    %v4836 = vunpack.c.l.b16 %v4766
    %v4837 = vunpack.c.l.b16 %v4767
    %v4838 = vunpack.c.l.b16 %v4768
    %v4839 = vunpack.c.l.b16 %v4769
    %v4840 = vunpack.c.l.b16 %v4770
    %v4841 = vunpack.c.l.b16 %v4771
    %v4842 = vunpack.c.l.b16 %v4772
    %v4843 = vunpack.c.l.b16 %v4773
    %v4844 = vunpack.c.l.b16 %v4774
    %v4845 = vunpack.c.l.b16 %v4775
    %v4846 = vunpack.c.l.b16 %v4776
    %v4847 = vunpack.c.l.b16 %v4777
    %v4848 = vunpack.c.l.b16 %v4778
    %v4849 = vunpack.c.l.b16 %v4779
    %v4850 = vpack.c.b16 %v4819, %v4818
    %v4851 = vpack.c.b16 %v4821, %v4820
    %v4852 = vpack.c.b16 %v4823, %v4822
    %v4853 = vpack.c.b16 %v4825, %v4824
    %v4854 = vpack.c.b16 %v4827, %v4826
    %v4855 = vpack.c.b16 %v4829, %v4828
    %v4856 = vpack.c.b16 %v4831, %v4830
    %v4857 = vpack.c.b16 %v4833, %v4832
    %v4858 = vpack.c.b16 %v4835, %v4834
    %v4859 = vpack.c.b16 %v4837, %v4836
    %v4860 = vpack.c.b16 %v4839, %v4838
    %v4861 = vpack.c.b16 %v4841, %v4840
    %v4862 = vpack.c.b16 %v4843, %v4842
    %v4863 = vpack.c.b16 %v4845, %v4844
    %v4864 = vpack.c.b16 %v4847, %v4846
    %v4865 = vpack.c.b16 %v4849, %v4848
    %4882 = vmatprep.subr.bf16.mxu0 0
    %4883 = vmatpush1.bf16.msra.mxu0 %v4850
    %4884 = vmatprep.subr.bf16.mxu0 0
    %4885 = vmatpush1.bf16.msra.mxu0 %v4851
    %4886 = vmatprep.subr.bf16.mxu0 0
    %4887 = vmatpush1.bf16.msra.mxu0 %v4852
    %4888 = vmatprep.subr.bf16.mxu0 0
    %4889 = vmatpush1.bf16.msra.mxu0 %v4853
    %4890 = vmatprep.subr.bf16.mxu0 0
    %4891 = vmatpush1.bf16.msra.mxu0 %v4854
    %4892 = vmatprep.subr.bf16.mxu0 0
    %4893 = vmatpush1.bf16.msra.mxu0 %v4855
    %4894 = vmatprep.subr.bf16.mxu0 0
    %4895 = vmatpush1.bf16.msra.mxu0 %v4856
    %4896 = vmatprep.subr.bf16.mxu0 0
    %4897 = vmatpush1.bf16.msra.mxu0 %v4857
    %4898 = vmatprep.subr.bf16.mxu0 0
    %4899 = vmatpush1.bf16.msra.mxu0 %v4858
    %4900 = vmatprep.subr.bf16.mxu0 0
    %4901 = vmatpush1.bf16.msra.mxu0 %v4859
    %4902 = vmatprep.subr.bf16.mxu0 0
    %4903 = vmatpush1.bf16.msra.mxu0 %v4860
    %4904 = vmatprep.subr.bf16.mxu0 0
    %4905 = vmatpush1.bf16.msra.mxu0 %v4861
    %4906 = vmatprep.subr.bf16.mxu0 0
    %4907 = vmatpush1.bf16.msra.mxu0 %v4862
    %4908 = vmatprep.subr.bf16.mxu0 0
    %4909 = vmatpush1.bf16.msra.mxu0 %v4863
    %4910 = vmatprep.subr.bf16.mxu0 0
    %4911 = vmatpush1.bf16.msra.mxu0 %v4864
    %4912 = vmatprep.subr.bf16.mxu0 0
    %4913 = vmatpush1.bf16.msra.mxu0 %v4865
    %4914 = vmatprep.mubr.bf16.mxu0 %v4783
    %4915 = vmatmul.mubr.bf16.gmra.mrb[0].mxu0 %v4782
    %v4916 = vpop.f32.mrb[0].mxu0
    %v4917 = vadd.f32 0.0, %v4916
    %v4918 = vpop.f32.mrb[0].mxu0
    %v4919 = vpop.f32.mrb[0].mxu0
    %v4920 = vpop.f32.mrb[0].mxu0
    %4921 = vdwg.mxu0
    %v4954 = vunpack.c.l.b16 %v4715
    %v4955 = vunpack.c.l.b16 %v4716
    %v4956 = vunpack.c.l.b16 %v4717
    %v4957 = vunpack.c.l.b16 %v4718
    %v4958 = vunpack.c.l.b16 %v4719
    %v4959 = vunpack.c.l.b16 %v4720
    %v4960 = vunpack.c.l.b16 %v4721
    %v4961 = vunpack.c.l.b16 %v4722
    %v4962 = vunpack.c.l.b16 %v4723
    %v4963 = vunpack.c.l.b16 %v4724
    %v4964 = vunpack.c.l.b16 %v4725
    %v4965 = vunpack.c.l.b16 %v4726
    %v4966 = vunpack.c.l.b16 %v4727
    %v4967 = vunpack.c.l.b16 %v4728
    %v4968 = vunpack.c.l.b16 %v4729
    %v4969 = vunpack.c.l.b16 %v4730
    %v4970 = vunpack.c.l.b16 %v4731
    %v4971 = vunpack.c.l.b16 %v4732
    %v4972 = vunpack.c.l.b16 %v4733
    %v4973 = vunpack.c.l.b16 %v4734
    %v4974 = vunpack.c.l.b16 %v4735
    %v4975 = vunpack.c.l.b16 %v4736
    %v4976 = vunpack.c.l.b16 %v4737
    %v4977 = vunpack.c.l.b16 %v4738
    %v4978 = vunpack.c.l.b16 %v4739
    %v4979 = vunpack.c.l.b16 %v4740
    %v4980 = vunpack.c.l.b16 %v4741
    %v4981 = vunpack.c.l.b16 %v4742
    %v4982 = vunpack.c.l.b16 %v4743
    %v4983 = vunpack.c.l.b16 %v4744
    %v4984 = vunpack.c.l.b16 %v4745
    %v4985 = vunpack.c.l.b16 %v4746
    %v4986 = vpack.c.b16 %v4955, %v4954
    %v4987 = vpack.c.b16 %v4957, %v4956
    %v4988 = vpack.c.b16 %v4959, %v4958
    %v4989 = vpack.c.b16 %v4961, %v4960
    %v4990 = vpack.c.b16 %v4963, %v4962
    %v4991 = vpack.c.b16 %v4965, %v4964
    %v4992 = vpack.c.b16 %v4967, %v4966
    %v4993 = vpack.c.b16 %v4969, %v4968
    %v4994 = vpack.c.b16 %v4971, %v4970
    %v4995 = vpack.c.b16 %v4973, %v4972
    %v4996 = vpack.c.b16 %v4975, %v4974
    %v4997 = vpack.c.b16 %v4977, %v4976
    %v4998 = vpack.c.b16 %v4979, %v4978
    %v4999 = vpack.c.b16 %v4981, %v4980
    %v5000 = vpack.c.b16 %v4983, %v4982
    %v5001 = vpack.c.b16 %v4985, %v4984
    %5018 = vmatprep.subr.bf16.mxu0 0
    %5019 = vmatpush1.bf16.msra.mxu0 %v4986
    %5020 = vmatprep.subr.bf16.mxu0 0
    %5021 = vmatpush1.bf16.msra.mxu0 %v4987
    %5022 = vmatprep.subr.bf16.mxu0 0
    %5023 = vmatpush1.bf16.msra.mxu0 %v4988
    %5024 = vmatprep.subr.bf16.mxu0 0
    %5025 = vmatpush1.bf16.msra.mxu0 %v4989
    %5026 = vmatprep.subr.bf16.mxu0 0
    %5027 = vmatpush1.bf16.msra.mxu0 %v4990
    %5028 = vmatprep.subr.bf16.mxu0 0
    %5029 = vmatpush1.bf16.msra.mxu0 %v4991
    %5030 = vmatprep.subr.bf16.mxu0 0
    %5031 = vmatpush1.bf16.msra.mxu0 %v4992
    %5032 = vmatprep.subr.bf16.mxu0 0
    %5033 = vmatpush1.bf16.msra.mxu0 %v4993
    %5034 = vmatprep.subr.bf16.mxu0 0
    %5035 = vmatpush1.bf16.msra.mxu0 %v4994
    %5036 = vmatprep.subr.bf16.mxu0 0
    %5037 = vmatpush1.bf16.msra.mxu0 %v4995
    %5038 = vmatprep.subr.bf16.mxu0 0
    %5039 = vmatpush1.bf16.msra.mxu0 %v4996
    %5040 = vmatprep.subr.bf16.mxu0 0
    %5041 = vmatpush1.bf16.msra.mxu0 %v4997
    %5042 = vmatprep.subr.bf16.mxu0 0
    %5043 = vmatpush1.bf16.msra.mxu0 %v4998
    %5044 = vmatprep.subr.bf16.mxu0 0
    %5045 = vmatpush1.bf16.msra.mxu0 %v4999
    %5046 = vmatprep.subr.bf16.mxu0 0
    %5047 = vmatpush1.bf16.msra.mxu0 %v5000
    %5048 = vmatprep.subr.bf16.mxu0 0
    %5049 = vmatpush1.bf16.msra.mxu0 %v5001
    %5050 = vmatprep.mubr.bf16.mxu0 %v4714
    %5051 = vmatmul.mubr.bf16.gmra.mrb[0].mxu0 %v4713
    %v5052 = vpop.f32.mrb[0].mxu0
    %v5053 = vadd.f32 %v4917, %v5052
    %v5054 = vpop.f32.mrb[0].mxu0
    %v5055 = vpop.f32.mrb[0].mxu0
    %v5056 = vpop.f32.mrb[0].mxu0
    %5057 = vdwg.mxu0
    %v5060 = vrot.slane %v4701, 2
    %v5061 = vrot.slane %v4702, 2
    %v5064 = vmax.f32 %v4701, %v5060
    %v5065 = vmax.f32 %v4702, %v5061
    %v5066 = vpack.c.bf16 %v5064, %v5064
    %v5067 = vpack.c.bf16 %v5065, %v5065
    %s5068 = scalar_lea.vmem %s5, 256
    %v5069 = vld [vmem:[%s5068] sm:$0xf]
    %v5070 = vld [vmem:[%s5068 + $0x4] sm:$0xf]
    %v5071 = vld [vmem:[%s5068 + $0x8] sm:$0xf]
    %v5072 = vld [vmem:[%s5068 + $0xc] sm:$0xf]
    %v5073 = vld [vmem:[%s5068 + $0x10] sm:$0xf]
    %v5074 = vld [vmem:[%s5068 + $0x14] sm:$0xf]
    %v5075 = vld [vmem:[%s5068 + $0x18] sm:$0xf]
    %v5076 = vld [vmem:[%s5068 + $0x1c] sm:$0xf]
    %v5077 = vld [vmem:[%s5068 + $0x20] sm:$0xf]
    %v5078 = vld [vmem:[%s5068 + $0x24] sm:$0xf]
    %v5079 = vld [vmem:[%s5068 + $0x28] sm:$0xf]
    %v5080 = vld [vmem:[%s5068 + $0x2c] sm:$0xf]
    %v5081 = vld [vmem:[%s5068 + $0x30] sm:$0xf]
    %v5082 = vld [vmem:[%s5068 + $0x34] sm:$0xf]
    %v5083 = vld [vmem:[%s5068 + $0x38] sm:$0xf]
    %v5084 = vld [vmem:[%s5068 + $0x3c] sm:$0xf]
    %v5085 = vld [vmem:[%s5068 + $0x40] sm:$0xf]
    %v5086 = vld [vmem:[%s5068 + $0x44] sm:$0xf]
    %v5087 = vld [vmem:[%s5068 + $0x48] sm:$0xf]
    %v5088 = vld [vmem:[%s5068 + $0x4c] sm:$0xf]
    %v5089 = vld [vmem:[%s5068 + $0x50] sm:$0xf]
    %v5090 = vld [vmem:[%s5068 + $0x54] sm:$0xf]
    %v5091 = vld [vmem:[%s5068 + $0x58] sm:$0xf]
    %v5092 = vld [vmem:[%s5068 + $0x5c] sm:$0xf]
    %v5093 = vld [vmem:[%s5068 + $0x60] sm:$0xf]
    %v5094 = vld [vmem:[%s5068 + $0x64] sm:$0xf]
    %v5095 = vld [vmem:[%s5068 + $0x68] sm:$0xf]
    %v5096 = vld [vmem:[%s5068 + $0x6c] sm:$0xf]
    %v5097 = vld [vmem:[%s5068 + $0x70] sm:$0xf]
    %v5098 = vld [vmem:[%s5068 + $0x74] sm:$0xf]
    %v5099 = vld [vmem:[%s5068 + $0x78] sm:$0xf]
    %v5100 = vld [vmem:[%s5068 + $0x7c] sm:$0xf]
    %v5133 = vunpack.c.l.b16 %v5069
    %v5134 = vunpack.c.l.b16 %v5070
    %v5135 = vunpack.c.l.b16 %v5071
    %v5136 = vunpack.c.l.b16 %v5072
    %v5137 = vunpack.c.l.b16 %v5073
    %v5138 = vunpack.c.l.b16 %v5074
    %v5139 = vunpack.c.l.b16 %v5075
    %v5140 = vunpack.c.l.b16 %v5076
    %v5141 = vunpack.c.l.b16 %v5077
    %v5142 = vunpack.c.l.b16 %v5078
    %v5143 = vunpack.c.l.b16 %v5079
    %v5144 = vunpack.c.l.b16 %v5080
    %v5145 = vunpack.c.l.b16 %v5081
    %v5146 = vunpack.c.l.b16 %v5082
    %v5147 = vunpack.c.l.b16 %v5083
    %v5148 = vunpack.c.l.b16 %v5084
    %v5149 = vunpack.c.l.b16 %v5085
    %v5150 = vunpack.c.l.b16 %v5086
    %v5151 = vunpack.c.l.b16 %v5087
    %v5152 = vunpack.c.l.b16 %v5088
    %v5153 = vunpack.c.l.b16 %v5089
    %v5154 = vunpack.c.l.b16 %v5090
    %v5155 = vunpack.c.l.b16 %v5091
    %v5156 = vunpack.c.l.b16 %v5092
    %v5157 = vunpack.c.l.b16 %v5093
    %v5158 = vunpack.c.l.b16 %v5094
    %v5159 = vunpack.c.l.b16 %v5095
    %v5160 = vunpack.c.l.b16 %v5096
    %v5161 = vunpack.c.l.b16 %v5097
    %v5162 = vunpack.c.l.b16 %v5098
    %v5163 = vunpack.c.l.b16 %v5099
    %v5164 = vunpack.c.l.b16 %v5100
    %v5165 = vpack.c.b16 %v5134, %v5133
    %v5166 = vpack.c.b16 %v5136, %v5135
    %v5167 = vpack.c.b16 %v5138, %v5137
    %v5168 = vpack.c.b16 %v5140, %v5139
    %v5169 = vpack.c.b16 %v5142, %v5141
    %v5170 = vpack.c.b16 %v5144, %v5143
    %v5171 = vpack.c.b16 %v5146, %v5145
    %v5172 = vpack.c.b16 %v5148, %v5147
    %v5173 = vpack.c.b16 %v5150, %v5149
    %v5174 = vpack.c.b16 %v5152, %v5151
    %v5175 = vpack.c.b16 %v5154, %v5153
    %v5176 = vpack.c.b16 %v5156, %v5155
    %v5177 = vpack.c.b16 %v5158, %v5157
    %v5178 = vpack.c.b16 %v5160, %v5159
    %v5179 = vpack.c.b16 %v5162, %v5161
    %v5180 = vpack.c.b16 %v5164, %v5163
    %5197 = vmatprep.subr.bf16.mxu0 0
    %5198 = vmatpush1.bf16.msra.mxu0 %v5165
    %5199 = vmatprep.subr.bf16.mxu0 0
    %5200 = vmatpush1.bf16.msra.mxu0 %v5166
    %5201 = vmatprep.subr.bf16.mxu0 0
    %5202 = vmatpush1.bf16.msra.mxu0 %v5167
    %5203 = vmatprep.subr.bf16.mxu0 0
    %5204 = vmatpush1.bf16.msra.mxu0 %v5168
    %5205 = vmatprep.subr.bf16.mxu0 0
    %5206 = vmatpush1.bf16.msra.mxu0 %v5169
    %5207 = vmatprep.subr.bf16.mxu0 0
    %5208 = vmatpush1.bf16.msra.mxu0 %v5170
    %5209 = vmatprep.subr.bf16.mxu0 0
    %5210 = vmatpush1.bf16.msra.mxu0 %v5171
    %5211 = vmatprep.subr.bf16.mxu0 0
    %5212 = vmatpush1.bf16.msra.mxu0 %v5172
    %5213 = vmatprep.subr.bf16.mxu0 0
    %5214 = vmatpush1.bf16.msra.mxu0 %v5173
    %5215 = vmatprep.subr.bf16.mxu0 0
    %5216 = vmatpush1.bf16.msra.mxu0 %v5174
    %5217 = vmatprep.subr.bf16.mxu0 0
    %5218 = vmatpush1.bf16.msra.mxu0 %v5175
    %5219 = vmatprep.subr.bf16.mxu0 0
    %5220 = vmatpush1.bf16.msra.mxu0 %v5176
    %5221 = vmatprep.subr.bf16.mxu0 0
    %5222 = vmatpush1.bf16.msra.mxu0 %v5177
    %5223 = vmatprep.subr.bf16.mxu0 0
    %5224 = vmatpush1.bf16.msra.mxu0 %v5178
    %5225 = vmatprep.subr.bf16.mxu0 0
    %5226 = vmatpush1.bf16.msra.mxu0 %v5179
    %5227 = vmatprep.subr.bf16.mxu0 0
    %5228 = vmatpush1.bf16.msra.mxu0 %v5180
    %5229 = vmatprep.mubr.bf16.mxu0 %v5067
    %5230 = vmatmul.mubr.bf16.gmra.mrb[0].mxu0 %v5066
    %v5231 = vpop.f32.mrb[0].mxu0
    %v5232 = vadd.f32 0.0, %v5231
    %v5233 = vpop.f32.mrb[0].mxu0
    %v5234 = vpop.f32.mrb[0].mxu0
    %v5235 = vpop.f32.mrb[0].mxu0
    %5236 = vdwg.mxu0
    %v5237 = vadd.f32 %v5053, %v5232
    %s5238 = scalar_lea.vmem %s5, 384
    %v5239 = vld [vmem:[%s5238] sm:$0xf]
    %v5240 = vld [vmem:[%s5238 + $0x4] sm:$0xf]
    %v5241 = vld [vmem:[%s5238 + $0x8] sm:$0xf]
    %v5242 = vld [vmem:[%s5238 + $0xc] sm:$0xf]
    %v5243 = vld [vmem:[%s5238 + $0x10] sm:$0xf]
    %v5244 = vld [vmem:[%s5238 + $0x14] sm:$0xf]
    %v5245 = vld [vmem:[%s5238 + $0x18] sm:$0xf]
    %v5246 = vld [vmem:[%s5238 + $0x1c] sm:$0xf]
    %v5247 = vld [vmem:[%s5238 + $0x20] sm:$0xf]
    %v5248 = vld [vmem:[%s5238 + $0x24] sm:$0xf]
    %v5249 = vld [vmem:[%s5238 + $0x28] sm:$0xf]
    %v5250 = vld [vmem:[%s5238 + $0x2c] sm:$0xf]
    %v5251 = vld [vmem:[%s5238 + $0x30] sm:$0xf]
    %v5252 = vld [vmem:[%s5238 + $0x34] sm:$0xf]
    %v5253 = vld [vmem:[%s5238 + $0x38] sm:$0xf]
    %v5254 = vld [vmem:[%s5238 + $0x3c] sm:$0xf]
    %v5255 = vld [vmem:[%s5238 + $0x40] sm:$0xf]
    %v5256 = vld [vmem:[%s5238 + $0x44] sm:$0xf]
    %v5257 = vld [vmem:[%s5238 + $0x48] sm:$0xf]
    %v5258 = vld [vmem:[%s5238 + $0x4c] sm:$0xf]
    %v5259 = vld [vmem:[%s5238 + $0x50] sm:$0xf]
    %v5260 = vld [vmem:[%s5238 + $0x54] sm:$0xf]
    %v5261 = vld [vmem:[%s5238 + $0x58] sm:$0xf]
    %v5262 = vld [vmem:[%s5238 + $0x5c] sm:$0xf]
    %v5263 = vld [vmem:[%s5238 + $0x60] sm:$0xf]
    %v5264 = vld [vmem:[%s5238 + $0x64] sm:$0xf]
    %v5265 = vld [vmem:[%s5238 + $0x68] sm:$0xf]
    %v5266 = vld [vmem:[%s5238 + $0x6c] sm:$0xf]
    %v5267 = vld [vmem:[%s5238 + $0x70] sm:$0xf]
    %v5268 = vld [vmem:[%s5238 + $0x74] sm:$0xf]
    %v5269 = vld [vmem:[%s5238 + $0x78] sm:$0xf]
    %v5270 = vld [vmem:[%s5238 + $0x7c] sm:$0xf]
    %v5273 = vrot.slane %v5066, 2
    %v5274 = vrot.slane %v5067, 2
    %v5309 = vunpack.c.l.b16 %v5239
    %v5310 = vunpack.c.l.b16 %v5240
    %v5311 = vunpack.c.l.b16 %v5241
    %v5312 = vunpack.c.l.b16 %v5242
    %v5313 = vunpack.c.l.b16 %v5243
    %v5314 = vunpack.c.l.b16 %v5244
    %v5315 = vunpack.c.l.b16 %v5245
    %v5316 = vunpack.c.l.b16 %v5246
    %v5317 = vunpack.c.l.b16 %v5247
    %v5318 = vunpack.c.l.b16 %v5248
    %v5319 = vunpack.c.l.b16 %v5249
    %v5320 = vunpack.c.l.b16 %v5250
    %v5321 = vunpack.c.l.b16 %v5251
    %v5322 = vunpack.c.l.b16 %v5252
    %v5323 = vunpack.c.l.b16 %v5253
    %v5324 = vunpack.c.l.b16 %v5254
    %v5325 = vunpack.c.l.b16 %v5255
    %v5326 = vunpack.c.l.b16 %v5256
    %v5327 = vunpack.c.l.b16 %v5257
    %v5328 = vunpack.c.l.b16 %v5258
    %v5329 = vunpack.c.l.b16 %v5259
    %v5330 = vunpack.c.l.b16 %v5260
    %v5331 = vunpack.c.l.b16 %v5261
    %v5332 = vunpack.c.l.b16 %v5262
    %v5333 = vunpack.c.l.b16 %v5263
    %v5334 = vunpack.c.l.b16 %v5264
    %v5335 = vunpack.c.l.b16 %v5265
    %v5336 = vunpack.c.l.b16 %v5266
    %v5337 = vunpack.c.l.b16 %v5267
    %v5338 = vunpack.c.l.b16 %v5268
    %v5339 = vunpack.c.l.b16 %v5269
    %v5340 = vunpack.c.l.b16 %v5270
    %v5341 = vpack.c.b16 %v5310, %v5309
    %v5342 = vpack.c.b16 %v5312, %v5311
    %v5343 = vpack.c.b16 %v5314, %v5313
    %v5344 = vpack.c.b16 %v5316, %v5315
    %v5345 = vpack.c.b16 %v5318, %v5317
    %v5346 = vpack.c.b16 %v5320, %v5319
    %v5347 = vpack.c.b16 %v5322, %v5321
    %v5348 = vpack.c.b16 %v5324, %v5323
    %v5349 = vpack.c.b16 %v5326, %v5325
    %v5350 = vpack.c.b16 %v5328, %v5327
    %v5351 = vpack.c.b16 %v5330, %v5329
    %v5352 = vpack.c.b16 %v5332, %v5331
    %v5353 = vpack.c.b16 %v5334, %v5333
    %v5354 = vpack.c.b16 %v5336, %v5335
    %v5355 = vpack.c.b16 %v5338, %v5337
    %v5356 = vpack.c.b16 %v5340, %v5339
    %5373 = vmatprep.subr.bf16.mxu0 0
    %5374 = vmatpush1.bf16.msra.mxu0 %v5341
    %5375 = vmatprep.subr.bf16.mxu0 0
    %5376 = vmatpush1.bf16.msra.mxu0 %v5342
    %5377 = vmatprep.subr.bf16.mxu0 0
    %5378 = vmatpush1.bf16.msra.mxu0 %v5343
    %5379 = vmatprep.subr.bf16.mxu0 0
    %5380 = vmatpush1.bf16.msra.mxu0 %v5344
    %5381 = vmatprep.subr.bf16.mxu0 0
    %5382 = vmatpush1.bf16.msra.mxu0 %v5345
    %5383 = vmatprep.subr.bf16.mxu0 0
    %5384 = vmatpush1.bf16.msra.mxu0 %v5346
    %5385 = vmatprep.subr.bf16.mxu0 0
    %5386 = vmatpush1.bf16.msra.mxu0 %v5347
    %5387 = vmatprep.subr.bf16.mxu0 0
    %5388 = vmatpush1.bf16.msra.mxu0 %v5348
    %5389 = vmatprep.subr.bf16.mxu0 0
    %5390 = vmatpush1.bf16.msra.mxu0 %v5349
    %5391 = vmatprep.subr.bf16.mxu0 0
    %5392 = vmatpush1.bf16.msra.mxu0 %v5350
    %5393 = vmatprep.subr.bf16.mxu0 0
    %5394 = vmatpush1.bf16.msra.mxu0 %v5351
    %5395 = vmatprep.subr.bf16.mxu0 0
    %5396 = vmatpush1.bf16.msra.mxu0 %v5352
    %5397 = vmatprep.subr.bf16.mxu0 0
    %5398 = vmatpush1.bf16.msra.mxu0 %v5353
    %5399 = vmatprep.subr.bf16.mxu0 0
    %5400 = vmatpush1.bf16.msra.mxu0 %v5354
    %5401 = vmatprep.subr.bf16.mxu0 0
    %5402 = vmatpush1.bf16.msra.mxu0 %v5355
    %5403 = vmatprep.subr.bf16.mxu0 0
    %5404 = vmatpush1.bf16.msra.mxu0 %v5356
    %5405 = vmatprep.mubr.bf16.mxu0 %v5274
    %5406 = vmatmul.mubr.bf16.gmra.mrb[0].mxu0 %v5273
    %v5407 = vpop.f32.mrb[0].mxu0
    %v5408 = vadd.f32 0.0, %v5407
    %v5409 = vpop.f32.mrb[0].mxu0
    %v5410 = vpop.f32.mrb[0].mxu0
    %v5411 = vpop.f32.mrb[0].mxu0
    %5412 = vdwg.mxu0
    %v5413 = vadd.f32 %v5237, %v5408
    %v5416 = vrot.slane %v4703, 2
    %v5417 = vrot.slane %v4704, 2
    %v5420 = vmax.f32 %v4703, %v5416
    %v5421 = vmax.f32 %v4704, %v5417
    %v5422 = vpack.c.bf16 %v5420, %v5420
    %v5423 = vpack.c.bf16 %v5421, %v5421
    %s5424 = scalar_lea.vmem %s5, 512
    %v5425 = vld [vmem:[%s5424] sm:$0xf]
    %v5426 = vld [vmem:[%s5424 + $0x4] sm:$0xf]
    %v5427 = vld [vmem:[%s5424 + $0x8] sm:$0xf]
    %v5428 = vld [vmem:[%s5424 + $0xc] sm:$0xf]
    %v5429 = vld [vmem:[%s5424 + $0x10] sm:$0xf]
    %v5430 = vld [vmem:[%s5424 + $0x14] sm:$0xf]
    %v5431 = vld [vmem:[%s5424 + $0x18] sm:$0xf]
    %v5432 = vld [vmem:[%s5424 + $0x1c] sm:$0xf]
    %v5433 = vld [vmem:[%s5424 + $0x20] sm:$0xf]
    %v5434 = vld [vmem:[%s5424 + $0x24] sm:$0xf]
    %v5435 = vld [vmem:[%s5424 + $0x28] sm:$0xf]
    %v5436 = vld [vmem:[%s5424 + $0x2c] sm:$0xf]
    %v5437 = vld [vmem:[%s5424 + $0x30] sm:$0xf]
    %v5438 = vld [vmem:[%s5424 + $0x34] sm:$0xf]
    %v5439 = vld [vmem:[%s5424 + $0x38] sm:$0xf]
    %v5440 = vld [vmem:[%s5424 + $0x3c] sm:$0xf]
    %v5441 = vld [vmem:[%s5424 + $0x40] sm:$0xf]
    %v5442 = vld [vmem:[%s5424 + $0x44] sm:$0xf]
    %v5443 = vld [vmem:[%s5424 + $0x48] sm:$0xf]
    %v5444 = vld [vmem:[%s5424 + $0x4c] sm:$0xf]
    %v5445 = vld [vmem:[%s5424 + $0x50] sm:$0xf]
    %v5446 = vld [vmem:[%s5424 + $0x54] sm:$0xf]
    %v5447 = vld [vmem:[%s5424 + $0x58] sm:$0xf]
    %v5448 = vld [vmem:[%s5424 + $0x5c] sm:$0xf]
    %v5449 = vld [vmem:[%s5424 + $0x60] sm:$0xf]
    %v5450 = vld [vmem:[%s5424 + $0x64] sm:$0xf]
    %v5451 = vld [vmem:[%s5424 + $0x68] sm:$0xf]
    %v5452 = vld [vmem:[%s5424 + $0x6c] sm:$0xf]
    %v5453 = vld [vmem:[%s5424 + $0x70] sm:$0xf]
    %v5454 = vld [vmem:[%s5424 + $0x74] sm:$0xf]
    %v5455 = vld [vmem:[%s5424 + $0x78] sm:$0xf]
    %v5456 = vld [vmem:[%s5424 + $0x7c] sm:$0xf]
    %v5489 = vunpack.c.l.b16 %v5425
    %v5490 = vunpack.c.l.b16 %v5426
    %v5491 = vunpack.c.l.b16 %v5427
    %v5492 = vunpack.c.l.b16 %v5428
    %v5493 = vunpack.c.l.b16 %v5429
    %v5494 = vunpack.c.l.b16 %v5430
    %v5495 = vunpack.c.l.b16 %v5431
    %v5496 = vunpack.c.l.b16 %v5432
    %v5497 = vunpack.c.l.b16 %v5433
    %v5498 = vunpack.c.l.b16 %v5434
    %v5499 = vunpack.c.l.b16 %v5435
    %v5500 = vunpack.c.l.b16 %v5436
    %v5501 = vunpack.c.l.b16 %v5437
    %v5502 = vunpack.c.l.b16 %v5438
    %v5503 = vunpack.c.l.b16 %v5439
    %v5504 = vunpack.c.l.b16 %v5440
    %v5505 = vunpack.c.l.b16 %v5441
    %v5506 = vunpack.c.l.b16 %v5442
    %v5507 = vunpack.c.l.b16 %v5443
    %v5508 = vunpack.c.l.b16 %v5444
    %v5509 = vunpack.c.l.b16 %v5445
    %v5510 = vunpack.c.l.b16 %v5446
    %v5511 = vunpack.c.l.b16 %v5447
    %v5512 = vunpack.c.l.b16 %v5448
    %v5513 = vunpack.c.l.b16 %v5449
    %v5514 = vunpack.c.l.b16 %v5450
    %v5515 = vunpack.c.l.b16 %v5451
    %v5516 = vunpack.c.l.b16 %v5452
    %v5517 = vunpack.c.l.b16 %v5453
    %v5518 = vunpack.c.l.b16 %v5454
    %v5519 = vunpack.c.l.b16 %v5455
    %v5520 = vunpack.c.l.b16 %v5456
    %v5521 = vpack.c.b16 %v5490, %v5489
    %v5522 = vpack.c.b16 %v5492, %v5491
    %v5523 = vpack.c.b16 %v5494, %v5493
    %v5524 = vpack.c.b16 %v5496, %v5495
    %v5525 = vpack.c.b16 %v5498, %v5497
    %v5526 = vpack.c.b16 %v5500, %v5499
    %v5527 = vpack.c.b16 %v5502, %v5501
    %v5528 = vpack.c.b16 %v5504, %v5503
    %v5529 = vpack.c.b16 %v5506, %v5505
    %v5530 = vpack.c.b16 %v5508, %v5507
    %v5531 = vpack.c.b16 %v5510, %v5509
    %v5532 = vpack.c.b16 %v5512, %v5511
    %v5533 = vpack.c.b16 %v5514, %v5513
    %v5534 = vpack.c.b16 %v5516, %v5515
    %v5535 = vpack.c.b16 %v5518, %v5517
    %v5536 = vpack.c.b16 %v5520, %v5519
    %5553 = vmatprep.subr.bf16.mxu0 0
    %5554 = vmatpush1.bf16.msra.mxu0 %v5521
    %5555 = vmatprep.subr.bf16.mxu0 0
    %5556 = vmatpush1.bf16.msra.mxu0 %v5522
    %5557 = vmatprep.subr.bf16.mxu0 0
    %5558 = vmatpush1.bf16.msra.mxu0 %v5523
    %5559 = vmatprep.subr.bf16.mxu0 0
    %5560 = vmatpush1.bf16.msra.mxu0 %v5524
    %5561 = vmatprep.subr.bf16.mxu0 0
    %5562 = vmatpush1.bf16.msra.mxu0 %v5525
    %5563 = vmatprep.subr.bf16.mxu0 0
    %5564 = vmatpush1.bf16.msra.mxu0 %v5526
    %5565 = vmatprep.subr.bf16.mxu0 0
    %5566 = vmatpush1.bf16.msra.mxu0 %v5527
    %5567 = vmatprep.subr.bf16.mxu0 0
    %5568 = vmatpush1.bf16.msra.mxu0 %v5528
    %5569 = vmatprep.subr.bf16.mxu0 0
    %5570 = vmatpush1.bf16.msra.mxu0 %v5529
    %5571 = vmatprep.subr.bf16.mxu0 0
    %5572 = vmatpush1.bf16.msra.mxu0 %v5530
    %5573 = vmatprep.subr.bf16.mxu0 0
    %5574 = vmatpush1.bf16.msra.mxu0 %v5531
    %5575 = vmatprep.subr.bf16.mxu0 0
    %5576 = vmatpush1.bf16.msra.mxu0 %v5532
    %5577 = vmatprep.subr.bf16.mxu0 0
    %5578 = vmatpush1.bf16.msra.mxu0 %v5533
    %5579 = vmatprep.subr.bf16.mxu0 0
    %5580 = vmatpush1.bf16.msra.mxu0 %v5534
    %5581 = vmatprep.subr.bf16.mxu0 0
    %5582 = vmatpush1.bf16.msra.mxu0 %v5535
    %5583 = vmatprep.subr.bf16.mxu0 0
    %5584 = vmatpush1.bf16.msra.mxu0 %v5536
    %5585 = vmatprep.mubr.bf16.mxu0 %v5423
    %5586 = vmatmul.mubr.bf16.gmra.mrb[0].mxu0 %v5422
    %v5587 = vpop.f32.mrb[0].mxu0
    %v5588 = vadd.f32 0.0, %v5587
    %v5589 = vpop.f32.mrb[0].mxu0
    %v5590 = vpop.f32.mrb[0].mxu0
    %v5591 = vpop.f32.mrb[0].mxu0
    %5592 = vdwg.mxu0
    %v5593 = vadd.f32 %v5413, %v5588
    %v5594 = vld [vmem:[#allocation8] sm:$0x1]
    %v5596 = vlaneseq
    %v5597 = vshrl.u32 %v5596, 7
    %v5598 = vsub.s32 0, %v5597
    %v5599 = vrot.slane %v5594, %v5598
    %v5601 = vadd.f32 %v5593, %v5599
    %v5602 = vmax.f32 %v5601, 0.0
    %v5603 = vpack.c.bf16 %v5602, %v5602
    %v5604 = vld [vmem:[%s7] sm:$0xf]
    %v5605 = vld [vmem:[%s7 + $0x4] sm:$0xf]
    %v5606 = vld [vmem:[%s7 + $0x8] sm:$0xf]
    %v5607 = vld [vmem:[%s7 + $0xc] sm:$0xf]
    %v5608 = vld [vmem:[%s7 + $0x10] sm:$0xf]
    %v5609 = vld [vmem:[%s7 + $0x14] sm:$0xf]
    %v5610 = vld [vmem:[%s7 + $0x18] sm:$0xf]
    %v5611 = vld [vmem:[%s7 + $0x1c] sm:$0xf]
    %v5612 = vld [vmem:[%s7 + $0x20] sm:$0xf]
    %v5613 = vld [vmem:[%s7 + $0x24] sm:$0xf]
    %v5614 = vld [vmem:[%s7 + $0x28] sm:$0xf]
    %v5615 = vld [vmem:[%s7 + $0x2c] sm:$0xf]
    %v5616 = vld [vmem:[%s7 + $0x30] sm:$0xf]
    %v5617 = vld [vmem:[%s7 + $0x34] sm:$0xf]
    %v5618 = vld [vmem:[%s7 + $0x38] sm:$0xf]
    %v5619 = vld [vmem:[#allocation10] sm:$0x1]
    %v5621 = vlaneseq
    %v5622 = vshrl.u32 %v5621, 7
    %v5623 = vsub.s32 0, %v5622
    %v5624 = vrot.slane %v5619, %v5623
    %v5641 = vunpack.c.l.b16 %v5604
    %v5642 = vunpack.c.l.b16 %v5605
    %v5643 = vunpack.c.l.b16 %v5606
    %v5644 = vunpack.c.l.b16 %v5607
    %v5645 = vunpack.c.l.b16 %v5608
    %v5646 = vunpack.c.l.b16 %v5609
    %v5647 = vunpack.c.l.b16 %v5610
    %v5648 = vunpack.c.l.b16 %v5611
    %v5649 = vunpack.c.l.b16 %v5612
    %v5650 = vunpack.c.l.b16 %v5613
    %v5651 = vunpack.c.l.b16 %v5614
    %v5652 = vunpack.c.l.b16 %v5615
    %v5653 = vunpack.c.l.b16 %v5616
    %v5654 = vunpack.c.l.b16 %v5617
    %v5655 = vunpack.c.l.b16 %v5618
    %v5656 = vpack.c.b16 %v5642, %v5641
    %v5657 = vpack.c.b16 %v5644, %v5643
    %v5658 = vpack.c.b16 %v5646, %v5645
    %v5659 = vpack.c.b16 %v5648, %v5647
    %v5660 = vpack.c.b16 %v5650, %v5649
    %v5661 = vpack.c.b16 %v5652, %v5651
    %v5662 = vpack.c.b16 %v5654, %v5653
    %v5663 = vpack.c.b16 %v5655, %v5655
    %vm5671 = vcmask 982016
    %v5673 = vsel %vm5671, %v5603, 0
    %vm5675 = vcmask 1043456
    %v5677 = vsel %vm5675, %v5663, 0
    %5679 = vmatprep.subr.bf16.mxu0 0
    %5680 = vmatpush1.bf16.msra.mxu0 %v5656
    %5681 = vmatprep.subr.bf16.mxu0 0
    %5682 = vmatpush1.bf16.msra.mxu0 %v5657
    %5683 = vmatprep.subr.bf16.mxu0 0
    %5684 = vmatpush1.bf16.msra.mxu0 %v5658
    %5685 = vmatprep.subr.bf16.mxu0 0
    %5686 = vmatpush1.bf16.msra.mxu0 %v5659
    %5687 = vmatprep.subr.bf16.mxu0 0
    %5688 = vmatpush1.bf16.msra.mxu0 %v5660
    %5689 = vmatprep.subr.bf16.mxu0 0
    %5690 = vmatpush1.bf16.msra.mxu0 %v5661
    %5691 = vmatprep.subr.bf16.mxu0 0
    %5692 = vmatpush1.bf16.msra.mxu0 %v5662
    %5693 = vmatprep.subr.bf16.mxu0 0
    %5694 = vmatpush1.bf16.msra.mxu0 %v5677
    %5695 = vmatprep.subr.bf16.mxu0 0
    %5696 = vmatpush1.bf16.msra.mxu0 0
    %5697 = vmatprep.subr.bf16.mxu0 0
    %5698 = vmatpush1.bf16.msra.mxu0 0
    %5699 = vmatprep.subr.bf16.mxu0 0
    %5700 = vmatpush1.bf16.msra.mxu0 0
    %5701 = vmatprep.subr.bf16.mxu0 0
    %5702 = vmatpush1.bf16.msra.mxu0 0
    %5703 = vmatprep.subr.bf16.mxu0 0
    %5704 = vmatpush1.bf16.msra.mxu0 0
    %5705 = vmatprep.subr.bf16.mxu0 0
    %5706 = vmatpush1.bf16.msra.mxu0 0
    %5707 = vmatprep.subr.bf16.mxu0 0
    %5708 = vmatpush1.bf16.msra.mxu0 0
    %5709 = vmatprep.subr.bf16.mxu0 0
    %5710 = vmatpush1.bf16.msra.mxu0 0
    %5711 = vmatprep.mubr.bf16.mxu0 0
    %5712 = vmatmul.mubr.bf16.gmra.mrb[0].mxu0 %v5673
    %v5713 = vpop.f32.mrb[0].mxu0
    %v5714 = vadd.f32 %v5624, %v5713
    %v5715 = vpop.f32.mrb[0].mxu0
    %v5716 = vpop.f32.mrb[0].mxu0
    %v5717 = vpop.f32.mrb[0].mxu0
    %5718 = vdwg.mxu0
    %v5719 = vmax.f32 %v5714, 0.0
    %v5720 = vpack.c.bf16 %v5719, %v5719
    %v5721 = vld [vmem:[#allocation11] sm:$0xf]
    %v5722 = vld [vmem:[#allocation11 + $0x4] sm:$0xf]
    %v5723 = vld [vmem:[#allocation11 + $0x8] sm:$0xf]
    %v5724 = vld [vmem:[#allocation11 + $0xc] sm:$0xf]
    %v5725 = vld [vmem:[#allocation11 + $0x10] sm:$0xf]
    %v5726 = vld [vmem:[#allocation11 + $0x14] sm:$0xf]
    %v5727 = vld [vmem:[#allocation11 + $0x18] sm:$0xf]
    %v5728 = vld [vmem:[#allocation11 + $0x1c] sm:$0xf]
    %v5729 = vld [vmem:[#allocation11 + $0x20] sm:$0xf]
    %v5730 = vld [vmem:[#allocation11 + $0x24] sm:$0xf]
    %v5731 = vld [vmem:[#allocation11 + $0x28] sm:$0x3]
    %v5732 = vld [vmem:[#allocation13] sm:$0x1]
    %v5734 = vlaneseq
    %v5735 = vshrl.u32 %v5734, 7
    %v5736 = vsub.s32 0, %v5735
    %v5737 = vrot.slane %v5732, %v5736
    %v5750 = vunpack.c.l.b16 %v5721
    %v5751 = vunpack.c.l.b16 %v5722
    %v5752 = vunpack.c.l.b16 %v5723
    %v5753 = vunpack.c.l.b16 %v5724
    %v5754 = vunpack.c.l.b16 %v5725
    %v5755 = vunpack.c.l.b16 %v5726
    %v5756 = vunpack.c.l.b16 %v5727
    %v5757 = vunpack.c.l.b16 %v5728
    %v5758 = vunpack.c.l.b16 %v5729
    %v5759 = vunpack.c.l.b16 %v5730
    %v5760 = vunpack.c.l.b16 %v5731
    %v5761 = vpack.c.b16 %v5751, %v5750
    %v5762 = vpack.c.b16 %v5753, %v5752
    %v5763 = vpack.c.b16 %v5755, %v5754
    %v5764 = vpack.c.b16 %v5757, %v5756
    %v5765 = vpack.c.b16 %v5759, %v5758
    %v5766 = vpack.c.b16 %v5760, %v5760
    %vm5772 = vcmask 687104
    %v5774 = vsel %vm5772, %v5720, 0
    %vm5776 = vcmask 1041408
    %v5778 = vsel %vm5776, %v5766, 0
    %5780 = vmatprep.subr.bf16.mxu0 0
    %5781 = vmatpush1.bf16.msra.mxu0 %v5761
    %5782 = vmatprep.subr.bf16.mxu0 0
    %5783 = vmatpush1.bf16.msra.mxu0 %v5762
    %5784 = vmatprep.subr.bf16.mxu0 0
    %5785 = vmatpush1.bf16.msra.mxu0 %v5763
    %5786 = vmatprep.subr.bf16.mxu0 0
    %5787 = vmatpush1.bf16.msra.mxu0 %v5764
    %5788 = vmatprep.subr.bf16.mxu0 0
    %5789 = vmatpush1.bf16.msra.mxu0 %v5765
    %5790 = vmatprep.subr.bf16.mxu0 0
    %5791 = vmatpush1.bf16.msra.mxu0 %v5778
    %5792 = vmatprep.subr.bf16.mxu0 0
    %5793 = vmatpush1.bf16.msra.mxu0 0
    %5794 = vmatprep.subr.bf16.mxu0 0
    %5795 = vmatpush1.bf16.msra.mxu0 0
    %5796 = vmatprep.subr.bf16.mxu0 0
    %5797 = vmatpush1.bf16.msra.mxu0 0
    %5798 = vmatprep.subr.bf16.mxu0 0
    %5799 = vmatpush1.bf16.msra.mxu0 0
    %5800 = vmatprep.subr.bf16.mxu0 0
    %5801 = vmatpush1.bf16.msra.mxu0 0
    %5802 = vmatprep.subr.bf16.mxu0 0
    %5803 = vmatpush1.bf16.msra.mxu0 0
    %5804 = vmatprep.subr.bf16.mxu0 0
    %5805 = vmatpush1.bf16.msra.mxu0 0
    %5806 = vmatprep.subr.bf16.mxu0 0
    %5807 = vmatpush1.bf16.msra.mxu0 0
    %5808 = vmatprep.subr.bf16.mxu0 0
    %5809 = vmatpush1.bf16.msra.mxu0 0
    %5810 = vmatprep.subr.bf16.mxu0 0
    %5811 = vmatpush1.bf16.msra.mxu0 0
    %5812 = vmatprep.mubr.bf16.mxu0 0
    %5813 = vmatmul.mubr.bf16.gmra.mrb[0].mxu0 %v5774
    %v5814 = vpop.f32.mrb[0].mxu0
    %v5815 = vadd.f32 %v5737, %v5814
    %v5816 = vpop.f32.mrb[0].mxu0
    %v5817 = vpop.f32.mrb[0].mxu0
    %v5818 = vpop.f32.mrb[0].mxu0
    %5819 = vdwg.mxu0
    %5820 = vst [vmem:[#allocation14] sm:$0x3] %v5815
    // Predicated region
    $region74: #{lenet_forward.1} parent=1 // pred_check
      _
    $region75: #{lenet_forward.1} parent=1 // pred_check_branch
      %5822 = sbr.rel (0) target = $region77
    $region76: #{lenet_forward.1} parent=1 // pred_region
      %s5824 = ssub.s32 32, 32
      %5825 = vsyncadd [#allocation4], %s5824
      %s5827 = sshll.u32 [#allocation14], 4
      %s5828 = int_to_ptr.vmem [resolvable:$true] %s5827
      %5830 = dma.vmem_to_hbm [thread:$0]  %s5828, 32, %s11, [#allocation4]
    $region77: #{lenet_forward.1} parent=1 // pred_fallthru
      _
    // Predicated region
    $region78: #{lenet_forward.1} parent=1 // pred_check
      _
    $region79: #{lenet_forward.1} parent=1 // pred_check_branch
      %5832 = sbr.rel (0) target = $region81
    $region80: #{lenet_forward.1} parent=1 // pred_region
      %5833 = dma.done [#allocation4], 32
    $region81: #{lenet_forward.1} parent=1 // pred_fallthru
      _
    %5834 = vsyncpa [#allocation3], 1
    %5835 = vsyncpa [#allocation6], 1
    %5836 = vsyncpa [#allocation9], 1
    %5837 = vsyncpa [#allocation12], 1
    %5838 = vsyncpa [#allocation4], 1

</llo_original>
